<compile_context>
chip_gen: v5e
topology: v5e:2x2
jax: 0.10.0
libtpu: 0.0.40
codegen_flags: <defaults>
</compile_context>

<pallas_src>
import jax
import jax.numpy as jnp
from jax.experimental import pallas as pl
from jax.experimental.pallas import tpu as pltpu


def _classifier_kernel(ids_ref, emb_hbm_ref, mask_mat_ref,
                       w1_ref, w2_ref, b2_ref,
                       w3_ref, b3_ref,
                       w4_ref, b4_ref,
                       w5_ref, b5_ref,
                       out_ref,
                       emb_buf, sems):
    """sigmoid(scorer(new) - scorer(old)) for the whole batch in one pass."""
    n_rows = emb_buf.shape[0]          # 2 * B * S gathered embedding rows

    # ---- In-kernel embedding gather: table stays in HBM, one small DMA per
    # word id, all issued up front then all waited (overlapped). -------------
    for i in range(n_rows):
        pltpu.make_async_copy(emb_hbm_ref.at[ids_ref[i]],
                              emb_buf.at[i],
                              sems.at[i]).start()
    for i in range(n_rows):
        pltpu.make_async_copy(emb_hbm_ref.at[ids_ref[i]],
                              emb_buf.at[i],
                              sems.at[i]).wait()

    x = emb_buf[...].astype(jnp.bfloat16)                       # (2B*S, D)

    # ---- embedding_transformer: Linear(D,D,no bias) -> ReLU -> Linear(D,H1) -> ReLU
    h = jnp.dot(x, w1_ref[...], preferred_element_type=jnp.float32)
    h = jnp.maximum(h, 0.0)
    h = jnp.dot(h.astype(jnp.bfloat16), w2_ref[...],
                preferred_element_type=jnp.float32) + b2_ref[...]
    h = jnp.maximum(h, 0.0)                                     # (2B*S, H1) f32

    # ---- mask + set-sum as a single MXU matmul with a block-diagonal mask
    # matrix (v[b] = sum_s mask[b,s] * h[b*S + s]) — no reshapes needed. -----
    v = jnp.dot(mask_mat_ref[...], h.astype(jnp.bfloat16),
                preferred_element_type=jnp.float32)             # (2B, H1) f32

    # ---- post_transformer: Linear -> ReLU -> Linear -> Dropout(eval: id) -> ReLU -> Linear
    # TODO(synk): nn.Dropout is identity in eval mode; training-mode dropout not implemented.
    v = jnp.dot(v.astype(jnp.bfloat16), w3_ref[...],
                preferred_element_type=jnp.float32) + b3_ref[...]
    v = jnp.maximum(v, 0.0)                                     # (2B, H2)
    v = jnp.dot(v.astype(jnp.bfloat16), w4_ref[...],
                preferred_element_type=jnp.float32) + b4_ref[...]
    v = jnp.maximum(v, 0.0)                                     # (2B, H2//2)

    # Final Linear(H2//2, 1): VPU multiply + lane reduce instead of a width-1
    # MXU push.
    s = jnp.sum(v * w5_ref[...], axis=-1, keepdims=True) + b5_ref[...]  # (2B, 1)

    B = out_ref.shape[0]
    out_ref[...] = jax.nn.sigmoid(s[B:] - s[:B])                # (B, 1)


def setinstance_classifier(word_set, mask, new_word_set, new_mask, params):
    """word_set/new_word_set: (B, S) int32; mask/new_mask: (B, S) float."""
    emb_table = params["embedding"]                  # (V, D) f32, row 0 zeros
    B, S = word_set.shape
    D = emb_table.shape[1]
    n_rows = 2 * B * S

    # Stack old/new word ids → one scorer pass over (2B*S, D).
    ids = jnp.concatenate([word_set, new_word_set], axis=0).reshape(-1)
    ids = ids.astype(jnp.int32)

    # Block-diagonal mask matrix (2B, 2B*S): row b has mask[b, s] at column
    # b*S + s and zeros elsewhere.  Built once in the wrapper (layout plumbing),
    # consumed by a single MXU matmul in the kernel.
    row_b = jnp.arange(2 * B, dtype=jnp.int32)[:, None]
    col_b = jnp.arange(n_rows, dtype=jnp.int32)[None, :] // S
    mask_flat = jnp.concatenate([mask, new_mask], axis=0).reshape(1, -1)
    mask_flat = mask_flat.astype(jnp.float32)
    mask_mat = jnp.where(row_b == col_b, mask_flat, 0.0).astype(jnp.bfloat16)

    vmem = pl.BlockSpec(memory_space=pltpu.MemorySpace.VMEM)
    out = pl.pallas_call(
        _classifier_kernel,
        out_shape=jax.ShapeDtypeStruct((B, 1), jnp.float32),
        in_specs=[pl.BlockSpec(memory_space=pltpu.MemorySpace.SMEM),  # word ids
                  pl.BlockSpec(memory_space=pl.ANY)]                  # emb table (HBM)
                 + [vmem] * 10,                                       # mask_mat + weights
        out_specs=vmem,
        scratch_shapes=[pltpu.VMEM((n_rows, D), jnp.float32),         # gathered rows
                        pltpu.SemaphoreType.DMA((n_rows,))],
    )(ids, emb_table, mask_mat,
      params["w1"], params["w2"], params["b2"],
      params["w3"], params["b3"],
      params["w4"], params["b4"],
      params["w5"], params["b5"])
    return out[:, 0]                                              # (B,)


def init_params(key, vocab_size, emb_dim, embed_trans_hidden, post_trans_hidden):
    """PyTorch-style init. Linear weights stored (in, out); matmul weights in bf16."""
    keys = jax.random.split(key, 12)

    def linear_w(k, fan_in, fan_out):
        bound = 1.0 / jnp.sqrt(jnp.float32(fan_in))
        return jax.random.uniform(k, (fan_in, fan_out), jnp.float32, -bound, bound)

    def linear_b(k, fan_in, fan_out):
        bound = 1.0 / jnp.sqrt(jnp.float32(fan_in))
        return jax.random.uniform(k, (1, fan_out), jnp.float32, -bound, bound)

    # nn.Embedding: N(0, 1), padding_idx=0 row zeroed.
    emb = jax.random.normal(keys[0], (vocab_size, emb_dim), jnp.float32)
    emb = emb.at[0].set(0.0)

    h_half = post_trans_hidden // 2
    return {
        "embedding": emb,                                                # f32 HBM table
        "w1": linear_w(keys[1], emb_dim, emb_dim).astype(jnp.bfloat16),
        "w2": linear_w(keys[2], emb_dim, embed_trans_hidden).astype(jnp.bfloat16),
        "b2": linear_b(keys[3], emb_dim, embed_trans_hidden),
        "w3": linear_w(keys[4], embed_trans_hidden, post_trans_hidden).astype(jnp.bfloat16),
        "b3": linear_b(keys[5], embed_trans_hidden, post_trans_hidden),
        "w4": linear_w(keys[6], post_trans_hidden, h_half).astype(jnp.bfloat16),
        "b4": linear_b(keys[7], post_trans_hidden, h_half),
        "w5": linear_w(keys[8], h_half, 1).reshape(1, h_half),           # row for VPU mul
        "b5": linear_b(keys[9], h_half, 1),                              # (1, 1)
    }


if __name__ == "__main__":
    # Small shapes consistent with the module's forward.
    B, S = 2, 8                 # batch_size, max_word_set_size
    VOCAB, D = 32, 32           # vocab size, embedding dim
    H1, H2 = 32, 16             # embed_trans_hidden_size, post_trans_hidden_size

    key = jax.random.PRNGKey(0)
    k_param, k_old, k_new = jax.random.split(key, 3)
    params = init_params(k_param, VOCAB, D, H1, H2)

    # Word-set ids with trailing padding (id 0) and the matching masks.
    word_set = jax.random.randint(k_old, (B, S), 1, VOCAB, dtype=jnp.int32)
    new_word_set = jax.random.randint(k_new, (B, S), 1, VOCAB, dtype=jnp.int32)
    mask = jnp.ones((B, S), jnp.float32).at[:, 6:].set(0.0)
    new_mask = jnp.ones((B, S), jnp.float32).at[:, 7:].set(0.0)
    word_set = word_set * mask.astype(jnp.int32)
    new_word_set = new_word_set * new_mask.astype(jnp.int32)

    ans = setinstance_classifier(word_set, mask, new_word_set, new_mask, params)
    jax.block_until_ready(ans)
    assert ans.shape == (B,) and bool(jnp.all(jnp.isfinite(ans)))
    print("KERNEL_OK")
</pallas_src>

<mosaic_0001>
module attributes {stable_mosaic.version = 11 : i64} {
  func.func @_classifier_kernel(%arg0: memref<32xi32, #tpu.memory_space<smem>>, %arg1: memref<32x32xf32, #tpu.memory_space<any>>, %arg2: memref<4x32xbf16, #tpu.memory_space<vmem>>, %arg3: memref<32x32xbf16, #tpu.memory_space<vmem>>, %arg4: memref<32x32xbf16, #tpu.memory_space<vmem>>, %arg5: memref<1x32xf32, #tpu.memory_space<vmem>>, %arg6: memref<32x16xbf16, #tpu.memory_space<vmem>>, %arg7: memref<1x16xf32, #tpu.memory_space<vmem>>, %arg8: memref<16x8xbf16, #tpu.memory_space<vmem>>, %arg9: memref<1x8xf32, #tpu.memory_space<vmem>>, %arg10: memref<1x8xf32, #tpu.memory_space<vmem>>, %arg11: memref<1x1xf32, #tpu.memory_space<vmem>>, %arg12: memref<2x1xf32, #tpu.memory_space<vmem>>, %arg13: memref<32x32xf32, #tpu.memory_space<vmem>>, %arg14: memref<32x!tpu.dma_semaphore, #tpu.memory_space<semaphore_mem>>) attributes {dimension_semantics = [], scalar_prefetch = 0 : i64, scratch_operands = 2 : i64, tpu.core_type = #tpu.core_type<tc>} {
    %c0 = arith.constant 0 : index
    %0 = memref.load %arg0[%c0] : memref<32xi32, #tpu.memory_space<smem>>
    %c0_i32 = arith.constant 0 : i32
    %c0_i32_0 = arith.constant 0 : i32
    %c0_i32_1 = arith.constant 0 : i32
    %1 = tpu.memref_slice %arg1[%0, %c0_i32_1] : memref<32x32xf32, #tpu.memory_space<any>> -> memref<1x32xf32, #tpu.memory_space<any>>
    %2 = tpu.memref_squeeze %1 : memref<1x32xf32, #tpu.memory_space<any>> -> memref<32xf32, #tpu.memory_space<any>>
    %c0_i32_2 = arith.constant 0 : i32
    %3 = tpu.memref_slice %arg13[%c0_i32, %c0_i32_2] : memref<32x32xf32, #tpu.memory_space<vmem>> -> memref<1x32xf32, #tpu.memory_space<vmem>>
    %4 = tpu.memref_squeeze %3 : memref<1x32xf32, #tpu.memory_space<vmem>> -> memref<32xf32, #tpu.memory_space<vmem>>
    %5 = tpu.memref_slice %arg14[%c0_i32_0] : memref<32x!tpu.dma_semaphore, #tpu.memory_space<semaphore_mem>> -> memref<1x!tpu.dma_semaphore, #tpu.memory_space<semaphore_mem>>
    %6 = tpu.memref_squeeze %5 : memref<1x!tpu.dma_semaphore, #tpu.memory_space<semaphore_mem>> -> memref<!tpu.dma_semaphore, #tpu.memory_space<semaphore_mem>>
    tpu.enqueue_dma source(%2 : memref<32xf32, #tpu.memory_space<any>>) target(%4 : memref<32xf32, #tpu.memory_space<vmem>>) target_semaphore(%6 : memref<!tpu.dma_semaphore, #tpu.memory_space<semaphore_mem>>)
    %c1 = arith.constant 1 : index
    %7 = memref.load %arg0[%c1] : memref<32xi32, #tpu.memory_space<smem>>
    %c1_i32 = arith.constant 1 : i32
    %c1_i32_3 = arith.constant 1 : i32
    %c0_i32_4 = arith.constant 0 : i32
    %8 = tpu.memref_slice %arg1[%7, %c0_i32_4] : memref<32x32xf32, #tpu.memory_space<any>> -> memref<1x32xf32, #tpu.memory_space<any>>
    %9 = tpu.memref_squeeze %8 : memref<1x32xf32, #tpu.memory_space<any>> -> memref<32xf32, #tpu.memory_space<any>>
    %c0_i32_5 = arith.constant 0 : i32
    %10 = tpu.memref_slice %arg13[%c1_i32, %c0_i32_5] : memref<32x32xf32, #tpu.memory_space<vmem>> -> memref<1x32xf32, #tpu.memory_space<vmem>>
    %11 = tpu.memref_squeeze %10 : memref<1x32xf32, #tpu.memory_space<vmem>> -> memref<32xf32, #tpu.memory_space<vmem>>
    %12 = tpu.memref_slice %arg14[%c1_i32_3] : memref<32x!tpu.dma_semaphore, #tpu.memory_space<semaphore_mem>> -> memref<1x!tpu.dma_semaphore, #tpu.memory_space<semaphore_mem>>
    %13 = tpu.memref_squeeze %12 : memref<1x!tpu.dma_semaphore, #tpu.memory_space<semaphore_mem>> -> memref<!tpu.dma_semaphore, #tpu.memory_space<semaphore_mem>>
    tpu.enqueue_dma source(%9 : memref<32xf32, #tpu.memory_space<any>>) target(%11 : memref<32xf32, #tpu.memory_space<vmem>>) target_semaphore(%13 : memref<!tpu.dma_semaphore, #tpu.memory_space<semaphore_mem>>)
    %c2 = arith.constant 2 : index
    %14 = memref.load %arg0[%c2] : memref<32xi32, #tpu.memory_space<smem>>
    %c2_i32 = arith.constant 2 : i32
    %c2_i32_6 = arith.constant 2 : i32
    %c0_i32_7 = arith.constant 0 : i32
    %15 = tpu.memref_slice %arg1[%14, %c0_i32_7] : memref<32x32xf32, #tpu.memory_space<any>> -> memref<1x32xf32, #tpu.memory_space<any>>
    %16 = tpu.memref_squeeze %15 : memref<1x32xf32, #tpu.memory_space<any>> -> memref<32xf32, #tpu.memory_space<any>>
    %c0_i32_8 = arith.constant 0 : i32
    %17 = tpu.memref_slice %arg13[%c2_i32, %c0_i32_8] : memref<32x32xf32, #tpu.memory_space<vmem>> -> memref<1x32xf32, #tpu.memory_space<vmem>>
    %18 = tpu.memref_squeeze %17 : memref<1x32xf32, #tpu.memory_space<vmem>> -> memref<32xf32, #tpu.memory_space<vmem>>
    %19 = tpu.memref_slice %arg14[%c2_i32_6] : memref<32x!tpu.dma_semaphore, #tpu.memory_space<semaphore_mem>> -> memref<1x!tpu.dma_semaphore, #tpu.memory_space<semaphore_mem>>
    %20 = tpu.memref_squeeze %19 : memref<1x!tpu.dma_semaphore, #tpu.memory_space<semaphore_mem>> -> memref<!tpu.dma_semaphore, #tpu.memory_space<semaphore_mem>>
    tpu.enqueue_dma source(%16 : memref<32xf32, #tpu.memory_space<any>>) target(%18 : memref<32xf32, #tpu.memory_space<vmem>>) target_semaphore(%20 : memref<!tpu.dma_semaphore, #tpu.memory_space<semaphore_mem>>)
    %c3 = arith.constant 3 : index
    %21 = memref.load %arg0[%c3] : memref<32xi32, #tpu.memory_space<smem>>
    %c3_i32 = arith.constant 3 : i32
    %c3_i32_9 = arith.constant 3 : i32
    %c0_i32_10 = arith.constant 0 : i32
    %22 = tpu.memref_slice %arg1[%21, %c0_i32_10] : memref<32x32xf32, #tpu.memory_space<any>> -> memref<1x32xf32, #tpu.memory_space<any>>
    %23 = tpu.memref_squeeze %22 : memref<1x32xf32, #tpu.memory_space<any>> -> memref<32xf32, #tpu.memory_space<any>>
    %c0_i32_11 = arith.constant 0 : i32
    %24 = tpu.memref_slice %arg13[%c3_i32, %c0_i32_11] : memref<32x32xf32, #tpu.memory_space<vmem>> -> memref<1x32xf32, #tpu.memory_space<vmem>>
    %25 = tpu.memref_squeeze %24 : memref<1x32xf32, #tpu.memory_space<vmem>> -> memref<32xf32, #tpu.memory_space<vmem>>
    %26 = tpu.memref_slice %arg14[%c3_i32_9] : memref<32x!tpu.dma_semaphore, #tpu.memory_space<semaphore_mem>> -> memref<1x!tpu.dma_semaphore, #tpu.memory_space<semaphore_mem>>
    %27 = tpu.memref_squeeze %26 : memref<1x!tpu.dma_semaphore, #tpu.memory_space<semaphore_mem>> -> memref<!tpu.dma_semaphore, #tpu.memory_space<semaphore_mem>>
    tpu.enqueue_dma source(%23 : memref<32xf32, #tpu.memory_space<any>>) target(%25 : memref<32xf32, #tpu.memory_space<vmem>>) target_semaphore(%27 : memref<!tpu.dma_semaphore, #tpu.memory_space<semaphore_mem>>)
    %c4 = arith.constant 4 : index
    %28 = memref.load %arg0[%c4] : memref<32xi32, #tpu.memory_space<smem>>
    %c4_i32 = arith.constant 4 : i32
    %c4_i32_12 = arith.constant 4 : i32
    %c0_i32_13 = arith.constant 0 : i32
    %29 = tpu.memref_slice %arg1[%28, %c0_i32_13] : memref<32x32xf32, #tpu.memory_space<any>> -> memref<1x32xf32, #tpu.memory_space<any>>
    %30 = tpu.memref_squeeze %29 : memref<1x32xf32, #tpu.memory_space<any>> -> memref<32xf32, #tpu.memory_space<any>>
    %c0_i32_14 = arith.constant 0 : i32
    %31 = tpu.memref_slice %arg13[%c4_i32, %c0_i32_14] : memref<32x32xf32, #tpu.memory_space<vmem>> -> memref<1x32xf32, #tpu.memory_space<vmem>>
    %32 = tpu.memref_squeeze %31 : memref<1x32xf32, #tpu.memory_space<vmem>> -> memref<32xf32, #tpu.memory_space<vmem>>
    %33 = tpu.memref_slice %arg14[%c4_i32_12] : memref<32x!tpu.dma_semaphore, #tpu.memory_space<semaphore_mem>> -> memref<1x!tpu.dma_semaphore, #tpu.memory_space<semaphore_mem>>
    %34 = tpu.memref_squeeze %33 : memref<1x!tpu.dma_semaphore, #tpu.memory_space<semaphore_mem>> -> memref<!tpu.dma_semaphore, #tpu.memory_space<semaphore_mem>>
    tpu.enqueue_dma source(%30 : memref<32xf32, #tpu.memory_space<any>>) target(%32 : memref<32xf32, #tpu.memory_space<vmem>>) target_semaphore(%34 : memref<!tpu.dma_semaphore, #tpu.memory_space<semaphore_mem>>)
    %c5 = arith.constant 5 : index
    %35 = memref.load %arg0[%c5] : memref<32xi32, #tpu.memory_space<smem>>
    %c5_i32 = arith.constant 5 : i32
    %c5_i32_15 = arith.constant 5 : i32
    %c0_i32_16 = arith.constant 0 : i32
    %36 = tpu.memref_slice %arg1[%35, %c0_i32_16] : memref<32x32xf32, #tpu.memory_space<any>> -> memref<1x32xf32, #tpu.memory_space<any>>
    %37 = tpu.memref_squeeze %36 : memref<1x32xf32, #tpu.memory_space<any>> -> memref<32xf32, #tpu.memory_space<any>>
    %c0_i32_17 = arith.constant 0 : i32
    %38 = tpu.memref_slice %arg13[%c5_i32, %c0_i32_17] : memref<32x32xf32, #tpu.memory_space<vmem>> -> memref<1x32xf32, #tpu.memory_space<vmem>>
    %39 = tpu.memref_squeeze %38 : memref<1x32xf32, #tpu.memory_space<vmem>> -> memref<32xf32, #tpu.memory_space<vmem>>
    %40 = tpu.memref_slice %arg14[%c5_i32_15] : memref<32x!tpu.dma_semaphore, #tpu.memory_space<semaphore_mem>> -> memref<1x!tpu.dma_semaphore, #tpu.memory_space<semaphore_mem>>
    %41 = tpu.memref_squeeze %40 : memref<1x!tpu.dma_semaphore, #tpu.memory_space<semaphore_mem>> -> memref<!tpu.dma_semaphore, #tpu.memory_space<semaphore_mem>>
    tpu.enqueue_dma source(%37 : memref<32xf32, #tpu.memory_space<any>>) target(%39 : memref<32xf32, #tpu.memory_space<vmem>>) target_semaphore(%41 : memref<!tpu.dma_semaphore, #tpu.memory_space<semaphore_mem>>)
    %c6 = arith.constant 6 : index
    %42 = memref.load %arg0[%c6] : memref<32xi32, #tpu.memory_space<smem>>
    %c6_i32 = arith.constant 6 : i32
    %c6_i32_18 = arith.constant 6 : i32
    %c0_i32_19 = arith.constant 0 : i32
    %43 = tpu.memref_slice %arg1[%42, %c0_i32_19] : memref<32x32xf32, #tpu.memory_space<any>> -> memref<1x32xf32, #tpu.memory_space<any>>
    %44 = tpu.memref_squeeze %43 : memref<1x32xf32, #tpu.memory_space<any>> -> memref<32xf32, #tpu.memory_space<any>>
    %c0_i32_20 = arith.constant 0 : i32
    %45 = tpu.memref_slice %arg13[%c6_i32, %c0_i32_20] : memref<32x32xf32, #tpu.memory_space<vmem>> -> memref<1x32xf32, #tpu.memory_space<vmem>>
    %46 = tpu.memref_squeeze %45 : memref<1x32xf32, #tpu.memory_space<vmem>> -> memref<32xf32, #tpu.memory_space<vmem>>
    %47 = tpu.memref_slice %arg14[%c6_i32_18] : memref<32x!tpu.dma_semaphore, #tpu.memory_space<semaphore_mem>> -> memref<1x!tpu.dma_semaphore, #tpu.memory_space<semaphore_mem>>
    %48 = tpu.memref_squeeze %47 : memref<1x!tpu.dma_semaphore, #tpu.memory_space<semaphore_mem>> -> memref<!tpu.dma_semaphore, #tpu.memory_space<semaphore_mem>>
    tpu.enqueue_dma source(%44 : memref<32xf32, #tpu.memory_space<any>>) target(%46 : memref<32xf32, #tpu.memory_space<vmem>>) target_semaphore(%48 : memref<!tpu.dma_semaphore, #tpu.memory_space<semaphore_mem>>)
    %c7 = arith.constant 7 : index
    %49 = memref.load %arg0[%c7] : memref<32xi32, #tpu.memory_space<smem>>
    %c7_i32 = arith.constant 7 : i32
    %c7_i32_21 = arith.constant 7 : i32
    %c0_i32_22 = arith.constant 0 : i32
    %50 = tpu.memref_slice %arg1[%49, %c0_i32_22] : memref<32x32xf32, #tpu.memory_space<any>> -> memref<1x32xf32, #tpu.memory_space<any>>
    %51 = tpu.memref_squeeze %50 : memref<1x32xf32, #tpu.memory_space<any>> -> memref<32xf32, #tpu.memory_space<any>>
    %c0_i32_23 = arith.constant 0 : i32
    %52 = tpu.memref_slice %arg13[%c7_i32, %c0_i32_23] : memref<32x32xf32, #tpu.memory_space<vmem>> -> memref<1x32xf32, #tpu.memory_space<vmem>>
    %53 = tpu.memref_squeeze %52 : memref<1x32xf32, #tpu.memory_space<vmem>> -> memref<32xf32, #tpu.memory_space<vmem>>
    %54 = tpu.memref_slice %arg14[%c7_i32_21] : memref<32x!tpu.dma_semaphore, #tpu.memory_space<semaphore_mem>> -> memref<1x!tpu.dma_semaphore, #tpu.memory_space<semaphore_mem>>
    %55 = tpu.memref_squeeze %54 : memref<1x!tpu.dma_semaphore, #tpu.memory_space<semaphore_mem>> -> memref<!tpu.dma_semaphore, #tpu.memory_space<semaphore_mem>>
    tpu.enqueue_dma source(%51 : memref<32xf32, #tpu.memory_space<any>>) target(%53 : memref<32xf32, #tpu.memory_space<vmem>>) target_semaphore(%55 : memref<!tpu.dma_semaphore, #tpu.memory_space<semaphore_mem>>)
    %c8 = arith.constant 8 : index
    %56 = memref.load %arg0[%c8] : memref<32xi32, #tpu.memory_space<smem>>
    %c8_i32 = arith.constant 8 : i32
    %c8_i32_24 = arith.constant 8 : i32
    %c0_i32_25 = arith.constant 0 : i32
    %57 = tpu.memref_slice %arg1[%56, %c0_i32_25] : memref<32x32xf32, #tpu.memory_space<any>> -> memref<1x32xf32, #tpu.memory_space<any>>
    %58 = tpu.memref_squeeze %57 : memref<1x32xf32, #tpu.memory_space<any>> -> memref<32xf32, #tpu.memory_space<any>>
    %c0_i32_26 = arith.constant 0 : i32
    %59 = tpu.memref_slice %arg13[%c8_i32, %c0_i32_26] : memref<32x32xf32, #tpu.memory_space<vmem>> -> memref<1x32xf32, #tpu.memory_space<vmem>>
    %60 = tpu.memref_squeeze %59 : memref<1x32xf32, #tpu.memory_space<vmem>> -> memref<32xf32, #tpu.memory_space<vmem>>
    %61 = tpu.memref_slice %arg14[%c8_i32_24] : memref<32x!tpu.dma_semaphore, #tpu.memory_space<semaphore_mem>> -> memref<1x!tpu.dma_semaphore, #tpu.memory_space<semaphore_mem>>
    %62 = tpu.memref_squeeze %61 : memref<1x!tpu.dma_semaphore, #tpu.memory_space<semaphore_mem>> -> memref<!tpu.dma_semaphore, #tpu.memory_space<semaphore_mem>>
    tpu.enqueue_dma source(%58 : memref<32xf32, #tpu.memory_space<any>>) target(%60 : memref<32xf32, #tpu.memory_space<vmem>>) target_semaphore(%62 : memref<!tpu.dma_semaphore, #tpu.memory_space<semaphore_mem>>)
    %c9 = arith.constant 9 : index
    %63 = memref.load %arg0[%c9] : memref<32xi32, #tpu.memory_space<smem>>
    %c9_i32 = arith.constant 9 : i32
    %c9_i32_27 = arith.constant 9 : i32
    %c0_i32_28 = arith.constant 0 : i32
    %64 = tpu.memref_slice %arg1[%63, %c0_i32_28] : memref<32x32xf32, #tpu.memory_space<any>> -> memref<1x32xf32, #tpu.memory_space<any>>
    %65 = tpu.memref_squeeze %64 : memref<1x32xf32, #tpu.memory_space<any>> -> memref<32xf32, #tpu.memory_space<any>>
    %c0_i32_29 = arith.constant 0 : i32
    %66 = tpu.memref_slice %arg13[%c9_i32, %c0_i32_29] : memref<32x32xf32, #tpu.memory_space<vmem>> -> memref<1x32xf32, #tpu.memory_space<vmem>>
    %67 = tpu.memref_squeeze %66 : memref<1x32xf32, #tpu.memory_space<vmem>> -> memref<32xf32, #tpu.memory_space<vmem>>
    %68 = tpu.memref_slice %arg14[%c9_i32_27] : memref<32x!tpu.dma_semaphore, #tpu.memory_space<semaphore_mem>> -> memref<1x!tpu.dma_semaphore, #tpu.memory_space<semaphore_mem>>
    %69 = tpu.memref_squeeze %68 : memref<1x!tpu.dma_semaphore, #tpu.memory_space<semaphore_mem>> -> memref<!tpu.dma_semaphore, #tpu.memory_space<semaphore_mem>>
    tpu.enqueue_dma source(%65 : memref<32xf32, #tpu.memory_space<any>>) target(%67 : memref<32xf32, #tpu.memory_space<vmem>>) target_semaphore(%69 : memref<!tpu.dma_semaphore, #tpu.memory_space<semaphore_mem>>)
    %c10 = arith.constant 10 : index
    %70 = memref.load %arg0[%c10] : memref<32xi32, #tpu.memory_space<smem>>
    %c10_i32 = arith.constant 10 : i32
    %c10_i32_30 = arith.constant 10 : i32
    %c0_i32_31 = arith.constant 0 : i32
    %71 = tpu.memref_slice %arg1[%70, %c0_i32_31] : memref<32x32xf32, #tpu.memory_space<any>> -> memref<1x32xf32, #tpu.memory_space<any>>
    %72 = tpu.memref_squeeze %71 : memref<1x32xf32, #tpu.memory_space<any>> -> memref<32xf32, #tpu.memory_space<any>>
    %c0_i32_32 = arith.constant 0 : i32
    %73 = tpu.memref_slice %arg13[%c10_i32, %c0_i32_32] : memref<32x32xf32, #tpu.memory_space<vmem>> -> memref<1x32xf32, #tpu.memory_space<vmem>>
    %74 = tpu.memref_squeeze %73 : memref<1x32xf32, #tpu.memory_space<vmem>> -> memref<32xf32, #tpu.memory_space<vmem>>
    %75 = tpu.memref_slice %arg14[%c10_i32_30] : memref<32x!tpu.dma_semaphore, #tpu.memory_space<semaphore_mem>> -> memref<1x!tpu.dma_semaphore, #tpu.memory_space<semaphore_mem>>
    %76 = tpu.memref_squeeze %75 : memref<1x!tpu.dma_semaphore, #tpu.memory_space<semaphore_mem>> -> memref<!tpu.dma_semaphore, #tpu.memory_space<semaphore_mem>>
    tpu.enqueue_dma source(%72 : memref<32xf32, #tpu.memory_space<any>>) target(%74 : memref<32xf32, #tpu.memory_space<vmem>>) target_semaphore(%76 : memref<!tpu.dma_semaphore, #tpu.memory_space<semaphore_mem>>)
    %c11 = arith.constant 11 : index
    %77 = memref.load %arg0[%c11] : memref<32xi32, #tpu.memory_space<smem>>
    %c11_i32 = arith.constant 11 : i32
    %c11_i32_33 = arith.constant 11 : i32
    %c0_i32_34 = arith.constant 0 : i32
    %78 = tpu.memref_slice %arg1[%77, %c0_i32_34] : memref<32x32xf32, #tpu.memory_space<any>> -> memref<1x32xf32, #tpu.memory_space<any>>
    %79 = tpu.memref_squeeze %78 : memref<1x32xf32, #tpu.memory_space<any>> -> memref<32xf32, #tpu.memory_space<any>>
    %c0_i32_35 = arith.constant 0 : i32
    %80 = tpu.memref_slice %arg13[%c11_i32, %c0_i32_35] : memref<32x32xf32, #tpu.memory_space<vmem>> -> memref<1x32xf32, #tpu.memory_space<vmem>>
    %81 = tpu.memref_squeeze %80 : memref<1x32xf32, #tpu.memory_space<vmem>> -> memref<32xf32, #tpu.memory_space<vmem>>
    %82 = tpu.memref_slice %arg14[%c11_i32_33] : memref<32x!tpu.dma_semaphore, #tpu.memory_space<semaphore_mem>> -> memref<1x!tpu.dma_semaphore, #tpu.memory_space<semaphore_mem>>
    %83 = tpu.memref_squeeze %82 : memref<1x!tpu.dma_semaphore, #tpu.memory_space<semaphore_mem>> -> memref<!tpu.dma_semaphore, #tpu.memory_space<semaphore_mem>>
    tpu.enqueue_dma source(%79 : memref<32xf32, #tpu.memory_space<any>>) target(%81 : memref<32xf32, #tpu.memory_space<vmem>>) target_semaphore(%83 : memref<!tpu.dma_semaphore, #tpu.memory_space<semaphore_mem>>)
    %c12 = arith.constant 12 : index
    %84 = memref.load %arg0[%c12] : memref<32xi32, #tpu.memory_space<smem>>
    %c12_i32 = arith.constant 12 : i32
    %c12_i32_36 = arith.constant 12 : i32
    %c0_i32_37 = arith.constant 0 : i32
    %85 = tpu.memref_slice %arg1[%84, %c0_i32_37] : memref<32x32xf32, #tpu.memory_space<any>> -> memref<1x32xf32, #tpu.memory_space<any>>
    %86 = tpu.memref_squeeze %85 : memref<1x32xf32, #tpu.memory_space<any>> -> memref<32xf32, #tpu.memory_space<any>>
    %c0_i32_38 = arith.constant 0 : i32
    %87 = tpu.memref_slice %arg13[%c12_i32, %c0_i32_38] : memref<32x32xf32, #tpu.memory_space<vmem>> -> memref<1x32xf32, #tpu.memory_space<vmem>>
    %88 = tpu.memref_squeeze %87 : memref<1x32xf32, #tpu.memory_space<vmem>> -> memref<32xf32, #tpu.memory_space<vmem>>
    %89 = tpu.memref_slice %arg14[%c12_i32_36] : memref<32x!tpu.dma_semaphore, #tpu.memory_space<semaphore_mem>> -> memref<1x!tpu.dma_semaphore, #tpu.memory_space<semaphore_mem>>
    %90 = tpu.memref_squeeze %89 : memref<1x!tpu.dma_semaphore, #tpu.memory_space<semaphore_mem>> -> memref<!tpu.dma_semaphore, #tpu.memory_space<semaphore_mem>>
    tpu.enqueue_dma source(%86 : memref<32xf32, #tpu.memory_space<any>>) target(%88 : memref<32xf32, #tpu.memory_space<vmem>>) target_semaphore(%90 : memref<!tpu.dma_semaphore, #tpu.memory_space<semaphore_mem>>)
    %c13 = arith.constant 13 : index
    %91 = memref.load %arg0[%c13] : memref<32xi32, #tpu.memory_space<smem>>
    %c13_i32 = arith.constant 13 : i32
    %c13_i32_39 = arith.constant 13 : i32
    %c0_i32_40 = arith.constant 0 : i32
    %92 = tpu.memref_slice %arg1[%91, %c0_i32_40] : memref<32x32xf32, #tpu.memory_space<any>> -> memref<1x32xf32, #tpu.memory_space<any>>
    %93 = tpu.memref_squeeze %92 : memref<1x32xf32, #tpu.memory_space<any>> -> memref<32xf32, #tpu.memory_space<any>>
    %c0_i32_41 = arith.constant 0 : i32
    %94 = tpu.memref_slice %arg13[%c13_i32, %c0_i32_41] : memref<32x32xf32, #tpu.memory_space<vmem>> -> memref<1x32xf32, #tpu.memory_space<vmem>>
    %95 = tpu.memref_squeeze %94 : memref<1x32xf32, #tpu.memory_space<vmem>> -> memref<32xf32, #tpu.memory_space<vmem>>
    %96 = tpu.memref_slice %arg14[%c13_i32_39] : memref<32x!tpu.dma_semaphore, #tpu.memory_space<semaphore_mem>> -> memref<1x!tpu.dma_semaphore, #tpu.memory_space<semaphore_mem>>
    %97 = tpu.memref_squeeze %96 : memref<1x!tpu.dma_semaphore, #tpu.memory_space<semaphore_mem>> -> memref<!tpu.dma_semaphore, #tpu.memory_space<semaphore_mem>>
    tpu.enqueue_dma source(%93 : memref<32xf32, #tpu.memory_space<any>>) target(%95 : memref<32xf32, #tpu.memory_space<vmem>>) target_semaphore(%97 : memref<!tpu.dma_semaphore, #tpu.memory_space<semaphore_mem>>)
    %c14 = arith.constant 14 : index
    %98 = memref.load %arg0[%c14] : memref<32xi32, #tpu.memory_space<smem>>
    %c14_i32 = arith.constant 14 : i32
    %c14_i32_42 = arith.constant 14 : i32
    %c0_i32_43 = arith.constant 0 : i32
    %99 = tpu.memref_slice %arg1[%98, %c0_i32_43] : memref<32x32xf32, #tpu.memory_space<any>> -> memref<1x32xf32, #tpu.memory_space<any>>
    %100 = tpu.memref_squeeze %99 : memref<1x32xf32, #tpu.memory_space<any>> -> memref<32xf32, #tpu.memory_space<any>>
    %c0_i32_44 = arith.constant 0 : i32
    %101 = tpu.memref_slice %arg13[%c14_i32, %c0_i32_44] : memref<32x32xf32, #tpu.memory_space<vmem>> -> memref<1x32xf32, #tpu.memory_space<vmem>>
    %102 = tpu.memref_squeeze %101 : memref<1x32xf32, #tpu.memory_space<vmem>> -> memref<32xf32, #tpu.memory_space<vmem>>
    %103 = tpu.memref_slice %arg14[%c14_i32_42] : memref<32x!tpu.dma_semaphore, #tpu.memory_space<semaphore_mem>> -> memref<1x!tpu.dma_semaphore, #tpu.memory_space<semaphore_mem>>
    %104 = tpu.memref_squeeze %103 : memref<1x!tpu.dma_semaphore, #tpu.memory_space<semaphore_mem>> -> memref<!tpu.dma_semaphore, #tpu.memory_space<semaphore_mem>>
    tpu.enqueue_dma source(%100 : memref<32xf32, #tpu.memory_space<any>>) target(%102 : memref<32xf32, #tpu.memory_space<vmem>>) target_semaphore(%104 : memref<!tpu.dma_semaphore, #tpu.memory_space<semaphore_mem>>)
    %c15 = arith.constant 15 : index
    %105 = memref.load %arg0[%c15] : memref<32xi32, #tpu.memory_space<smem>>
    %c15_i32 = arith.constant 15 : i32
    %c15_i32_45 = arith.constant 15 : i32
    %c0_i32_46 = arith.constant 0 : i32
    %106 = tpu.memref_slice %arg1[%105, %c0_i32_46] : memref<32x32xf32, #tpu.memory_space<any>> -> memref<1x32xf32, #tpu.memory_space<any>>
    %107 = tpu.memref_squeeze %106 : memref<1x32xf32, #tpu.memory_space<any>> -> memref<32xf32, #tpu.memory_space<any>>
    %c0_i32_47 = arith.constant 0 : i32
    %108 = tpu.memref_slice %arg13[%c15_i32, %c0_i32_47] : memref<32x32xf32, #tpu.memory_space<vmem>> -> memref<1x32xf32, #tpu.memory_space<vmem>>
    %109 = tpu.memref_squeeze %108 : memref<1x32xf32, #tpu.memory_space<vmem>> -> memref<32xf32, #tpu.memory_space<vmem>>
    %110 = tpu.memref_slice %arg14[%c15_i32_45] : memref<32x!tpu.dma_semaphore, #tpu.memory_space<semaphore_mem>> -> memref<1x!tpu.dma_semaphore, #tpu.memory_space<semaphore_mem>>
    %111 = tpu.memref_squeeze %110 : memref<1x!tpu.dma_semaphore, #tpu.memory_space<semaphore_mem>> -> memref<!tpu.dma_semaphore, #tpu.memory_space<semaphore_mem>>
    tpu.enqueue_dma source(%107 : memref<32xf32, #tpu.memory_space<any>>) target(%109 : memref<32xf32, #tpu.memory_space<vmem>>) target_semaphore(%111 : memref<!tpu.dma_semaphore, #tpu.memory_space<semaphore_mem>>)
    %c16 = arith.constant 16 : index
    %112 = memref.load %arg0[%c16] : memref<32xi32, #tpu.memory_space<smem>>
    %c16_i32 = arith.constant 16 : i32
    %c16_i32_48 = arith.constant 16 : i32
    %c0_i32_49 = arith.constant 0 : i32
    %113 = tpu.memref_slice %arg1[%112, %c0_i32_49] : memref<32x32xf32, #tpu.memory_space<any>> -> memref<1x32xf32, #tpu.memory_space<any>>
    %114 = tpu.memref_squeeze %113 : memref<1x32xf32, #tpu.memory_space<any>> -> memref<32xf32, #tpu.memory_space<any>>
    %c0_i32_50 = arith.constant 0 : i32
    %115 = tpu.memref_slice %arg13[%c16_i32, %c0_i32_50] : memref<32x32xf32, #tpu.memory_space<vmem>> -> memref<1x32xf32, #tpu.memory_space<vmem>>
    %116 = tpu.memref_squeeze %115 : memref<1x32xf32, #tpu.memory_space<vmem>> -> memref<32xf32, #tpu.memory_space<vmem>>
    %117 = tpu.memref_slice %arg14[%c16_i32_48] : memref<32x!tpu.dma_semaphore, #tpu.memory_space<semaphore_mem>> -> memref<1x!tpu.dma_semaphore, #tpu.memory_space<semaphore_mem>>
    %118 = tpu.memref_squeeze %117 : memref<1x!tpu.dma_semaphore, #tpu.memory_space<semaphore_mem>> -> memref<!tpu.dma_semaphore, #tpu.memory_space<semaphore_mem>>
    tpu.enqueue_dma source(%114 : memref<32xf32, #tpu.memory_space<any>>) target(%116 : memref<32xf32, #tpu.memory_space<vmem>>) target_semaphore(%118 : memref<!tpu.dma_semaphore, #tpu.memory_space<semaphore_mem>>)
    %c17 = arith.constant 17 : index
    %119 = memref.load %arg0[%c17] : memref<32xi32, #tpu.memory_space<smem>>
    %c17_i32 = arith.constant 17 : i32
    %c17_i32_51 = arith.constant 17 : i32
    %c0_i32_52 = arith.constant 0 : i32
    %120 = tpu.memref_slice %arg1[%119, %c0_i32_52] : memref<32x32xf32, #tpu.memory_space<any>> -> memref<1x32xf32, #tpu.memory_space<any>>
    %121 = tpu.memref_squeeze %120 : memref<1x32xf32, #tpu.memory_space<any>> -> memref<32xf32, #tpu.memory_space<any>>
    %c0_i32_53 = arith.constant 0 : i32
    %122 = tpu.memref_slice %arg13[%c17_i32, %c0_i32_53] : memref<32x32xf32, #tpu.memory_space<vmem>> -> memref<1x32xf32, #tpu.memory_space<vmem>>
    %123 = tpu.memref_squeeze %122 : memref<1x32xf32, #tpu.memory_space<vmem>> -> memref<32xf32, #tpu.memory_space<vmem>>
    %124 = tpu.memref_slice %arg14[%c17_i32_51] : memref<32x!tpu.dma_semaphore, #tpu.memory_space<semaphore_mem>> -> memref<1x!tpu.dma_semaphore, #tpu.memory_space<semaphore_mem>>
    %125 = tpu.memref_squeeze %124 : memref<1x!tpu.dma_semaphore, #tpu.memory_space<semaphore_mem>> -> memref<!tpu.dma_semaphore, #tpu.memory_space<semaphore_mem>>
    tpu.enqueue_dma source(%121 : memref<32xf32, #tpu.memory_space<any>>) target(%123 : memref<32xf32, #tpu.memory_space<vmem>>) target_semaphore(%125 : memref<!tpu.dma_semaphore, #tpu.memory_space<semaphore_mem>>)
    %c18 = arith.constant 18 : index
    %126 = memref.load %arg0[%c18] : memref<32xi32, #tpu.memory_space<smem>>
    %c18_i32 = arith.constant 18 : i32
    %c18_i32_54 = arith.constant 18 : i32
    %c0_i32_55 = arith.constant 0 : i32
    %127 = tpu.memref_slice %arg1[%126, %c0_i32_55] : memref<32x32xf32, #tpu.memory_space<any>> -> memref<1x32xf32, #tpu.memory_space<any>>
    %128 = tpu.memref_squeeze %127 : memref<1x32xf32, #tpu.memory_space<any>> -> memref<32xf32, #tpu.memory_space<any>>
    %c0_i32_56 = arith.constant 0 : i32
    %129 = tpu.memref_slice %arg13[%c18_i32, %c0_i32_56] : memref<32x32xf32, #tpu.memory_space<vmem>> -> memref<1x32xf32, #tpu.memory_space<vmem>>
    %130 = tpu.memref_squeeze %129 : memref<1x32xf32, #tpu.memory_space<vmem>> -> memref<32xf32, #tpu.memory_space<vmem>>
    %131 = tpu.memref_slice %arg14[%c18_i32_54] : memref<32x!tpu.dma_semaphore, #tpu.memory_space<semaphore_mem>> -> memref<1x!tpu.dma_semaphore, #tpu.memory_space<semaphore_mem>>
    %132 = tpu.memref_squeeze %131 : memref<1x!tpu.dma_semaphore, #tpu.memory_space<semaphore_mem>> -> memref<!tpu.dma_semaphore, #tpu.memory_space<semaphore_mem>>
    tpu.enqueue_dma source(%128 : memref<32xf32, #tpu.memory_space<any>>) target(%130 : memref<32xf32, #tpu.memory_space<vmem>>) target_semaphore(%132 : memref<!tpu.dma_semaphore, #tpu.memory_space<semaphore_mem>>)
    %c19 = arith.constant 19 : index
    %133 = memref.load %arg0[%c19] : memref<32xi32, #tpu.memory_space<smem>>
    %c19_i32 = arith.constant 19 : i32
    %c19_i32_57 = arith.constant 19 : i32
    %c0_i32_58 = arith.constant 0 : i32
    %134 = tpu.memref_slice %arg1[%133, %c0_i32_58] : memref<32x32xf32, #tpu.memory_space<any>> -> memref<1x32xf32, #tpu.memory_space<any>>
    %135 = tpu.memref_squeeze %134 : memref<1x32xf32, #tpu.memory_space<any>> -> memref<32xf32, #tpu.memory_space<any>>
    %c0_i32_59 = arith.constant 0 : i32
    %136 = tpu.memref_slice %arg13[%c19_i32, %c0_i32_59] : memref<32x32xf32, #tpu.memory_space<vmem>> -> memref<1x32xf32, #tpu.memory_space<vmem>>
    %137 = tpu.memref_squeeze %136 : memref<1x32xf32, #tpu.memory_space<vmem>> -> memref<32xf32, #tpu.memory_space<vmem>>
    %138 = tpu.memref_slice %arg14[%c19_i32_57] : memref<32x!tpu.dma_semaphore, #tpu.memory_space<semaphore_mem>> -> memref<1x!tpu.dma_semaphore, #tpu.memory_space<semaphore_mem>>
    %139 = tpu.memref_squeeze %138 : memref<1x!tpu.dma_semaphore, #tpu.memory_space<semaphore_mem>> -> memref<!tpu.dma_semaphore, #tpu.memory_space<semaphore_mem>>
    tpu.enqueue_dma source(%135 : memref<32xf32, #tpu.memory_space<any>>) target(%137 : memref<32xf32, #tpu.memory_space<vmem>>) target_semaphore(%139 : memref<!tpu.dma_semaphore, #tpu.memory_space<semaphore_mem>>)
    %c20 = arith.constant 20 : index
    %140 = memref.load %arg0[%c20] : memref<32xi32, #tpu.memory_space<smem>>
    %c20_i32 = arith.constant 20 : i32
    %c20_i32_60 = arith.constant 20 : i32
    %c0_i32_61 = arith.constant 0 : i32
    %141 = tpu.memref_slice %arg1[%140, %c0_i32_61] : memref<32x32xf32, #tpu.memory_space<any>> -> memref<1x32xf32, #tpu.memory_space<any>>
    %142 = tpu.memref_squeeze %141 : memref<1x32xf32, #tpu.memory_space<any>> -> memref<32xf32, #tpu.memory_space<any>>
    %c0_i32_62 = arith.constant 0 : i32
    %143 = tpu.memref_slice %arg13[%c20_i32, %c0_i32_62] : memref<32x32xf32, #tpu.memory_space<vmem>> -> memref<1x32xf32, #tpu.memory_space<vmem>>
    %144 = tpu.memref_squeeze %143 : memref<1x32xf32, #tpu.memory_space<vmem>> -> memref<32xf32, #tpu.memory_space<vmem>>
    %145 = tpu.memref_slice %arg14[%c20_i32_60] : memref<32x!tpu.dma_semaphore, #tpu.memory_space<semaphore_mem>> -> memref<1x!tpu.dma_semaphore, #tpu.memory_space<semaphore_mem>>
    %146 = tpu.memref_squeeze %145 : memref<1x!tpu.dma_semaphore, #tpu.memory_space<semaphore_mem>> -> memref<!tpu.dma_semaphore, #tpu.memory_space<semaphore_mem>>
    tpu.enqueue_dma source(%142 : memref<32xf32, #tpu.memory_space<any>>) target(%144 : memref<32xf32, #tpu.memory_space<vmem>>) target_semaphore(%146 : memref<!tpu.dma_semaphore, #tpu.memory_space<semaphore_mem>>)
    %c21 = arith.constant 21 : index
    %147 = memref.load %arg0[%c21] : memref<32xi32, #tpu.memory_space<smem>>
    %c21_i32 = arith.constant 21 : i32
    %c21_i32_63 = arith.constant 21 : i32
    %c0_i32_64 = arith.constant 0 : i32
    %148 = tpu.memref_slice %arg1[%147, %c0_i32_64] : memref<32x32xf32, #tpu.memory_space<any>> -> memref<1x32xf32, #tpu.memory_space<any>>
    %149 = tpu.memref_squeeze %148 : memref<1x32xf32, #tpu.memory_space<any>> -> memref<32xf32, #tpu.memory_space<any>>
    %c0_i32_65 = arith.constant 0 : i32
    %150 = tpu.memref_slice %arg13[%c21_i32, %c0_i32_65] : memref<32x32xf32, #tpu.memory_space<vmem>> -> memref<1x32xf32, #tpu.memory_space<vmem>>
    %151 = tpu.memref_squeeze %150 : memref<1x32xf32, #tpu.memory_space<vmem>> -> memref<32xf32, #tpu.memory_space<vmem>>
    %152 = tpu.memref_slice %arg14[%c21_i32_63] : memref<32x!tpu.dma_semaphore, #tpu.memory_space<semaphore_mem>> -> memref<1x!tpu.dma_semaphore, #tpu.memory_space<semaphore_mem>>
    %153 = tpu.memref_squeeze %152 : memref<1x!tpu.dma_semaphore, #tpu.memory_space<semaphore_mem>> -> memref<!tpu.dma_semaphore, #tpu.memory_space<semaphore_mem>>
    tpu.enqueue_dma source(%149 : memref<32xf32, #tpu.memory_space<any>>) target(%151 : memref<32xf32, #tpu.memory_space<vmem>>) target_semaphore(%153 : memref<!tpu.dma_semaphore, #tpu.memory_space<semaphore_mem>>)
    %c22 = arith.constant 22 : index
    %154 = memref.load %arg0[%c22] : memref<32xi32, #tpu.memory_space<smem>>
    %c22_i32 = arith.constant 22 : i32
    %c22_i32_66 = arith.constant 22 : i32
    %c0_i32_67 = arith.constant 0 : i32
    %155 = tpu.memref_slice %arg1[%154, %c0_i32_67] : memref<32x32xf32, #tpu.memory_space<any>> -> memref<1x32xf32, #tpu.memory_space<any>>
    %156 = tpu.memref_squeeze %155 : memref<1x32xf32, #tpu.memory_space<any>> -> memref<32xf32, #tpu.memory_space<any>>
    %c0_i32_68 = arith.constant 0 : i32
    %157 = tpu.memref_slice %arg13[%c22_i32, %c0_i32_68] : memref<32x32xf32, #tpu.memory_space<vmem>> -> memref<1x32xf32, #tpu.memory_space<vmem>>
    %158 = tpu.memref_squeeze %157 : memref<1x32xf32, #tpu.memory_space<vmem>> -> memref<32xf32, #tpu.memory_space<vmem>>
    %159 = tpu.memref_slice %arg14[%c22_i32_66] : memref<32x!tpu.dma_semaphore, #tpu.memory_space<semaphore_mem>> -> memref<1x!tpu.dma_semaphore, #tpu.memory_space<semaphore_mem>>
    %160 = tpu.memref_squeeze %159 : memref<1x!tpu.dma_semaphore, #tpu.memory_space<semaphore_mem>> -> memref<!tpu.dma_semaphore, #tpu.memory_space<semaphore_mem>>
    tpu.enqueue_dma source(%156 : memref<32xf32, #tpu.memory_space<any>>) target(%158 : memref<32xf32, #tpu.memory_space<vmem>>) target_semaphore(%160 : memref<!tpu.dma_semaphore, #tpu.memory_space<semaphore_mem>>)
    %c23 = arith.constant 23 : index
    %161 = memref.load %arg0[%c23] : memref<32xi32, #tpu.memory_space<smem>>
    %c23_i32 = arith.constant 23 : i32
    %c23_i32_69 = arith.constant 23 : i32
    %c0_i32_70 = arith.constant 0 : i32
    %162 = tpu.memref_slice %arg1[%161, %c0_i32_70] : memref<32x32xf32, #tpu.memory_space<any>> -> memref<1x32xf32, #tpu.memory_space<any>>
    %163 = tpu.memref_squeeze %162 : memref<1x32xf32, #tpu.memory_space<any>> -> memref<32xf32, #tpu.memory_space<any>>
    %c0_i32_71 = arith.constant 0 : i32
    %164 = tpu.memref_slice %arg13[%c23_i32, %c0_i32_71] : memref<32x32xf32, #tpu.memory_space<vmem>> -> memref<1x32xf32, #tpu.memory_space<vmem>>
    %165 = tpu.memref_squeeze %164 : memref<1x32xf32, #tpu.memory_space<vmem>> -> memref<32xf32, #tpu.memory_space<vmem>>
    %166 = tpu.memref_slice %arg14[%c23_i32_69] : memref<32x!tpu.dma_semaphore, #tpu.memory_space<semaphore_mem>> -> memref<1x!tpu.dma_semaphore, #tpu.memory_space<semaphore_mem>>
    %167 = tpu.memref_squeeze %166 : memref<1x!tpu.dma_semaphore, #tpu.memory_space<semaphore_mem>> -> memref<!tpu.dma_semaphore, #tpu.memory_space<semaphore_mem>>
    tpu.enqueue_dma source(%163 : memref<32xf32, #tpu.memory_space<any>>) target(%165 : memref<32xf32, #tpu.memory_space<vmem>>) target_semaphore(%167 : memref<!tpu.dma_semaphore, #tpu.memory_space<semaphore_mem>>)
    %c24 = arith.constant 24 : index
    %168 = memref.load %arg0[%c24] : memref<32xi32, #tpu.memory_space<smem>>
    %c24_i32 = arith.constant 24 : i32
    %c24_i32_72 = arith.constant 24 : i32
    %c0_i32_73 = arith.constant 0 : i32
    %169 = tpu.memref_slice %arg1[%168, %c0_i32_73] : memref<32x32xf32, #tpu.memory_space<any>> -> memref<1x32xf32, #tpu.memory_space<any>>
    %170 = tpu.memref_squeeze %169 : memref<1x32xf32, #tpu.memory_space<any>> -> memref<32xf32, #tpu.memory_space<any>>
    %c0_i32_74 = arith.constant 0 : i32
    %171 = tpu.memref_slice %arg13[%c24_i32, %c0_i32_74] : memref<32x32xf32, #tpu.memory_space<vmem>> -> memref<1x32xf32, #tpu.memory_space<vmem>>
    %172 = tpu.memref_squeeze %171 : memref<1x32xf32, #tpu.memory_space<vmem>> -> memref<32xf32, #tpu.memory_space<vmem>>
    %173 = tpu.memref_slice %arg14[%c24_i32_72] : memref<32x!tpu.dma_semaphore, #tpu.memory_space<semaphore_mem>> -> memref<1x!tpu.dma_semaphore, #tpu.memory_space<semaphore_mem>>
    %174 = tpu.memref_squeeze %173 : memref<1x!tpu.dma_semaphore, #tpu.memory_space<semaphore_mem>> -> memref<!tpu.dma_semaphore, #tpu.memory_space<semaphore_mem>>
    tpu.enqueue_dma source(%170 : memref<32xf32, #tpu.memory_space<any>>) target(%172 : memref<32xf32, #tpu.memory_space<vmem>>) target_semaphore(%174 : memref<!tpu.dma_semaphore, #tpu.memory_space<semaphore_mem>>)
    %c25 = arith.constant 25 : index
    %175 = memref.load %arg0[%c25] : memref<32xi32, #tpu.memory_space<smem>>
    %c25_i32 = arith.constant 25 : i32
    %c25_i32_75 = arith.constant 25 : i32
    %c0_i32_76 = arith.constant 0 : i32
    %176 = tpu.memref_slice %arg1[%175, %c0_i32_76] : memref<32x32xf32, #tpu.memory_space<any>> -> memref<1x32xf32, #tpu.memory_space<any>>
    %177 = tpu.memref_squeeze %176 : memref<1x32xf32, #tpu.memory_space<any>> -> memref<32xf32, #tpu.memory_space<any>>
    %c0_i32_77 = arith.constant 0 : i32
    %178 = tpu.memref_slice %arg13[%c25_i32, %c0_i32_77] : memref<32x32xf32, #tpu.memory_space<vmem>> -> memref<1x32xf32, #tpu.memory_space<vmem>>
    %179 = tpu.memref_squeeze %178 : memref<1x32xf32, #tpu.memory_space<vmem>> -> memref<32xf32, #tpu.memory_space<vmem>>
    %180 = tpu.memref_slice %arg14[%c25_i32_75] : memref<32x!tpu.dma_semaphore, #tpu.memory_space<semaphore_mem>> -> memref<1x!tpu.dma_semaphore, #tpu.memory_space<semaphore_mem>>
    %181 = tpu.memref_squeeze %180 : memref<1x!tpu.dma_semaphore, #tpu.memory_space<semaphore_mem>> -> memref<!tpu.dma_semaphore, #tpu.memory_space<semaphore_mem>>
    tpu.enqueue_dma source(%177 : memref<32xf32, #tpu.memory_space<any>>) target(%179 : memref<32xf32, #tpu.memory_space<vmem>>) target_semaphore(%181 : memref<!tpu.dma_semaphore, #tpu.memory_space<semaphore_mem>>)
    %c26 = arith.constant 26 : index
    %182 = memref.load %arg0[%c26] : memref<32xi32, #tpu.memory_space<smem>>
    %c26_i32 = arith.constant 26 : i32
    %c26_i32_78 = arith.constant 26 : i32
    %c0_i32_79 = arith.constant 0 : i32
    %183 = tpu.memref_slice %arg1[%182, %c0_i32_79] : memref<32x32xf32, #tpu.memory_space<any>> -> memref<1x32xf32, #tpu.memory_space<any>>
    %184 = tpu.memref_squeeze %183 : memref<1x32xf32, #tpu.memory_space<any>> -> memref<32xf32, #tpu.memory_space<any>>
    %c0_i32_80 = arith.constant 0 : i32
    %185 = tpu.memref_slice %arg13[%c26_i32, %c0_i32_80] : memref<32x32xf32, #tpu.memory_space<vmem>> -> memref<1x32xf32, #tpu.memory_space<vmem>>
    %186 = tpu.memref_squeeze %185 : memref<1x32xf32, #tpu.memory_space<vmem>> -> memref<32xf32, #tpu.memory_space<vmem>>
    %187 = tpu.memref_slice %arg14[%c26_i32_78] : memref<32x!tpu.dma_semaphore, #tpu.memory_space<semaphore_mem>> -> memref<1x!tpu.dma_semaphore, #tpu.memory_space<semaphore_mem>>
    %188 = tpu.memref_squeeze %187 : memref<1x!tpu.dma_semaphore, #tpu.memory_space<semaphore_mem>> -> memref<!tpu.dma_semaphore, #tpu.memory_space<semaphore_mem>>
    tpu.enqueue_dma source(%184 : memref<32xf32, #tpu.memory_space<any>>) target(%186 : memref<32xf32, #tpu.memory_space<vmem>>) target_semaphore(%188 : memref<!tpu.dma_semaphore, #tpu.memory_space<semaphore_mem>>)
    %c27 = arith.constant 27 : index
    %189 = memref.load %arg0[%c27] : memref<32xi32, #tpu.memory_space<smem>>
    %c27_i32 = arith.constant 27 : i32
    %c27_i32_81 = arith.constant 27 : i32
    %c0_i32_82 = arith.constant 0 : i32
    %190 = tpu.memref_slice %arg1[%189, %c0_i32_82] : memref<32x32xf32, #tpu.memory_space<any>> -> memref<1x32xf32, #tpu.memory_space<any>>
    %191 = tpu.memref_squeeze %190 : memref<1x32xf32, #tpu.memory_space<any>> -> memref<32xf32, #tpu.memory_space<any>>
    %c0_i32_83 = arith.constant 0 : i32
    %192 = tpu.memref_slice %arg13[%c27_i32, %c0_i32_83] : memref<32x32xf32, #tpu.memory_space<vmem>> -> memref<1x32xf32, #tpu.memory_space<vmem>>
    %193 = tpu.memref_squeeze %192 : memref<1x32xf32, #tpu.memory_space<vmem>> -> memref<32xf32, #tpu.memory_space<vmem>>
    %194 = tpu.memref_slice %arg14[%c27_i32_81] : memref<32x!tpu.dma_semaphore, #tpu.memory_space<semaphore_mem>> -> memref<1x!tpu.dma_semaphore, #tpu.memory_space<semaphore_mem>>
    %195 = tpu.memref_squeeze %194 : memref<1x!tpu.dma_semaphore, #tpu.memory_space<semaphore_mem>> -> memref<!tpu.dma_semaphore, #tpu.memory_space<semaphore_mem>>
    tpu.enqueue_dma source(%191 : memref<32xf32, #tpu.memory_space<any>>) target(%193 : memref<32xf32, #tpu.memory_space<vmem>>) target_semaphore(%195 : memref<!tpu.dma_semaphore, #tpu.memory_space<semaphore_mem>>)
    %c28 = arith.constant 28 : index
    %196 = memref.load %arg0[%c28] : memref<32xi32, #tpu.memory_space<smem>>
    %c28_i32 = arith.constant 28 : i32
    %c28_i32_84 = arith.constant 28 : i32
    %c0_i32_85 = arith.constant 0 : i32
    %197 = tpu.memref_slice %arg1[%196, %c0_i32_85] : memref<32x32xf32, #tpu.memory_space<any>> -> memref<1x32xf32, #tpu.memory_space<any>>
    %198 = tpu.memref_squeeze %197 : memref<1x32xf32, #tpu.memory_space<any>> -> memref<32xf32, #tpu.memory_space<any>>
    %c0_i32_86 = arith.constant 0 : i32
    %199 = tpu.memref_slice %arg13[%c28_i32, %c0_i32_86] : memref<32x32xf32, #tpu.memory_space<vmem>> -> memref<1x32xf32, #tpu.memory_space<vmem>>
    %200 = tpu.memref_squeeze %199 : memref<1x32xf32, #tpu.memory_space<vmem>> -> memref<32xf32, #tpu.memory_space<vmem>>
    %201 = tpu.memref_slice %arg14[%c28_i32_84] : memref<32x!tpu.dma_semaphore, #tpu.memory_space<semaphore_mem>> -> memref<1x!tpu.dma_semaphore, #tpu.memory_space<semaphore_mem>>
    %202 = tpu.memref_squeeze %201 : memref<1x!tpu.dma_semaphore, #tpu.memory_space<semaphore_mem>> -> memref<!tpu.dma_semaphore, #tpu.memory_space<semaphore_mem>>
    tpu.enqueue_dma source(%198 : memref<32xf32, #tpu.memory_space<any>>) target(%200 : memref<32xf32, #tpu.memory_space<vmem>>) target_semaphore(%202 : memref<!tpu.dma_semaphore, #tpu.memory_space<semaphore_mem>>)
    %c29 = arith.constant 29 : index
    %203 = memref.load %arg0[%c29] : memref<32xi32, #tpu.memory_space<smem>>
    %c29_i32 = arith.constant 29 : i32
    %c29_i32_87 = arith.constant 29 : i32
    %c0_i32_88 = arith.constant 0 : i32
    %204 = tpu.memref_slice %arg1[%203, %c0_i32_88] : memref<32x32xf32, #tpu.memory_space<any>> -> memref<1x32xf32, #tpu.memory_space<any>>
    %205 = tpu.memref_squeeze %204 : memref<1x32xf32, #tpu.memory_space<any>> -> memref<32xf32, #tpu.memory_space<any>>
    %c0_i32_89 = arith.constant 0 : i32
    %206 = tpu.memref_slice %arg13[%c29_i32, %c0_i32_89] : memref<32x32xf32, #tpu.memory_space<vmem>> -> memref<1x32xf32, #tpu.memory_space<vmem>>
    %207 = tpu.memref_squeeze %206 : memref<1x32xf32, #tpu.memory_space<vmem>> -> memref<32xf32, #tpu.memory_space<vmem>>
    %208 = tpu.memref_slice %arg14[%c29_i32_87] : memref<32x!tpu.dma_semaphore, #tpu.memory_space<semaphore_mem>> -> memref<1x!tpu.dma_semaphore, #tpu.memory_space<semaphore_mem>>
    %209 = tpu.memref_squeeze %208 : memref<1x!tpu.dma_semaphore, #tpu.memory_space<semaphore_mem>> -> memref<!tpu.dma_semaphore, #tpu.memory_space<semaphore_mem>>
    tpu.enqueue_dma source(%205 : memref<32xf32, #tpu.memory_space<any>>) target(%207 : memref<32xf32, #tpu.memory_space<vmem>>) target_semaphore(%209 : memref<!tpu.dma_semaphore, #tpu.memory_space<semaphore_mem>>)
    %c30 = arith.constant 30 : index
    %210 = memref.load %arg0[%c30] : memref<32xi32, #tpu.memory_space<smem>>
    %c30_i32 = arith.constant 30 : i32
    %c30_i32_90 = arith.constant 30 : i32
    %c0_i32_91 = arith.constant 0 : i32
    %211 = tpu.memref_slice %arg1[%210, %c0_i32_91] : memref<32x32xf32, #tpu.memory_space<any>> -> memref<1x32xf32, #tpu.memory_space<any>>
    %212 = tpu.memref_squeeze %211 : memref<1x32xf32, #tpu.memory_space<any>> -> memref<32xf32, #tpu.memory_space<any>>
    %c0_i32_92 = arith.constant 0 : i32
    %213 = tpu.memref_slice %arg13[%c30_i32, %c0_i32_92] : memref<32x32xf32, #tpu.memory_space<vmem>> -> memref<1x32xf32, #tpu.memory_space<vmem>>
    %214 = tpu.memref_squeeze %213 : memref<1x32xf32, #tpu.memory_space<vmem>> -> memref<32xf32, #tpu.memory_space<vmem>>
    %215 = tpu.memref_slice %arg14[%c30_i32_90] : memref<32x!tpu.dma_semaphore, #tpu.memory_space<semaphore_mem>> -> memref<1x!tpu.dma_semaphore, #tpu.memory_space<semaphore_mem>>
    %216 = tpu.memref_squeeze %215 : memref<1x!tpu.dma_semaphore, #tpu.memory_space<semaphore_mem>> -> memref<!tpu.dma_semaphore, #tpu.memory_space<semaphore_mem>>
    tpu.enqueue_dma source(%212 : memref<32xf32, #tpu.memory_space<any>>) target(%214 : memref<32xf32, #tpu.memory_space<vmem>>) target_semaphore(%216 : memref<!tpu.dma_semaphore, #tpu.memory_space<semaphore_mem>>)
    %c31 = arith.constant 31 : index
    %217 = memref.load %arg0[%c31] : memref<32xi32, #tpu.memory_space<smem>>
    %c31_i32 = arith.constant 31 : i32
    %c31_i32_93 = arith.constant 31 : i32
    %c0_i32_94 = arith.constant 0 : i32
    %218 = tpu.memref_slice %arg1[%217, %c0_i32_94] : memref<32x32xf32, #tpu.memory_space<any>> -> memref<1x32xf32, #tpu.memory_space<any>>
    %219 = tpu.memref_squeeze %218 : memref<1x32xf32, #tpu.memory_space<any>> -> memref<32xf32, #tpu.memory_space<any>>
    %c0_i32_95 = arith.constant 0 : i32
    %220 = tpu.memref_slice %arg13[%c31_i32, %c0_i32_95] : memref<32x32xf32, #tpu.memory_space<vmem>> -> memref<1x32xf32, #tpu.memory_space<vmem>>
    %221 = tpu.memref_squeeze %220 : memref<1x32xf32, #tpu.memory_space<vmem>> -> memref<32xf32, #tpu.memory_space<vmem>>
    %222 = tpu.memref_slice %arg14[%c31_i32_93] : memref<32x!tpu.dma_semaphore, #tpu.memory_space<semaphore_mem>> -> memref<1x!tpu.dma_semaphore, #tpu.memory_space<semaphore_mem>>
    %223 = tpu.memref_squeeze %222 : memref<1x!tpu.dma_semaphore, #tpu.memory_space<semaphore_mem>> -> memref<!tpu.dma_semaphore, #tpu.memory_space<semaphore_mem>>
    tpu.enqueue_dma source(%219 : memref<32xf32, #tpu.memory_space<any>>) target(%221 : memref<32xf32, #tpu.memory_space<vmem>>) target_semaphore(%223 : memref<!tpu.dma_semaphore, #tpu.memory_space<semaphore_mem>>)
    %c0_96 = arith.constant 0 : index
    %224 = memref.load %arg0[%c0_96] : memref<32xi32, #tpu.memory_space<smem>>
    %c0_i32_97 = arith.constant 0 : i32
    %c0_i32_98 = arith.constant 0 : i32
    %c0_i32_99 = arith.constant 0 : i32
    %225 = tpu.memref_slice %arg1[%224, %c0_i32_99] : memref<32x32xf32, #tpu.memory_space<any>> -> memref<1x32xf32, #tpu.memory_space<any>>
    %226 = tpu.memref_squeeze %225 : memref<1x32xf32, #tpu.memory_space<any>> -> memref<32xf32, #tpu.memory_space<any>>
    %c0_i32_100 = arith.constant 0 : i32
    %227 = tpu.memref_slice %arg13[%c0_i32_97, %c0_i32_100] : memref<32x32xf32, #tpu.memory_space<vmem>> -> memref<1x32xf32, #tpu.memory_space<vmem>>
    %228 = tpu.memref_squeeze %227 : memref<1x32xf32, #tpu.memory_space<vmem>> -> memref<32xf32, #tpu.memory_space<vmem>>
    %229 = tpu.memref_slice %arg14[%c0_i32_98] : memref<32x!tpu.dma_semaphore, #tpu.memory_space<semaphore_mem>> -> memref<1x!tpu.dma_semaphore, #tpu.memory_space<semaphore_mem>>
    %230 = tpu.memref_squeeze %229 : memref<1x!tpu.dma_semaphore, #tpu.memory_space<semaphore_mem>> -> memref<!tpu.dma_semaphore, #tpu.memory_space<semaphore_mem>>
    tpu.wait_dma2 semaphore(%230 : memref<!tpu.dma_semaphore, #tpu.memory_space<semaphore_mem>>) src(%226 : memref<32xf32, #tpu.memory_space<any>>) dst(%228 : memref<32xf32, #tpu.memory_space<vmem>>)
    %c1_101 = arith.constant 1 : index
    %231 = memref.load %arg0[%c1_101] : memref<32xi32, #tpu.memory_space<smem>>
    %c1_i32_102 = arith.constant 1 : i32
    %c1_i32_103 = arith.constant 1 : i32
    %c0_i32_104 = arith.constant 0 : i32
    %232 = tpu.memref_slice %arg1[%231, %c0_i32_104] : memref<32x32xf32, #tpu.memory_space<any>> -> memref<1x32xf32, #tpu.memory_space<any>>
    %233 = tpu.memref_squeeze %232 : memref<1x32xf32, #tpu.memory_space<any>> -> memref<32xf32, #tpu.memory_space<any>>
    %c0_i32_105 = arith.constant 0 : i32
    %234 = tpu.memref_slice %arg13[%c1_i32_102, %c0_i32_105] : memref<32x32xf32, #tpu.memory_space<vmem>> -> memref<1x32xf32, #tpu.memory_space<vmem>>
    %235 = tpu.memref_squeeze %234 : memref<1x32xf32, #tpu.memory_space<vmem>> -> memref<32xf32, #tpu.memory_space<vmem>>
    %236 = tpu.memref_slice %arg14[%c1_i32_103] : memref<32x!tpu.dma_semaphore, #tpu.memory_space<semaphore_mem>> -> memref<1x!tpu.dma_semaphore, #tpu.memory_space<semaphore_mem>>
    %237 = tpu.memref_squeeze %236 : memref<1x!tpu.dma_semaphore, #tpu.memory_space<semaphore_mem>> -> memref<!tpu.dma_semaphore, #tpu.memory_space<semaphore_mem>>
    tpu.wait_dma2 semaphore(%237 : memref<!tpu.dma_semaphore, #tpu.memory_space<semaphore_mem>>) src(%233 : memref<32xf32, #tpu.memory_space<any>>) dst(%235 : memref<32xf32, #tpu.memory_space<vmem>>)
    %c2_106 = arith.constant 2 : index
    %238 = memref.load %arg0[%c2_106] : memref<32xi32, #tpu.memory_space<smem>>
    %c2_i32_107 = arith.constant 2 : i32
    %c2_i32_108 = arith.constant 2 : i32
    %c0_i32_109 = arith.constant 0 : i32
    %239 = tpu.memref_slice %arg1[%238, %c0_i32_109] : memref<32x32xf32, #tpu.memory_space<any>> -> memref<1x32xf32, #tpu.memory_space<any>>
    %240 = tpu.memref_squeeze %239 : memref<1x32xf32, #tpu.memory_space<any>> -> memref<32xf32, #tpu.memory_space<any>>
    %c0_i32_110 = arith.constant 0 : i32
    %241 = tpu.memref_slice %arg13[%c2_i32_107, %c0_i32_110] : memref<32x32xf32, #tpu.memory_space<vmem>> -> memref<1x32xf32, #tpu.memory_space<vmem>>
    %242 = tpu.memref_squeeze %241 : memref<1x32xf32, #tpu.memory_space<vmem>> -> memref<32xf32, #tpu.memory_space<vmem>>
    %243 = tpu.memref_slice %arg14[%c2_i32_108] : memref<32x!tpu.dma_semaphore, #tpu.memory_space<semaphore_mem>> -> memref<1x!tpu.dma_semaphore, #tpu.memory_space<semaphore_mem>>
    %244 = tpu.memref_squeeze %243 : memref<1x!tpu.dma_semaphore, #tpu.memory_space<semaphore_mem>> -> memref<!tpu.dma_semaphore, #tpu.memory_space<semaphore_mem>>
    tpu.wait_dma2 semaphore(%244 : memref<!tpu.dma_semaphore, #tpu.memory_space<semaphore_mem>>) src(%240 : memref<32xf32, #tpu.memory_space<any>>) dst(%242 : memref<32xf32, #tpu.memory_space<vmem>>)
    %c3_111 = arith.constant 3 : index
    %245 = memref.load %arg0[%c3_111] : memref<32xi32, #tpu.memory_space<smem>>
    %c3_i32_112 = arith.constant 3 : i32
    %c3_i32_113 = arith.constant 3 : i32
    %c0_i32_114 = arith.constant 0 : i32
    %246 = tpu.memref_slice %arg1[%245, %c0_i32_114] : memref<32x32xf32, #tpu.memory_space<any>> -> memref<1x32xf32, #tpu.memory_space<any>>
    %247 = tpu.memref_squeeze %246 : memref<1x32xf32, #tpu.memory_space<any>> -> memref<32xf32, #tpu.memory_space<any>>
    %c0_i32_115 = arith.constant 0 : i32
    %248 = tpu.memref_slice %arg13[%c3_i32_112, %c0_i32_115] : memref<32x32xf32, #tpu.memory_space<vmem>> -> memref<1x32xf32, #tpu.memory_space<vmem>>
    %249 = tpu.memref_squeeze %248 : memref<1x32xf32, #tpu.memory_space<vmem>> -> memref<32xf32, #tpu.memory_space<vmem>>
    %250 = tpu.memref_slice %arg14[%c3_i32_113] : memref<32x!tpu.dma_semaphore, #tpu.memory_space<semaphore_mem>> -> memref<1x!tpu.dma_semaphore, #tpu.memory_space<semaphore_mem>>
    %251 = tpu.memref_squeeze %250 : memref<1x!tpu.dma_semaphore, #tpu.memory_space<semaphore_mem>> -> memref<!tpu.dma_semaphore, #tpu.memory_space<semaphore_mem>>
    tpu.wait_dma2 semaphore(%251 : memref<!tpu.dma_semaphore, #tpu.memory_space<semaphore_mem>>) src(%247 : memref<32xf32, #tpu.memory_space<any>>) dst(%249 : memref<32xf32, #tpu.memory_space<vmem>>)
    %c4_116 = arith.constant 4 : index
    %252 = memref.load %arg0[%c4_116] : memref<32xi32, #tpu.memory_space<smem>>
    %c4_i32_117 = arith.constant 4 : i32
    %c4_i32_118 = arith.constant 4 : i32
    %c0_i32_119 = arith.constant 0 : i32
    %253 = tpu.memref_slice %arg1[%252, %c0_i32_119] : memref<32x32xf32, #tpu.memory_space<any>> -> memref<1x32xf32, #tpu.memory_space<any>>
    %254 = tpu.memref_squeeze %253 : memref<1x32xf32, #tpu.memory_space<any>> -> memref<32xf32, #tpu.memory_space<any>>
    %c0_i32_120 = arith.constant 0 : i32
    %255 = tpu.memref_slice %arg13[%c4_i32_117, %c0_i32_120] : memref<32x32xf32, #tpu.memory_space<vmem>> -> memref<1x32xf32, #tpu.memory_space<vmem>>
    %256 = tpu.memref_squeeze %255 : memref<1x32xf32, #tpu.memory_space<vmem>> -> memref<32xf32, #tpu.memory_space<vmem>>
    %257 = tpu.memref_slice %arg14[%c4_i32_118] : memref<32x!tpu.dma_semaphore, #tpu.memory_space<semaphore_mem>> -> memref<1x!tpu.dma_semaphore, #tpu.memory_space<semaphore_mem>>
    %258 = tpu.memref_squeeze %257 : memref<1x!tpu.dma_semaphore, #tpu.memory_space<semaphore_mem>> -> memref<!tpu.dma_semaphore, #tpu.memory_space<semaphore_mem>>
    tpu.wait_dma2 semaphore(%258 : memref<!tpu.dma_semaphore, #tpu.memory_space<semaphore_mem>>) src(%254 : memref<32xf32, #tpu.memory_space<any>>) dst(%256 : memref<32xf32, #tpu.memory_space<vmem>>)
    %c5_121 = arith.constant 5 : index
    %259 = memref.load %arg0[%c5_121] : memref<32xi32, #tpu.memory_space<smem>>
    %c5_i32_122 = arith.constant 5 : i32
    %c5_i32_123 = arith.constant 5 : i32
    %c0_i32_124 = arith.constant 0 : i32
    %260 = tpu.memref_slice %arg1[%259, %c0_i32_124] : memref<32x32xf32, #tpu.memory_space<any>> -> memref<1x32xf32, #tpu.memory_space<any>>
    %261 = tpu.memref_squeeze %260 : memref<1x32xf32, #tpu.memory_space<any>> -> memref<32xf32, #tpu.memory_space<any>>
    %c0_i32_125 = arith.constant 0 : i32
    %262 = tpu.memref_slice %arg13[%c5_i32_122, %c0_i32_125] : memref<32x32xf32, #tpu.memory_space<vmem>> -> memref<1x32xf32, #tpu.memory_space<vmem>>
    %263 = tpu.memref_squeeze %262 : memref<1x32xf32, #tpu.memory_space<vmem>> -> memref<32xf32, #tpu.memory_space<vmem>>
    %264 = tpu.memref_slice %arg14[%c5_i32_123] : memref<32x!tpu.dma_semaphore, #tpu.memory_space<semaphore_mem>> -> memref<1x!tpu.dma_semaphore, #tpu.memory_space<semaphore_mem>>
    %265 = tpu.memref_squeeze %264 : memref<1x!tpu.dma_semaphore, #tpu.memory_space<semaphore_mem>> -> memref<!tpu.dma_semaphore, #tpu.memory_space<semaphore_mem>>
    tpu.wait_dma2 semaphore(%265 : memref<!tpu.dma_semaphore, #tpu.memory_space<semaphore_mem>>) src(%261 : memref<32xf32, #tpu.memory_space<any>>) dst(%263 : memref<32xf32, #tpu.memory_space<vmem>>)
    %c6_126 = arith.constant 6 : index
    %266 = memref.load %arg0[%c6_126] : memref<32xi32, #tpu.memory_space<smem>>
    %c6_i32_127 = arith.constant 6 : i32
    %c6_i32_128 = arith.constant 6 : i32
    %c0_i32_129 = arith.constant 0 : i32
    %267 = tpu.memref_slice %arg1[%266, %c0_i32_129] : memref<32x32xf32, #tpu.memory_space<any>> -> memref<1x32xf32, #tpu.memory_space<any>>
    %268 = tpu.memref_squeeze %267 : memref<1x32xf32, #tpu.memory_space<any>> -> memref<32xf32, #tpu.memory_space<any>>
    %c0_i32_130 = arith.constant 0 : i32
    %269 = tpu.memref_slice %arg13[%c6_i32_127, %c0_i32_130] : memref<32x32xf32, #tpu.memory_space<vmem>> -> memref<1x32xf32, #tpu.memory_space<vmem>>
    %270 = tpu.memref_squeeze %269 : memref<1x32xf32, #tpu.memory_space<vmem>> -> memref<32xf32, #tpu.memory_space<vmem>>
    %271 = tpu.memref_slice %arg14[%c6_i32_128] : memref<32x!tpu.dma_semaphore, #tpu.memory_space<semaphore_mem>> -> memref<1x!tpu.dma_semaphore, #tpu.memory_space<semaphore_mem>>
    %272 = tpu.memref_squeeze %271 : memref<1x!tpu.dma_semaphore, #tpu.memory_space<semaphore_mem>> -> memref<!tpu.dma_semaphore, #tpu.memory_space<semaphore_mem>>
    tpu.wait_dma2 semaphore(%272 : memref<!tpu.dma_semaphore, #tpu.memory_space<semaphore_mem>>) src(%268 : memref<32xf32, #tpu.memory_space<any>>) dst(%270 : memref<32xf32, #tpu.memory_space<vmem>>)
    %c7_131 = arith.constant 7 : index
    %273 = memref.load %arg0[%c7_131] : memref<32xi32, #tpu.memory_space<smem>>
    %c7_i32_132 = arith.constant 7 : i32
    %c7_i32_133 = arith.constant 7 : i32
    %c0_i32_134 = arith.constant 0 : i32
    %274 = tpu.memref_slice %arg1[%273, %c0_i32_134] : memref<32x32xf32, #tpu.memory_space<any>> -> memref<1x32xf32, #tpu.memory_space<any>>
    %275 = tpu.memref_squeeze %274 : memref<1x32xf32, #tpu.memory_space<any>> -> memref<32xf32, #tpu.memory_space<any>>
    %c0_i32_135 = arith.constant 0 : i32
    %276 = tpu.memref_slice %arg13[%c7_i32_132, %c0_i32_135] : memref<32x32xf32, #tpu.memory_space<vmem>> -> memref<1x32xf32, #tpu.memory_space<vmem>>
    %277 = tpu.memref_squeeze %276 : memref<1x32xf32, #tpu.memory_space<vmem>> -> memref<32xf32, #tpu.memory_space<vmem>>
    %278 = tpu.memref_slice %arg14[%c7_i32_133] : memref<32x!tpu.dma_semaphore, #tpu.memory_space<semaphore_mem>> -> memref<1x!tpu.dma_semaphore, #tpu.memory_space<semaphore_mem>>
    %279 = tpu.memref_squeeze %278 : memref<1x!tpu.dma_semaphore, #tpu.memory_space<semaphore_mem>> -> memref<!tpu.dma_semaphore, #tpu.memory_space<semaphore_mem>>
    tpu.wait_dma2 semaphore(%279 : memref<!tpu.dma_semaphore, #tpu.memory_space<semaphore_mem>>) src(%275 : memref<32xf32, #tpu.memory_space<any>>) dst(%277 : memref<32xf32, #tpu.memory_space<vmem>>)
    %c8_136 = arith.constant 8 : index
    %280 = memref.load %arg0[%c8_136] : memref<32xi32, #tpu.memory_space<smem>>
    %c8_i32_137 = arith.constant 8 : i32
    %c8_i32_138 = arith.constant 8 : i32
    %c0_i32_139 = arith.constant 0 : i32
    %281 = tpu.memref_slice %arg1[%280, %c0_i32_139] : memref<32x32xf32, #tpu.memory_space<any>> -> memref<1x32xf32, #tpu.memory_space<any>>
    %282 = tpu.memref_squeeze %281 : memref<1x32xf32, #tpu.memory_space<any>> -> memref<32xf32, #tpu.memory_space<any>>
    %c0_i32_140 = arith.constant 0 : i32
    %283 = tpu.memref_slice %arg13[%c8_i32_137, %c0_i32_140] : memref<32x32xf32, #tpu.memory_space<vmem>> -> memref<1x32xf32, #tpu.memory_space<vmem>>
    %284 = tpu.memref_squeeze %283 : memref<1x32xf32, #tpu.memory_space<vmem>> -> memref<32xf32, #tpu.memory_space<vmem>>
    %285 = tpu.memref_slice %arg14[%c8_i32_138] : memref<32x!tpu.dma_semaphore, #tpu.memory_space<semaphore_mem>> -> memref<1x!tpu.dma_semaphore, #tpu.memory_space<semaphore_mem>>
    %286 = tpu.memref_squeeze %285 : memref<1x!tpu.dma_semaphore, #tpu.memory_space<semaphore_mem>> -> memref<!tpu.dma_semaphore, #tpu.memory_space<semaphore_mem>>
    tpu.wait_dma2 semaphore(%286 : memref<!tpu.dma_semaphore, #tpu.memory_space<semaphore_mem>>) src(%282 : memref<32xf32, #tpu.memory_space<any>>) dst(%284 : memref<32xf32, #tpu.memory_space<vmem>>)
    %c9_141 = arith.constant 9 : index
    %287 = memref.load %arg0[%c9_141] : memref<32xi32, #tpu.memory_space<smem>>
    %c9_i32_142 = arith.constant 9 : i32
    %c9_i32_143 = arith.constant 9 : i32
    %c0_i32_144 = arith.constant 0 : i32
    %288 = tpu.memref_slice %arg1[%287, %c0_i32_144] : memref<32x32xf32, #tpu.memory_space<any>> -> memref<1x32xf32, #tpu.memory_space<any>>
    %289 = tpu.memref_squeeze %288 : memref<1x32xf32, #tpu.memory_space<any>> -> memref<32xf32, #tpu.memory_space<any>>
    %c0_i32_145 = arith.constant 0 : i32
    %290 = tpu.memref_slice %arg13[%c9_i32_142, %c0_i32_145] : memref<32x32xf32, #tpu.memory_space<vmem>> -> memref<1x32xf32, #tpu.memory_space<vmem>>
    %291 = tpu.memref_squeeze %290 : memref<1x32xf32, #tpu.memory_space<vmem>> -> memref<32xf32, #tpu.memory_space<vmem>>
    %292 = tpu.memref_slice %arg14[%c9_i32_143] : memref<32x!tpu.dma_semaphore, #tpu.memory_space<semaphore_mem>> -> memref<1x!tpu.dma_semaphore, #tpu.memory_space<semaphore_mem>>
    %293 = tpu.memref_squeeze %292 : memref<1x!tpu.dma_semaphore, #tpu.memory_space<semaphore_mem>> -> memref<!tpu.dma_semaphore, #tpu.memory_space<semaphore_mem>>
    tpu.wait_dma2 semaphore(%293 : memref<!tpu.dma_semaphore, #tpu.memory_space<semaphore_mem>>) src(%289 : memref<32xf32, #tpu.memory_space<any>>) dst(%291 : memref<32xf32, #tpu.memory_space<vmem>>)
    %c10_146 = arith.constant 10 : index
    %294 = memref.load %arg0[%c10_146] : memref<32xi32, #tpu.memory_space<smem>>
    %c10_i32_147 = arith.constant 10 : i32
    %c10_i32_148 = arith.constant 10 : i32
    %c0_i32_149 = arith.constant 0 : i32
    %295 = tpu.memref_slice %arg1[%294, %c0_i32_149] : memref<32x32xf32, #tpu.memory_space<any>> -> memref<1x32xf32, #tpu.memory_space<any>>
    %296 = tpu.memref_squeeze %295 : memref<1x32xf32, #tpu.memory_space<any>> -> memref<32xf32, #tpu.memory_space<any>>
    %c0_i32_150 = arith.constant 0 : i32
    %297 = tpu.memref_slice %arg13[%c10_i32_147, %c0_i32_150] : memref<32x32xf32, #tpu.memory_space<vmem>> -> memref<1x32xf32, #tpu.memory_space<vmem>>
    %298 = tpu.memref_squeeze %297 : memref<1x32xf32, #tpu.memory_space<vmem>> -> memref<32xf32, #tpu.memory_space<vmem>>
    %299 = tpu.memref_slice %arg14[%c10_i32_148] : memref<32x!tpu.dma_semaphore, #tpu.memory_space<semaphore_mem>> -> memref<1x!tpu.dma_semaphore, #tpu.memory_space<semaphore_mem>>
    %300 = tpu.memref_squeeze %299 : memref<1x!tpu.dma_semaphore, #tpu.memory_space<semaphore_mem>> -> memref<!tpu.dma_semaphore, #tpu.memory_space<semaphore_mem>>
    tpu.wait_dma2 semaphore(%300 : memref<!tpu.dma_semaphore, #tpu.memory_space<semaphore_mem>>) src(%296 : memref<32xf32, #tpu.memory_space<any>>) dst(%298 : memref<32xf32, #tpu.memory_space<vmem>>)
    %c11_151 = arith.constant 11 : index
    %301 = memref.load %arg0[%c11_151] : memref<32xi32, #tpu.memory_space<smem>>
    %c11_i32_152 = arith.constant 11 : i32
    %c11_i32_153 = arith.constant 11 : i32
    %c0_i32_154 = arith.constant 0 : i32
    %302 = tpu.memref_slice %arg1[%301, %c0_i32_154] : memref<32x32xf32, #tpu.memory_space<any>> -> memref<1x32xf32, #tpu.memory_space<any>>
    %303 = tpu.memref_squeeze %302 : memref<1x32xf32, #tpu.memory_space<any>> -> memref<32xf32, #tpu.memory_space<any>>
    %c0_i32_155 = arith.constant 0 : i32
    %304 = tpu.memref_slice %arg13[%c11_i32_152, %c0_i32_155] : memref<32x32xf32, #tpu.memory_space<vmem>> -> memref<1x32xf32, #tpu.memory_space<vmem>>
    %305 = tpu.memref_squeeze %304 : memref<1x32xf32, #tpu.memory_space<vmem>> -> memref<32xf32, #tpu.memory_space<vmem>>
    %306 = tpu.memref_slice %arg14[%c11_i32_153] : memref<32x!tpu.dma_semaphore, #tpu.memory_space<semaphore_mem>> -> memref<1x!tpu.dma_semaphore, #tpu.memory_space<semaphore_mem>>
    %307 = tpu.memref_squeeze %306 : memref<1x!tpu.dma_semaphore, #tpu.memory_space<semaphore_mem>> -> memref<!tpu.dma_semaphore, #tpu.memory_space<semaphore_mem>>
    tpu.wait_dma2 semaphore(%307 : memref<!tpu.dma_semaphore, #tpu.memory_space<semaphore_mem>>) src(%303 : memref<32xf32, #tpu.memory_space<any>>) dst(%305 : memref<32xf32, #tpu.memory_space<vmem>>)
    %c12_156 = arith.constant 12 : index
    %308 = memref.load %arg0[%c12_156] : memref<32xi32, #tpu.memory_space<smem>>
    %c12_i32_157 = arith.constant 12 : i32
    %c12_i32_158 = arith.constant 12 : i32
    %c0_i32_159 = arith.constant 0 : i32
    %309 = tpu.memref_slice %arg1[%308, %c0_i32_159] : memref<32x32xf32, #tpu.memory_space<any>> -> memref<1x32xf32, #tpu.memory_space<any>>
    %310 = tpu.memref_squeeze %309 : memref<1x32xf32, #tpu.memory_space<any>> -> memref<32xf32, #tpu.memory_space<any>>
    %c0_i32_160 = arith.constant 0 : i32
    %311 = tpu.memref_slice %arg13[%c12_i32_157, %c0_i32_160] : memref<32x32xf32, #tpu.memory_space<vmem>> -> memref<1x32xf32, #tpu.memory_space<vmem>>
    %312 = tpu.memref_squeeze %311 : memref<1x32xf32, #tpu.memory_space<vmem>> -> memref<32xf32, #tpu.memory_space<vmem>>
    %313 = tpu.memref_slice %arg14[%c12_i32_158] : memref<32x!tpu.dma_semaphore, #tpu.memory_space<semaphore_mem>> -> memref<1x!tpu.dma_semaphore, #tpu.memory_space<semaphore_mem>>
    %314 = tpu.memref_squeeze %313 : memref<1x!tpu.dma_semaphore, #tpu.memory_space<semaphore_mem>> -> memref<!tpu.dma_semaphore, #tpu.memory_space<semaphore_mem>>
    tpu.wait_dma2 semaphore(%314 : memref<!tpu.dma_semaphore, #tpu.memory_space<semaphore_mem>>) src(%310 : memref<32xf32, #tpu.memory_space<any>>) dst(%312 : memref<32xf32, #tpu.memory_space<vmem>>)
    %c13_161 = arith.constant 13 : index
    %315 = memref.load %arg0[%c13_161] : memref<32xi32, #tpu.memory_space<smem>>
    %c13_i32_162 = arith.constant 13 : i32
    %c13_i32_163 = arith.constant 13 : i32
    %c0_i32_164 = arith.constant 0 : i32
    %316 = tpu.memref_slice %arg1[%315, %c0_i32_164] : memref<32x32xf32, #tpu.memory_space<any>> -> memref<1x32xf32, #tpu.memory_space<any>>
    %317 = tpu.memref_squeeze %316 : memref<1x32xf32, #tpu.memory_space<any>> -> memref<32xf32, #tpu.memory_space<any>>
    %c0_i32_165 = arith.constant 0 : i32
    %318 = tpu.memref_slice %arg13[%c13_i32_162, %c0_i32_165] : memref<32x32xf32, #tpu.memory_space<vmem>> -> memref<1x32xf32, #tpu.memory_space<vmem>>
    %319 = tpu.memref_squeeze %318 : memref<1x32xf32, #tpu.memory_space<vmem>> -> memref<32xf32, #tpu.memory_space<vmem>>
    %320 = tpu.memref_slice %arg14[%c13_i32_163] : memref<32x!tpu.dma_semaphore, #tpu.memory_space<semaphore_mem>> -> memref<1x!tpu.dma_semaphore, #tpu.memory_space<semaphore_mem>>
    %321 = tpu.memref_squeeze %320 : memref<1x!tpu.dma_semaphore, #tpu.memory_space<semaphore_mem>> -> memref<!tpu.dma_semaphore, #tpu.memory_space<semaphore_mem>>
    tpu.wait_dma2 semaphore(%321 : memref<!tpu.dma_semaphore, #tpu.memory_space<semaphore_mem>>) src(%317 : memref<32xf32, #tpu.memory_space<any>>) dst(%319 : memref<32xf32, #tpu.memory_space<vmem>>)
    %c14_166 = arith.constant 14 : index
    %322 = memref.load %arg0[%c14_166] : memref<32xi32, #tpu.memory_space<smem>>
    %c14_i32_167 = arith.constant 14 : i32
    %c14_i32_168 = arith.constant 14 : i32
    %c0_i32_169 = arith.constant 0 : i32
    %323 = tpu.memref_slice %arg1[%322, %c0_i32_169] : memref<32x32xf32, #tpu.memory_space<any>> -> memref<1x32xf32, #tpu.memory_space<any>>
    %324 = tpu.memref_squeeze %323 : memref<1x32xf32, #tpu.memory_space<any>> -> memref<32xf32, #tpu.memory_space<any>>
    %c0_i32_170 = arith.constant 0 : i32
    %325 = tpu.memref_slice %arg13[%c14_i32_167, %c0_i32_170] : memref<32x32xf32, #tpu.memory_space<vmem>> -> memref<1x32xf32, #tpu.memory_space<vmem>>
    %326 = tpu.memref_squeeze %325 : memref<1x32xf32, #tpu.memory_space<vmem>> -> memref<32xf32, #tpu.memory_space<vmem>>
    %327 = tpu.memref_slice %arg14[%c14_i32_168] : memref<32x!tpu.dma_semaphore, #tpu.memory_space<semaphore_mem>> -> memref<1x!tpu.dma_semaphore, #tpu.memory_space<semaphore_mem>>
    %328 = tpu.memref_squeeze %327 : memref<1x!tpu.dma_semaphore, #tpu.memory_space<semaphore_mem>> -> memref<!tpu.dma_semaphore, #tpu.memory_space<semaphore_mem>>
    tpu.wait_dma2 semaphore(%328 : memref<!tpu.dma_semaphore, #tpu.memory_space<semaphore_mem>>) src(%324 : memref<32xf32, #tpu.memory_space<any>>) dst(%326 : memref<32xf32, #tpu.memory_space<vmem>>)
    %c15_171 = arith.constant 15 : index
    %329 = memref.load %arg0[%c15_171] : memref<32xi32, #tpu.memory_space<smem>>
    %c15_i32_172 = arith.constant 15 : i32
    %c15_i32_173 = arith.constant 15 : i32
    %c0_i32_174 = arith.constant 0 : i32
    %330 = tpu.memref_slice %arg1[%329, %c0_i32_174] : memref<32x32xf32, #tpu.memory_space<any>> -> memref<1x32xf32, #tpu.memory_space<any>>
    %331 = tpu.memref_squeeze %330 : memref<1x32xf32, #tpu.memory_space<any>> -> memref<32xf32, #tpu.memory_space<any>>
    %c0_i32_175 = arith.constant 0 : i32
    %332 = tpu.memref_slice %arg13[%c15_i32_172, %c0_i32_175] : memref<32x32xf32, #tpu.memory_space<vmem>> -> memref<1x32xf32, #tpu.memory_space<vmem>>
    %333 = tpu.memref_squeeze %332 : memref<1x32xf32, #tpu.memory_space<vmem>> -> memref<32xf32, #tpu.memory_space<vmem>>
    %334 = tpu.memref_slice %arg14[%c15_i32_173] : memref<32x!tpu.dma_semaphore, #tpu.memory_space<semaphore_mem>> -> memref<1x!tpu.dma_semaphore, #tpu.memory_space<semaphore_mem>>
    %335 = tpu.memref_squeeze %334 : memref<1x!tpu.dma_semaphore, #tpu.memory_space<semaphore_mem>> -> memref<!tpu.dma_semaphore, #tpu.memory_space<semaphore_mem>>
    tpu.wait_dma2 semaphore(%335 : memref<!tpu.dma_semaphore, #tpu.memory_space<semaphore_mem>>) src(%331 : memref<32xf32, #tpu.memory_space<any>>) dst(%333 : memref<32xf32, #tpu.memory_space<vmem>>)
    %c16_176 = arith.constant 16 : index
    %336 = memref.load %arg0[%c16_176] : memref<32xi32, #tpu.memory_space<smem>>
    %c16_i32_177 = arith.constant 16 : i32
    %c16_i32_178 = arith.constant 16 : i32
    %c0_i32_179 = arith.constant 0 : i32
    %337 = tpu.memref_slice %arg1[%336, %c0_i32_179] : memref<32x32xf32, #tpu.memory_space<any>> -> memref<1x32xf32, #tpu.memory_space<any>>
    %338 = tpu.memref_squeeze %337 : memref<1x32xf32, #tpu.memory_space<any>> -> memref<32xf32, #tpu.memory_space<any>>
    %c0_i32_180 = arith.constant 0 : i32
    %339 = tpu.memref_slice %arg13[%c16_i32_177, %c0_i32_180] : memref<32x32xf32, #tpu.memory_space<vmem>> -> memref<1x32xf32, #tpu.memory_space<vmem>>
    %340 = tpu.memref_squeeze %339 : memref<1x32xf32, #tpu.memory_space<vmem>> -> memref<32xf32, #tpu.memory_space<vmem>>
    %341 = tpu.memref_slice %arg14[%c16_i32_178] : memref<32x!tpu.dma_semaphore, #tpu.memory_space<semaphore_mem>> -> memref<1x!tpu.dma_semaphore, #tpu.memory_space<semaphore_mem>>
    %342 = tpu.memref_squeeze %341 : memref<1x!tpu.dma_semaphore, #tpu.memory_space<semaphore_mem>> -> memref<!tpu.dma_semaphore, #tpu.memory_space<semaphore_mem>>
    tpu.wait_dma2 semaphore(%342 : memref<!tpu.dma_semaphore, #tpu.memory_space<semaphore_mem>>) src(%338 : memref<32xf32, #tpu.memory_space<any>>) dst(%340 : memref<32xf32, #tpu.memory_space<vmem>>)
    %c17_181 = arith.constant 17 : index
    %343 = memref.load %arg0[%c17_181] : memref<32xi32, #tpu.memory_space<smem>>
    %c17_i32_182 = arith.constant 17 : i32
    %c17_i32_183 = arith.constant 17 : i32
    %c0_i32_184 = arith.constant 0 : i32
    %344 = tpu.memref_slice %arg1[%343, %c0_i32_184] : memref<32x32xf32, #tpu.memory_space<any>> -> memref<1x32xf32, #tpu.memory_space<any>>
    %345 = tpu.memref_squeeze %344 : memref<1x32xf32, #tpu.memory_space<any>> -> memref<32xf32, #tpu.memory_space<any>>
    %c0_i32_185 = arith.constant 0 : i32
    %346 = tpu.memref_slice %arg13[%c17_i32_182, %c0_i32_185] : memref<32x32xf32, #tpu.memory_space<vmem>> -> memref<1x32xf32, #tpu.memory_space<vmem>>
    %347 = tpu.memref_squeeze %346 : memref<1x32xf32, #tpu.memory_space<vmem>> -> memref<32xf32, #tpu.memory_space<vmem>>
    %348 = tpu.memref_slice %arg14[%c17_i32_183] : memref<32x!tpu.dma_semaphore, #tpu.memory_space<semaphore_mem>> -> memref<1x!tpu.dma_semaphore, #tpu.memory_space<semaphore_mem>>
    %349 = tpu.memref_squeeze %348 : memref<1x!tpu.dma_semaphore, #tpu.memory_space<semaphore_mem>> -> memref<!tpu.dma_semaphore, #tpu.memory_space<semaphore_mem>>
    tpu.wait_dma2 semaphore(%349 : memref<!tpu.dma_semaphore, #tpu.memory_space<semaphore_mem>>) src(%345 : memref<32xf32, #tpu.memory_space<any>>) dst(%347 : memref<32xf32, #tpu.memory_space<vmem>>)
    %c18_186 = arith.constant 18 : index
    %350 = memref.load %arg0[%c18_186] : memref<32xi32, #tpu.memory_space<smem>>
    %c18_i32_187 = arith.constant 18 : i32
    %c18_i32_188 = arith.constant 18 : i32
    %c0_i32_189 = arith.constant 0 : i32
    %351 = tpu.memref_slice %arg1[%350, %c0_i32_189] : memref<32x32xf32, #tpu.memory_space<any>> -> memref<1x32xf32, #tpu.memory_space<any>>
    %352 = tpu.memref_squeeze %351 : memref<1x32xf32, #tpu.memory_space<any>> -> memref<32xf32, #tpu.memory_space<any>>
    %c0_i32_190 = arith.constant 0 : i32
    %353 = tpu.memref_slice %arg13[%c18_i32_187, %c0_i32_190] : memref<32x32xf32, #tpu.memory_space<vmem>> -> memref<1x32xf32, #tpu.memory_space<vmem>>
    %354 = tpu.memref_squeeze %353 : memref<1x32xf32, #tpu.memory_space<vmem>> -> memref<32xf32, #tpu.memory_space<vmem>>
    %355 = tpu.memref_slice %arg14[%c18_i32_188] : memref<32x!tpu.dma_semaphore, #tpu.memory_space<semaphore_mem>> -> memref<1x!tpu.dma_semaphore, #tpu.memory_space<semaphore_mem>>
    %356 = tpu.memref_squeeze %355 : memref<1x!tpu.dma_semaphore, #tpu.memory_space<semaphore_mem>> -> memref<!tpu.dma_semaphore, #tpu.memory_space<semaphore_mem>>
    tpu.wait_dma2 semaphore(%356 : memref<!tpu.dma_semaphore, #tpu.memory_space<semaphore_mem>>) src(%352 : memref<32xf32, #tpu.memory_space<any>>) dst(%354 : memref<32xf32, #tpu.memory_space<vmem>>)
    %c19_191 = arith.constant 19 : index
    %357 = memref.load %arg0[%c19_191] : memref<32xi32, #tpu.memory_space<smem>>
    %c19_i32_192 = arith.constant 19 : i32
    %c19_i32_193 = arith.constant 19 : i32
    %c0_i32_194 = arith.constant 0 : i32
    %358 = tpu.memref_slice %arg1[%357, %c0_i32_194] : memref<32x32xf32, #tpu.memory_space<any>> -> memref<1x32xf32, #tpu.memory_space<any>>
    %359 = tpu.memref_squeeze %358 : memref<1x32xf32, #tpu.memory_space<any>> -> memref<32xf32, #tpu.memory_space<any>>
    %c0_i32_195 = arith.constant 0 : i32
    %360 = tpu.memref_slice %arg13[%c19_i32_192, %c0_i32_195] : memref<32x32xf32, #tpu.memory_space<vmem>> -> memref<1x32xf32, #tpu.memory_space<vmem>>
    %361 = tpu.memref_squeeze %360 : memref<1x32xf32, #tpu.memory_space<vmem>> -> memref<32xf32, #tpu.memory_space<vmem>>
    %362 = tpu.memref_slice %arg14[%c19_i32_193] : memref<32x!tpu.dma_semaphore, #tpu.memory_space<semaphore_mem>> -> memref<1x!tpu.dma_semaphore, #tpu.memory_space<semaphore_mem>>
    %363 = tpu.memref_squeeze %362 : memref<1x!tpu.dma_semaphore, #tpu.memory_space<semaphore_mem>> -> memref<!tpu.dma_semaphore, #tpu.memory_space<semaphore_mem>>
    tpu.wait_dma2 semaphore(%363 : memref<!tpu.dma_semaphore, #tpu.memory_space<semaphore_mem>>) src(%359 : memref<32xf32, #tpu.memory_space<any>>) dst(%361 : memref<32xf32, #tpu.memory_space<vmem>>)
    %c20_196 = arith.constant 20 : index
    %364 = memref.load %arg0[%c20_196] : memref<32xi32, #tpu.memory_space<smem>>
    %c20_i32_197 = arith.constant 20 : i32
    %c20_i32_198 = arith.constant 20 : i32
    %c0_i32_199 = arith.constant 0 : i32
    %365 = tpu.memref_slice %arg1[%364, %c0_i32_199] : memref<32x32xf32, #tpu.memory_space<any>> -> memref<1x32xf32, #tpu.memory_space<any>>
    %366 = tpu.memref_squeeze %365 : memref<1x32xf32, #tpu.memory_space<any>> -> memref<32xf32, #tpu.memory_space<any>>
    %c0_i32_200 = arith.constant 0 : i32
    %367 = tpu.memref_slice %arg13[%c20_i32_197, %c0_i32_200] : memref<32x32xf32, #tpu.memory_space<vmem>> -> memref<1x32xf32, #tpu.memory_space<vmem>>
    %368 = tpu.memref_squeeze %367 : memref<1x32xf32, #tpu.memory_space<vmem>> -> memref<32xf32, #tpu.memory_space<vmem>>
    %369 = tpu.memref_slice %arg14[%c20_i32_198] : memref<32x!tpu.dma_semaphore, #tpu.memory_space<semaphore_mem>> -> memref<1x!tpu.dma_semaphore, #tpu.memory_space<semaphore_mem>>
    %370 = tpu.memref_squeeze %369 : memref<1x!tpu.dma_semaphore, #tpu.memory_space<semaphore_mem>> -> memref<!tpu.dma_semaphore, #tpu.memory_space<semaphore_mem>>
    tpu.wait_dma2 semaphore(%370 : memref<!tpu.dma_semaphore, #tpu.memory_space<semaphore_mem>>) src(%366 : memref<32xf32, #tpu.memory_space<any>>) dst(%368 : memref<32xf32, #tpu.memory_space<vmem>>)
    %c21_201 = arith.constant 21 : index
    %371 = memref.load %arg0[%c21_201] : memref<32xi32, #tpu.memory_space<smem>>
    %c21_i32_202 = arith.constant 21 : i32
    %c21_i32_203 = arith.constant 21 : i32
    %c0_i32_204 = arith.constant 0 : i32
    %372 = tpu.memref_slice %arg1[%371, %c0_i32_204] : memref<32x32xf32, #tpu.memory_space<any>> -> memref<1x32xf32, #tpu.memory_space<any>>
    %373 = tpu.memref_squeeze %372 : memref<1x32xf32, #tpu.memory_space<any>> -> memref<32xf32, #tpu.memory_space<any>>
    %c0_i32_205 = arith.constant 0 : i32
    %374 = tpu.memref_slice %arg13[%c21_i32_202, %c0_i32_205] : memref<32x32xf32, #tpu.memory_space<vmem>> -> memref<1x32xf32, #tpu.memory_space<vmem>>
    %375 = tpu.memref_squeeze %374 : memref<1x32xf32, #tpu.memory_space<vmem>> -> memref<32xf32, #tpu.memory_space<vmem>>
    %376 = tpu.memref_slice %arg14[%c21_i32_203] : memref<32x!tpu.dma_semaphore, #tpu.memory_space<semaphore_mem>> -> memref<1x!tpu.dma_semaphore, #tpu.memory_space<semaphore_mem>>
    %377 = tpu.memref_squeeze %376 : memref<1x!tpu.dma_semaphore, #tpu.memory_space<semaphore_mem>> -> memref<!tpu.dma_semaphore, #tpu.memory_space<semaphore_mem>>
    tpu.wait_dma2 semaphore(%377 : memref<!tpu.dma_semaphore, #tpu.memory_space<semaphore_mem>>) src(%373 : memref<32xf32, #tpu.memory_space<any>>) dst(%375 : memref<32xf32, #tpu.memory_space<vmem>>)
    %c22_206 = arith.constant 22 : index
    %378 = memref.load %arg0[%c22_206] : memref<32xi32, #tpu.memory_space<smem>>
    %c22_i32_207 = arith.constant 22 : i32
    %c22_i32_208 = arith.constant 22 : i32
    %c0_i32_209 = arith.constant 0 : i32
    %379 = tpu.memref_slice %arg1[%378, %c0_i32_209] : memref<32x32xf32, #tpu.memory_space<any>> -> memref<1x32xf32, #tpu.memory_space<any>>
    %380 = tpu.memref_squeeze %379 : memref<1x32xf32, #tpu.memory_space<any>> -> memref<32xf32, #tpu.memory_space<any>>
    %c0_i32_210 = arith.constant 0 : i32
    %381 = tpu.memref_slice %arg13[%c22_i32_207, %c0_i32_210] : memref<32x32xf32, #tpu.memory_space<vmem>> -> memref<1x32xf32, #tpu.memory_space<vmem>>
    %382 = tpu.memref_squeeze %381 : memref<1x32xf32, #tpu.memory_space<vmem>> -> memref<32xf32, #tpu.memory_space<vmem>>
    %383 = tpu.memref_slice %arg14[%c22_i32_208] : memref<32x!tpu.dma_semaphore, #tpu.memory_space<semaphore_mem>> -> memref<1x!tpu.dma_semaphore, #tpu.memory_space<semaphore_mem>>
    %384 = tpu.memref_squeeze %383 : memref<1x!tpu.dma_semaphore, #tpu.memory_space<semaphore_mem>> -> memref<!tpu.dma_semaphore, #tpu.memory_space<semaphore_mem>>
    tpu.wait_dma2 semaphore(%384 : memref<!tpu.dma_semaphore, #tpu.memory_space<semaphore_mem>>) src(%380 : memref<32xf32, #tpu.memory_space<any>>) dst(%382 : memref<32xf32, #tpu.memory_space<vmem>>)
    %c23_211 = arith.constant 23 : index
    %385 = memref.load %arg0[%c23_211] : memref<32xi32, #tpu.memory_space<smem>>
    %c23_i32_212 = arith.constant 23 : i32
    %c23_i32_213 = arith.constant 23 : i32
    %c0_i32_214 = arith.constant 0 : i32
    %386 = tpu.memref_slice %arg1[%385, %c0_i32_214] : memref<32x32xf32, #tpu.memory_space<any>> -> memref<1x32xf32, #tpu.memory_space<any>>
    %387 = tpu.memref_squeeze %386 : memref<1x32xf32, #tpu.memory_space<any>> -> memref<32xf32, #tpu.memory_space<any>>
    %c0_i32_215 = arith.constant 0 : i32
    %388 = tpu.memref_slice %arg13[%c23_i32_212, %c0_i32_215] : memref<32x32xf32, #tpu.memory_space<vmem>> -> memref<1x32xf32, #tpu.memory_space<vmem>>
    %389 = tpu.memref_squeeze %388 : memref<1x32xf32, #tpu.memory_space<vmem>> -> memref<32xf32, #tpu.memory_space<vmem>>
    %390 = tpu.memref_slice %arg14[%c23_i32_213] : memref<32x!tpu.dma_semaphore, #tpu.memory_space<semaphore_mem>> -> memref<1x!tpu.dma_semaphore, #tpu.memory_space<semaphore_mem>>
    %391 = tpu.memref_squeeze %390 : memref<1x!tpu.dma_semaphore, #tpu.memory_space<semaphore_mem>> -> memref<!tpu.dma_semaphore, #tpu.memory_space<semaphore_mem>>
    tpu.wait_dma2 semaphore(%391 : memref<!tpu.dma_semaphore, #tpu.memory_space<semaphore_mem>>) src(%387 : memref<32xf32, #tpu.memory_space<any>>) dst(%389 : memref<32xf32, #tpu.memory_space<vmem>>)
    %c24_216 = arith.constant 24 : index
    %392 = memref.load %arg0[%c24_216] : memref<32xi32, #tpu.memory_space<smem>>
    %c24_i32_217 = arith.constant 24 : i32
    %c24_i32_218 = arith.constant 24 : i32
    %c0_i32_219 = arith.constant 0 : i32
    %393 = tpu.memref_slice %arg1[%392, %c0_i32_219] : memref<32x32xf32, #tpu.memory_space<any>> -> memref<1x32xf32, #tpu.memory_space<any>>
    %394 = tpu.memref_squeeze %393 : memref<1x32xf32, #tpu.memory_space<any>> -> memref<32xf32, #tpu.memory_space<any>>
    %c0_i32_220 = arith.constant 0 : i32
    %395 = tpu.memref_slice %arg13[%c24_i32_217, %c0_i32_220] : memref<32x32xf32, #tpu.memory_space<vmem>> -> memref<1x32xf32, #tpu.memory_space<vmem>>
    %396 = tpu.memref_squeeze %395 : memref<1x32xf32, #tpu.memory_space<vmem>> -> memref<32xf32, #tpu.memory_space<vmem>>
    %397 = tpu.memref_slice %arg14[%c24_i32_218] : memref<32x!tpu.dma_semaphore, #tpu.memory_space<semaphore_mem>> -> memref<1x!tpu.dma_semaphore, #tpu.memory_space<semaphore_mem>>
    %398 = tpu.memref_squeeze %397 : memref<1x!tpu.dma_semaphore, #tpu.memory_space<semaphore_mem>> -> memref<!tpu.dma_semaphore, #tpu.memory_space<semaphore_mem>>
    tpu.wait_dma2 semaphore(%398 : memref<!tpu.dma_semaphore, #tpu.memory_space<semaphore_mem>>) src(%394 : memref<32xf32, #tpu.memory_space<any>>) dst(%396 : memref<32xf32, #tpu.memory_space<vmem>>)
    %c25_221 = arith.constant 25 : index
    %399 = memref.load %arg0[%c25_221] : memref<32xi32, #tpu.memory_space<smem>>
    %c25_i32_222 = arith.constant 25 : i32
    %c25_i32_223 = arith.constant 25 : i32
    %c0_i32_224 = arith.constant 0 : i32
    %400 = tpu.memref_slice %arg1[%399, %c0_i32_224] : memref<32x32xf32, #tpu.memory_space<any>> -> memref<1x32xf32, #tpu.memory_space<any>>
    %401 = tpu.memref_squeeze %400 : memref<1x32xf32, #tpu.memory_space<any>> -> memref<32xf32, #tpu.memory_space<any>>
    %c0_i32_225 = arith.constant 0 : i32
    %402 = tpu.memref_slice %arg13[%c25_i32_222, %c0_i32_225] : memref<32x32xf32, #tpu.memory_space<vmem>> -> memref<1x32xf32, #tpu.memory_space<vmem>>
    %403 = tpu.memref_squeeze %402 : memref<1x32xf32, #tpu.memory_space<vmem>> -> memref<32xf32, #tpu.memory_space<vmem>>
    %404 = tpu.memref_slice %arg14[%c25_i32_223] : memref<32x!tpu.dma_semaphore, #tpu.memory_space<semaphore_mem>> -> memref<1x!tpu.dma_semaphore, #tpu.memory_space<semaphore_mem>>
    %405 = tpu.memref_squeeze %404 : memref<1x!tpu.dma_semaphore, #tpu.memory_space<semaphore_mem>> -> memref<!tpu.dma_semaphore, #tpu.memory_space<semaphore_mem>>
    tpu.wait_dma2 semaphore(%405 : memref<!tpu.dma_semaphore, #tpu.memory_space<semaphore_mem>>) src(%401 : memref<32xf32, #tpu.memory_space<any>>) dst(%403 : memref<32xf32, #tpu.memory_space<vmem>>)
    %c26_226 = arith.constant 26 : index
    %406 = memref.load %arg0[%c26_226] : memref<32xi32, #tpu.memory_space<smem>>
    %c26_i32_227 = arith.constant 26 : i32
    %c26_i32_228 = arith.constant 26 : i32
    %c0_i32_229 = arith.constant 0 : i32
    %407 = tpu.memref_slice %arg1[%406, %c0_i32_229] : memref<32x32xf32, #tpu.memory_space<any>> -> memref<1x32xf32, #tpu.memory_space<any>>
    %408 = tpu.memref_squeeze %407 : memref<1x32xf32, #tpu.memory_space<any>> -> memref<32xf32, #tpu.memory_space<any>>
    %c0_i32_230 = arith.constant 0 : i32
    %409 = tpu.memref_slice %arg13[%c26_i32_227, %c0_i32_230] : memref<32x32xf32, #tpu.memory_space<vmem>> -> memref<1x32xf32, #tpu.memory_space<vmem>>
    %410 = tpu.memref_squeeze %409 : memref<1x32xf32, #tpu.memory_space<vmem>> -> memref<32xf32, #tpu.memory_space<vmem>>
    %411 = tpu.memref_slice %arg14[%c26_i32_228] : memref<32x!tpu.dma_semaphore, #tpu.memory_space<semaphore_mem>> -> memref<1x!tpu.dma_semaphore, #tpu.memory_space<semaphore_mem>>
    %412 = tpu.memref_squeeze %411 : memref<1x!tpu.dma_semaphore, #tpu.memory_space<semaphore_mem>> -> memref<!tpu.dma_semaphore, #tpu.memory_space<semaphore_mem>>
    tpu.wait_dma2 semaphore(%412 : memref<!tpu.dma_semaphore, #tpu.memory_space<semaphore_mem>>) src(%408 : memref<32xf32, #tpu.memory_space<any>>) dst(%410 : memref<32xf32, #tpu.memory_space<vmem>>)
    %c27_231 = arith.constant 27 : index
    %413 = memref.load %arg0[%c27_231] : memref<32xi32, #tpu.memory_space<smem>>
    %c27_i32_232 = arith.constant 27 : i32
    %c27_i32_233 = arith.constant 27 : i32
    %c0_i32_234 = arith.constant 0 : i32
    %414 = tpu.memref_slice %arg1[%413, %c0_i32_234] : memref<32x32xf32, #tpu.memory_space<any>> -> memref<1x32xf32, #tpu.memory_space<any>>
    %415 = tpu.memref_squeeze %414 : memref<1x32xf32, #tpu.memory_space<any>> -> memref<32xf32, #tpu.memory_space<any>>
    %c0_i32_235 = arith.constant 0 : i32
    %416 = tpu.memref_slice %arg13[%c27_i32_232, %c0_i32_235] : memref<32x32xf32, #tpu.memory_space<vmem>> -> memref<1x32xf32, #tpu.memory_space<vmem>>
    %417 = tpu.memref_squeeze %416 : memref<1x32xf32, #tpu.memory_space<vmem>> -> memref<32xf32, #tpu.memory_space<vmem>>
    %418 = tpu.memref_slice %arg14[%c27_i32_233] : memref<32x!tpu.dma_semaphore, #tpu.memory_space<semaphore_mem>> -> memref<1x!tpu.dma_semaphore, #tpu.memory_space<semaphore_mem>>
    %419 = tpu.memref_squeeze %418 : memref<1x!tpu.dma_semaphore, #tpu.memory_space<semaphore_mem>> -> memref<!tpu.dma_semaphore, #tpu.memory_space<semaphore_mem>>
    tpu.wait_dma2 semaphore(%419 : memref<!tpu.dma_semaphore, #tpu.memory_space<semaphore_mem>>) src(%415 : memref<32xf32, #tpu.memory_space<any>>) dst(%417 : memref<32xf32, #tpu.memory_space<vmem>>)
    %c28_236 = arith.constant 28 : index
    %420 = memref.load %arg0[%c28_236] : memref<32xi32, #tpu.memory_space<smem>>
    %c28_i32_237 = arith.constant 28 : i32
    %c28_i32_238 = arith.constant 28 : i32
    %c0_i32_239 = arith.constant 0 : i32
    %421 = tpu.memref_slice %arg1[%420, %c0_i32_239] : memref<32x32xf32, #tpu.memory_space<any>> -> memref<1x32xf32, #tpu.memory_space<any>>
    %422 = tpu.memref_squeeze %421 : memref<1x32xf32, #tpu.memory_space<any>> -> memref<32xf32, #tpu.memory_space<any>>
    %c0_i32_240 = arith.constant 0 : i32
    %423 = tpu.memref_slice %arg13[%c28_i32_237, %c0_i32_240] : memref<32x32xf32, #tpu.memory_space<vmem>> -> memref<1x32xf32, #tpu.memory_space<vmem>>
    %424 = tpu.memref_squeeze %423 : memref<1x32xf32, #tpu.memory_space<vmem>> -> memref<32xf32, #tpu.memory_space<vmem>>
    %425 = tpu.memref_slice %arg14[%c28_i32_238] : memref<32x!tpu.dma_semaphore, #tpu.memory_space<semaphore_mem>> -> memref<1x!tpu.dma_semaphore, #tpu.memory_space<semaphore_mem>>
    %426 = tpu.memref_squeeze %425 : memref<1x!tpu.dma_semaphore, #tpu.memory_space<semaphore_mem>> -> memref<!tpu.dma_semaphore, #tpu.memory_space<semaphore_mem>>
    tpu.wait_dma2 semaphore(%426 : memref<!tpu.dma_semaphore, #tpu.memory_space<semaphore_mem>>) src(%422 : memref<32xf32, #tpu.memory_space<any>>) dst(%424 : memref<32xf32, #tpu.memory_space<vmem>>)
    %c29_241 = arith.constant 29 : index
    %427 = memref.load %arg0[%c29_241] : memref<32xi32, #tpu.memory_space<smem>>
    %c29_i32_242 = arith.constant 29 : i32
    %c29_i32_243 = arith.constant 29 : i32
    %c0_i32_244 = arith.constant 0 : i32
    %428 = tpu.memref_slice %arg1[%427, %c0_i32_244] : memref<32x32xf32, #tpu.memory_space<any>> -> memref<1x32xf32, #tpu.memory_space<any>>
    %429 = tpu.memref_squeeze %428 : memref<1x32xf32, #tpu.memory_space<any>> -> memref<32xf32, #tpu.memory_space<any>>
    %c0_i32_245 = arith.constant 0 : i32
    %430 = tpu.memref_slice %arg13[%c29_i32_242, %c0_i32_245] : memref<32x32xf32, #tpu.memory_space<vmem>> -> memref<1x32xf32, #tpu.memory_space<vmem>>
    %431 = tpu.memref_squeeze %430 : memref<1x32xf32, #tpu.memory_space<vmem>> -> memref<32xf32, #tpu.memory_space<vmem>>
    %432 = tpu.memref_slice %arg14[%c29_i32_243] : memref<32x!tpu.dma_semaphore, #tpu.memory_space<semaphore_mem>> -> memref<1x!tpu.dma_semaphore, #tpu.memory_space<semaphore_mem>>
    %433 = tpu.memref_squeeze %432 : memref<1x!tpu.dma_semaphore, #tpu.memory_space<semaphore_mem>> -> memref<!tpu.dma_semaphore, #tpu.memory_space<semaphore_mem>>
    tpu.wait_dma2 semaphore(%433 : memref<!tpu.dma_semaphore, #tpu.memory_space<semaphore_mem>>) src(%429 : memref<32xf32, #tpu.memory_space<any>>) dst(%431 : memref<32xf32, #tpu.memory_space<vmem>>)
    %c30_246 = arith.constant 30 : index
    %434 = memref.load %arg0[%c30_246] : memref<32xi32, #tpu.memory_space<smem>>
    %c30_i32_247 = arith.constant 30 : i32
    %c30_i32_248 = arith.constant 30 : i32
    %c0_i32_249 = arith.constant 0 : i32
    %435 = tpu.memref_slice %arg1[%434, %c0_i32_249] : memref<32x32xf32, #tpu.memory_space<any>> -> memref<1x32xf32, #tpu.memory_space<any>>
    %436 = tpu.memref_squeeze %435 : memref<1x32xf32, #tpu.memory_space<any>> -> memref<32xf32, #tpu.memory_space<any>>
    %c0_i32_250 = arith.constant 0 : i32
    %437 = tpu.memref_slice %arg13[%c30_i32_247, %c0_i32_250] : memref<32x32xf32, #tpu.memory_space<vmem>> -> memref<1x32xf32, #tpu.memory_space<vmem>>
    %438 = tpu.memref_squeeze %437 : memref<1x32xf32, #tpu.memory_space<vmem>> -> memref<32xf32, #tpu.memory_space<vmem>>
    %439 = tpu.memref_slice %arg14[%c30_i32_248] : memref<32x!tpu.dma_semaphore, #tpu.memory_space<semaphore_mem>> -> memref<1x!tpu.dma_semaphore, #tpu.memory_space<semaphore_mem>>
    %440 = tpu.memref_squeeze %439 : memref<1x!tpu.dma_semaphore, #tpu.memory_space<semaphore_mem>> -> memref<!tpu.dma_semaphore, #tpu.memory_space<semaphore_mem>>
    tpu.wait_dma2 semaphore(%440 : memref<!tpu.dma_semaphore, #tpu.memory_space<semaphore_mem>>) src(%436 : memref<32xf32, #tpu.memory_space<any>>) dst(%438 : memref<32xf32, #tpu.memory_space<vmem>>)
    %c31_251 = arith.constant 31 : index
    %441 = memref.load %arg0[%c31_251] : memref<32xi32, #tpu.memory_space<smem>>
    %c31_i32_252 = arith.constant 31 : i32
    %c31_i32_253 = arith.constant 31 : i32
    %c0_i32_254 = arith.constant 0 : i32
    %442 = tpu.memref_slice %arg1[%441, %c0_i32_254] : memref<32x32xf32, #tpu.memory_space<any>> -> memref<1x32xf32, #tpu.memory_space<any>>
    %443 = tpu.memref_squeeze %442 : memref<1x32xf32, #tpu.memory_space<any>> -> memref<32xf32, #tpu.memory_space<any>>
    %c0_i32_255 = arith.constant 0 : i32
    %444 = tpu.memref_slice %arg13[%c31_i32_252, %c0_i32_255] : memref<32x32xf32, #tpu.memory_space<vmem>> -> memref<1x32xf32, #tpu.memory_space<vmem>>
    %445 = tpu.memref_squeeze %444 : memref<1x32xf32, #tpu.memory_space<vmem>> -> memref<32xf32, #tpu.memory_space<vmem>>
    %446 = tpu.memref_slice %arg14[%c31_i32_253] : memref<32x!tpu.dma_semaphore, #tpu.memory_space<semaphore_mem>> -> memref<1x!tpu.dma_semaphore, #tpu.memory_space<semaphore_mem>>
    %447 = tpu.memref_squeeze %446 : memref<1x!tpu.dma_semaphore, #tpu.memory_space<semaphore_mem>> -> memref<!tpu.dma_semaphore, #tpu.memory_space<semaphore_mem>>
    tpu.wait_dma2 semaphore(%447 : memref<!tpu.dma_semaphore, #tpu.memory_space<semaphore_mem>>) src(%443 : memref<32xf32, #tpu.memory_space<any>>) dst(%445 : memref<32xf32, #tpu.memory_space<vmem>>)
    %c0_256 = arith.constant 0 : index
    %c0_257 = arith.constant 0 : index
    %448 = vector.load %arg13[%c0_256, %c0_257] : memref<32x32xf32, #tpu.memory_space<vmem>>, vector<32x32xf32>
    %449 = arith.truncf %448 : vector<32x32xf32> to vector<32x32xbf16>
    %c0_258 = arith.constant 0 : index
    %c0_259 = arith.constant 0 : index
    %450 = vector.load %arg3[%c0_258, %c0_259] : memref<32x32xbf16, #tpu.memory_space<vmem>>, vector<32x32xbf16>
    %cst = arith.constant dense<0.000000e+00> : vector<32x32xf32>
    %451 = tpu.matmul %449, %450, %cst {dimension_numbers = #tpu.dot_dimension_numbers<[1], [0], [0], [1], [0, 0, 1, 1], [], []>} : vector<32x32xbf16>, vector<32x32xbf16>, vector<32x32xf32> -> vector<32x32xf32>
    %cst_260 = arith.constant 0.000000e+00 : f32
    %452 = vector.broadcast %cst_260 : f32 to vector<32x32xf32>
    %453 = arith.maximumf %451, %452 : vector<32x32xf32>
    %454 = arith.truncf %453 : vector<32x32xf32> to vector<32x32xbf16>
    %c0_261 = arith.constant 0 : index
    %c0_262 = arith.constant 0 : index
    %455 = vector.load %arg4[%c0_261, %c0_262] : memref<32x32xbf16, #tpu.memory_space<vmem>>, vector<32x32xbf16>
    %cst_263 = arith.constant dense<0.000000e+00> : vector<32x32xf32>
    %456 = tpu.matmul %454, %455, %cst_263 {dimension_numbers = #tpu.dot_dimension_numbers<[1], [0], [0], [1], [0, 0, 1, 1], [], []>} : vector<32x32xbf16>, vector<32x32xbf16>, vector<32x32xf32> -> vector<32x32xf32>
    %c0_264 = arith.constant 0 : index
    %c0_265 = arith.constant 0 : index
    %457 = vector.load %arg5[%c0_264, %c0_265] : memref<1x32xf32, #tpu.memory_space<vmem>>, vector<1x32xf32>
    %458 = vector.broadcast %457 : vector<1x32xf32> to vector<32x32xf32>
    %459 = arith.addf %456, %458 : vector<32x32xf32>
    %cst_266 = arith.constant 0.000000e+00 : f32
    %460 = vector.broadcast %cst_266 : f32 to vector<32x32xf32>
    %461 = arith.maximumf %459, %460 : vector<32x32xf32>
    %c0_267 = arith.constant 0 : index
    %c0_268 = arith.constant 0 : index
    %462 = vector.load %arg2[%c0_267, %c0_268] : memref<4x32xbf16, #tpu.memory_space<vmem>>, vector<4x32xbf16>
    %463 = arith.truncf %461 : vector<32x32xf32> to vector<32x32xbf16>
    %cst_269 = arith.constant dense<0.000000e+00> : vector<4x32xf32>
    %464 = tpu.matmul %462, %463, %cst_269 {dimension_numbers = #tpu.dot_dimension_numbers<[1], [0], [0], [1], [0, 0, 1, 1], [], []>} : vector<4x32xbf16>, vector<32x32xbf16>, vector<4x32xf32> -> vector<4x32xf32>
    %465 = arith.truncf %464 : vector<4x32xf32> to vector<4x32xbf16>
    %c0_270 = arith.constant 0 : index
    %c0_271 = arith.constant 0 : index
    %466 = vector.load %arg6[%c0_270, %c0_271] : memref<32x16xbf16, #tpu.memory_space<vmem>>, vector<32x16xbf16>
    %cst_272 = arith.constant dense<0.000000e+00> : vector<4x16xf32>
    %467 = tpu.matmul %465, %466, %cst_272 {dimension_numbers = #tpu.dot_dimension_numbers<[1], [0], [0], [1], [0, 0, 1, 1], [], []>} : vector<4x32xbf16>, vector<32x16xbf16>, vector<4x16xf32> -> vector<4x16xf32>
    %c0_273 = arith.constant 0 : index
    %c0_274 = arith.constant 0 : index
    %468 = vector.load %arg7[%c0_273, %c0_274] : memref<1x16xf32, #tpu.memory_space<vmem>>, vector<1x16xf32>
    %469 = vector.broadcast %468 : vector<1x16xf32> to vector<4x16xf32>
    %470 = arith.addf %467, %469 : vector<4x16xf32>
    %cst_275 = arith.constant 0.000000e+00 : f32
    %471 = vector.broadcast %cst_275 : f32 to vector<4x16xf32>
    %472 = arith.maximumf %470, %471 : vector<4x16xf32>
    %473 = arith.truncf %472 : vector<4x16xf32> to vector<4x16xbf16>
    %c0_276 = arith.constant 0 : index
    %c0_277 = arith.constant 0 : index
    %474 = vector.load %arg8[%c0_276, %c0_277] : memref<16x8xbf16, #tpu.memory_space<vmem>>, vector<16x8xbf16>
    %cst_278 = arith.constant dense<0.000000e+00> : vector<4x8xf32>
    %475 = tpu.matmul %473, %474, %cst_278 {dimension_numbers = #tpu.dot_dimension_numbers<[1], [0], [0], [1], [0, 0, 1, 1], [], []>} : vector<4x16xbf16>, vector<16x8xbf16>, vector<4x8xf32> -> vector<4x8xf32>
    %c0_279 = arith.constant 0 : index
    %c0_280 = arith.constant 0 : index
    %476 = vector.load %arg9[%c0_279, %c0_280] : memref<1x8xf32, #tpu.memory_space<vmem>>, vector<1x8xf32>
    %477 = vector.broadcast %476 : vector<1x8xf32> to vector<4x8xf32>
    %478 = arith.addf %475, %477 : vector<4x8xf32>
    %cst_281 = arith.constant 0.000000e+00 : f32
    %479 = vector.broadcast %cst_281 : f32 to vector<4x8xf32>
    %480 = arith.maximumf %478, %479 : vector<4x8xf32>
    %c0_282 = arith.constant 0 : index
    %c0_283 = arith.constant 0 : index
    %481 = vector.load %arg10[%c0_282, %c0_283] : memref<1x8xf32, #tpu.memory_space<vmem>>, vector<1x8xf32>
    %482 = vector.broadcast %481 : vector<1x8xf32> to vector<4x8xf32>
    %483 = arith.mulf %480, %482 : vector<4x8xf32>
    %cst_284 = arith.constant dense<0.000000e+00> : vector<4xf32>
    %484 = vector.multi_reduction <add>, %483, %cst_284 [1] : vector<4x8xf32> to vector<4xf32>
    %485 = vector.shape_cast %484 : vector<4xf32> to vector<4x1xf32>
    %c0_285 = arith.constant 0 : index
    %c0_286 = arith.constant 0 : index
    %486 = vector.load %arg11[%c0_285, %c0_286] : memref<1x1xf32, #tpu.memory_space<vmem>>, vector<1x1xf32>
    %487 = vector.broadcast %486 : vector<1x1xf32> to vector<4x1xf32>
    %488 = arith.addf %485, %487 : vector<4x1xf32>
    %489 = vector.extract_strided_slice %488 {offsets = [2, 0], sizes = [2, 1], strides = [1, 1]} : vector<4x1xf32> to vector<2x1xf32>
    %490 = vector.extract_strided_slice %488 {offsets = [0, 0], sizes = [2, 1], strides = [1, 1]} : vector<4x1xf32> to vector<2x1xf32>
    %491 = arith.subf %489, %490 : vector<2x1xf32>
    %492 = arith.negf %491 : vector<2x1xf32>
    %493 = math.exp %492 : vector<2x1xf32>
    %cst_287 = arith.constant 1.000000e+00 : f32
    %494 = vector.broadcast %cst_287 : f32 to vector<2x1xf32>
    %495 = arith.addf %494, %493 : vector<2x1xf32>
    %496 = arith.divf %494, %495 : vector<2x1xf32>
    %c0_288 = arith.constant 0 : index
    %c0_289 = arith.constant 0 : index
    %497 = vector.load %arg12[%c0_288, %c0_289] : memref<2x1xf32, #tpu.memory_space<vmem>>, vector<2x1xf32>
    tpu.vector_store %arg12[%c0_288, %c0_289], %496 {strides = array<i32>} : memref<2x1xf32, #tpu.memory_space<vmem>>, vector<2x1xf32>,
    return
  }
}

</mosaic_0001>

<llo_original>
// kernel: tpu_custom_call.1
$region0: #{tpu_custom_call.1}
  #allocation0 [shape = 'u32[]', space=smem, size = 0x4, offset = 0x4, fixed_abs, tag = 'smem constant byte address 0x4 - core index']
  #allocation1 [shape = 'u32[72,128]{1,0:T(1,128)}', space=vmem, size = 0x9000, scoped, tag = 'internal scratch']
  #allocation2 [shape = 'f32[32,32]{1,0:T(8,128)}', space=vmem, size = 0x4000, scoped, tag = 'scratch operand']
  #allocation3 [shape = 's32[32]{0}', space=sflag, size = 0x80, scoped, tag = 'scratch operand']
  #allocation4 [shape = 'f32[1,1]{1,0:T(1,128)S(1)}', space=vmem, size = 0x200, scoped, tag = 'scoped memory for tpu_custom_call.1']
  #allocation9 [shape = 's32[]', space=sflag, size = 0x4, offset = 0, fixed_abs, tag = 'sflag constant byte address 0x0 - dummy sync flag']
  #allocation10 [shape = 's32[]', space=sflag, size = 0x4, offset = 0, fixed_abs, tag = 'sflag constant byte address 0x0 - dummy sync flag']
  #allocation11 [shape = 'u32[]', space=smem, size = 0x4, offset = 0x44, fixed_abs, tag = 'smem constant byte address 0x44 - assertion arg 0']
  #allocation12 [shape = 'u32[]', space=smem, size = 0x4, offset = 0x48, fixed_abs, tag = 'smem constant byte address 0x48 - assertion arg 1']
  #allocation13 [shape = 's32[]', space=sflag, size = 0x4, offset = 0, fixed_abs, tag = 'sflag constant byte address 0x0 - dummy sync flag']
  #allocation14 [shape = 's32[]', space=sflag, size = 0x4, offset = 0, fixed_abs, tag = 'sflag constant byte address 0x0 - dummy sync flag']
  #allocation15 [shape = 's32[]', space=sflag, size = 0x4, offset = 0, fixed_abs, tag = 'sflag constant byte address 0x0 - dummy sync flag']
  #allocation16 [shape = 's32[]', space=sflag, size = 0x4, offset = 0, fixed_abs, tag = 'sflag constant byte address 0x0 - dummy sync flag']
  #allocation17 [shape = 's32[]', space=sflag, size = 0x4, offset = 0, fixed_abs, tag = 'sflag constant byte address 0x0 - dummy sync flag']
  #allocation18 [shape = 's32[]', space=sflag, size = 0x4, offset = 0, fixed_abs, tag = 'sflag constant byte address 0x0 - dummy sync flag']
  #allocation19 [shape = 's32[]', space=sflag, size = 0x4, offset = 0, fixed_abs, tag = 'sflag constant byte address 0x0 - dummy sync flag']
  #allocation20 [shape = 's32[]', space=sflag, size = 0x4, offset = 0, fixed_abs, tag = 'sflag constant byte address 0x0 - dummy sync flag']
  #allocation21 [shape = 's32[]', space=sflag, size = 0x4, offset = 0, fixed_abs, tag = 'sflag constant byte address 0x0 - dummy sync flag']
  #allocation22 [shape = 's32[]', space=sflag, size = 0x4, offset = 0, fixed_abs, tag = 'sflag constant byte address 0x0 - dummy sync flag']
  #allocation23 [shape = 's32[]', space=sflag, size = 0x4, offset = 0, fixed_abs, tag = 'sflag constant byte address 0x0 - dummy sync flag']
  #allocation24 [shape = 's32[]', space=sflag, size = 0x4, offset = 0, fixed_abs, tag = 'sflag constant byte address 0x0 - dummy sync flag']
  #allocation25 [shape = 's32[]', space=sflag, size = 0x4, offset = 0, fixed_abs, tag = 'sflag constant byte address 0x0 - dummy sync flag']
  #allocation26 [shape = 's32[]', space=sflag, size = 0x4, offset = 0, fixed_abs, tag = 'sflag constant byte address 0x0 - dummy sync flag']
  #allocation27 [shape = 's32[]', space=sflag, size = 0x4, offset = 0, fixed_abs, tag = 'sflag constant byte address 0x0 - dummy sync flag']
  #allocation28 [shape = 's32[]', space=sflag, size = 0x4, offset = 0, fixed_abs, tag = 'sflag constant byte address 0x0 - dummy sync flag']
  #allocation29 [shape = 's32[]', space=sflag, size = 0x4, offset = 0, fixed_abs, tag = 'sflag constant byte address 0x0 - dummy sync flag']
  #allocation30 [shape = 's32[]', space=sflag, size = 0x4, offset = 0, fixed_abs, tag = 'sflag constant byte address 0x0 - dummy sync flag']
  #allocation31 [shape = 's32[]', space=sflag, size = 0x4, offset = 0, fixed_abs, tag = 'sflag constant byte address 0x0 - dummy sync flag']
  #allocation32 [shape = 's32[]', space=sflag, size = 0x4, offset = 0, fixed_abs, tag = 'sflag constant byte address 0x0 - dummy sync flag']
  #allocation33 [shape = 's32[]', space=sflag, size = 0x4, offset = 0, fixed_abs, tag = 'sflag constant byte address 0x0 - dummy sync flag']
  #allocation34 [shape = 's32[]', space=sflag, size = 0x4, offset = 0, fixed_abs, tag = 'sflag constant byte address 0x0 - dummy sync flag']
  #allocation35 [shape = 's32[]', space=sflag, size = 0x4, offset = 0, fixed_abs, tag = 'sflag constant byte address 0x0 - dummy sync flag']
  #allocation36 [shape = 's32[]', space=sflag, size = 0x4, offset = 0, fixed_abs, tag = 'sflag constant byte address 0x0 - dummy sync flag']
  #allocation37 [shape = 's32[]', space=sflag, size = 0x4, offset = 0, fixed_abs, tag = 'sflag constant byte address 0x0 - dummy sync flag']
  #allocation38 [shape = 's32[]', space=sflag, size = 0x4, offset = 0, fixed_abs, tag = 'sflag constant byte address 0x0 - dummy sync flag']
  #allocation39 [shape = 's32[]', space=sflag, size = 0x4, offset = 0, fixed_abs, tag = 'sflag constant byte address 0x0 - dummy sync flag']
  #allocation40 [shape = 's32[]', space=sflag, size = 0x4, offset = 0, fixed_abs, tag = 'sflag constant byte address 0x0 - dummy sync flag']
  #allocation41 [shape = 's32[]', space=sflag, size = 0x4, offset = 0, fixed_abs, tag = 'sflag constant byte address 0x0 - dummy sync flag']
  #allocation42 [shape = 's32[]', space=sflag, size = 0x4, offset = 0, fixed_abs, tag = 'sflag constant byte address 0x0 - dummy sync flag']
  #allocation43 [shape = 's32[]', space=sflag, size = 0x4, offset = 0, fixed_abs, tag = 'sflag constant byte address 0x0 - dummy sync flag']
  #allocation44 [shape = 's32[]', space=sflag, size = 0x4, offset = 0, fixed_abs, tag = 'sflag constant byte address 0x0 - dummy sync flag']
  #allocation45 [shape = 's32[]', space=sflag, size = 0x4, offset = 0, fixed_abs, tag = 'sflag constant byte address 0x0 - dummy sync flag']
  #allocation46 [shape = 's32[]', space=sflag, size = 0x4, offset = 0, fixed_abs, tag = 'sflag constant byte address 0x0 - dummy sync flag']
  #allocation47 [shape = 's32[]', space=sflag, size = 0x4, offset = 0, fixed_abs, tag = 'sflag constant byte address 0x0 - dummy sync flag']
  #allocation48 [shape = 's32[]', space=sflag, size = 0x4, offset = 0, fixed_abs, tag = 'sflag constant byte address 0x0 - dummy sync flag']
  #allocation49 [shape = 's32[]', space=sflag, size = 0x4, offset = 0, fixed_abs, tag = 'sflag constant byte address 0x0 - dummy sync flag']
  #allocation50 [shape = 's32[]', space=sflag, size = 0x4, offset = 0, fixed_abs, tag = 'sflag constant byte address 0x0 - dummy sync flag']
  #allocation51 [shape = 's32[]', space=sflag, size = 0x4, offset = 0, fixed_abs, tag = 'sflag constant byte address 0x0 - dummy sync flag']
  #allocation52 [shape = 's32[]', space=sflag, size = 0x4, offset = 0, fixed_abs, tag = 'sflag constant byte address 0x0 - dummy sync flag']
  #allocation53 [shape = 's32[]', space=sflag, size = 0x4, offset = 0, fixed_abs, tag = 'sflag constant byte address 0x0 - dummy sync flag']
  #allocation54 [shape = 's32[]', space=sflag, size = 0x4, offset = 0, fixed_abs, tag = 'sflag constant byte address 0x0 - dummy sync flag']
  #allocation55 [shape = 's32[]', space=sflag, size = 0x4, offset = 0, fixed_abs, tag = 'sflag constant byte address 0x0 - dummy sync flag']
  #allocation56 [shape = 's32[]', space=sflag, size = 0x4, offset = 0, fixed_abs, tag = 'sflag constant byte address 0x0 - dummy sync flag']
  #allocation57 [shape = 's32[]', space=sflag, size = 0x4, offset = 0, fixed_abs, tag = 'sflag constant byte address 0x0 - dummy sync flag']
  #allocation58 [shape = 's32[]', space=sflag, size = 0x4, offset = 0, fixed_abs, tag = 'sflag constant byte address 0x0 - dummy sync flag']
  #allocation59 [shape = 's32[]', space=sflag, size = 0x4, offset = 0, fixed_abs, tag = 'sflag constant byte address 0x0 - dummy sync flag']
  #allocation60 [shape = 's32[]', space=sflag, size = 0x4, offset = 0, fixed_abs, tag = 'sflag constant byte address 0x0 - dummy sync flag']
  #allocation61 [shape = 's32[]', space=sflag, size = 0x4, offset = 0, fixed_abs, tag = 'sflag constant byte address 0x0 - dummy sync flag']
  #allocation62 [shape = 's32[]', space=sflag, size = 0x4, offset = 0, fixed_abs, tag = 'sflag constant byte address 0x0 - dummy sync flag']
  #allocation63 [shape = 's32[]', space=sflag, size = 0x4, offset = 0, fixed_abs, tag = 'sflag constant byte address 0x0 - dummy sync flag']
  #allocation64 [shape = 's32[]', space=sflag, size = 0x4, offset = 0, fixed_abs, tag = 'sflag constant byte address 0x0 - dummy sync flag']
  #allocation65 [shape = 's32[]', space=sflag, size = 0x4, offset = 0, fixed_abs, tag = 'sflag constant byte address 0x0 - dummy sync flag']
  #allocation66 [shape = 's32[]', space=sflag, size = 0x4, offset = 0, fixed_abs, tag = 'sflag constant byte address 0x0 - dummy sync flag']
  #allocation67 [shape = 's32[]', space=sflag, size = 0x4, offset = 0, fixed_abs, tag = 'sflag constant byte address 0x0 - dummy sync flag']
  #allocation68 [shape = 's32[]', space=sflag, size = 0x4, offset = 0, fixed_abs, tag = 'sflag constant byte address 0x0 - dummy sync flag']
  #allocation69 [shape = 's32[]', space=sflag, size = 0x4, offset = 0, fixed_abs, tag = 'sflag constant byte address 0x0 - dummy sync flag']
  #allocation70 [shape = 's32[]', space=sflag, size = 0x4, offset = 0, fixed_abs, tag = 'sflag constant byte address 0x0 - dummy sync flag']
  #allocation71 [shape = 's32[]', space=sflag, size = 0x4, offset = 0, fixed_abs, tag = 'sflag constant byte address 0x0 - dummy sync flag']
  #allocation72 [shape = 's32[]', space=sflag, size = 0x4, offset = 0, fixed_abs, tag = 'sflag constant byte address 0x0 - dummy sync flag']
  #allocation73 [shape = 's32[]', space=sflag, size = 0x4, offset = 0, fixed_abs, tag = 'sflag constant byte address 0x0 - dummy sync flag']
  #allocation74 [shape = 's32[]', space=sflag, size = 0x4, offset = 0, fixed_abs, tag = 'sflag constant byte address 0x0 - dummy sync flag']
  %s0 = inlined_call_operand.vmem [shape: s32[32], index: 0, kind: input, shape index: {}]
  %s1 = inlined_call_operand.hbm [shape: f32[32,32], index: 1, kind: input, shape index: {}]
  %s2 = inlined_call_operand.vmem [shape: bf16[4,32], index: 2, kind: input, shape index: {}]
  %s3 = inlined_call_operand.vmem [shape: bf16[32,32], index: 3, kind: input, shape index: {}]
  %s4 = inlined_call_operand.hbm [shape: bf16[32,32], index: 4, kind: input, shape index: {}]
  %s5 = inlined_call_operand.vmem [shape: f32[1,32], index: 5, kind: input, shape index: {}]
  %s6 = inlined_call_operand.vmem [shape: bf16[32,16], index: 6, kind: input, shape index: {}]
  %s7 = inlined_call_operand.vmem [shape: f32[1,16], index: 7, kind: input, shape index: {}]
  %s8 = inlined_call_operand.vmem [shape: bf16[16,8], index: 8, kind: input, shape index: {}]
  %s9 = inlined_call_operand.vmem [shape: f32[1,8], index: 9, kind: input, shape index: {}]
  %s10 = inlined_call_operand.vmem [shape: f32[1,8], index: 10, kind: input, shape index: {}]
  %s11 = inlined_call_operand.<no memory space> [shape: f32[1,1], index: 11, kind: input, shape index: {}]
  %s12 = inlined_call_operand.vmem [shape: f32[2,1], index: 12, kind: output, shape index: {}]
  %s13 = sld [smem:[#allocation0]]
  $region190: #{tpu_custom_call.1} parent=0
    _
  %s15 = ssub.s32 1, %s13
  %s16 = scalar_select 0, %s15, %s13
  %v17 = vstv %s11
  %18 = vst [vmem:[#allocation4] sm:$0x1] %v17
  $region1: #{tpu_custom_call.1} parent=0
    #allocation5 [shape = 'u8[512]{0}', space=smem, size = 0x200, scoped, tag = 'input window, operand 0, single buffered']
    #allocation6 [shape = 's32[1]{0}', space=sflag, size = 0x4, scoped, tag = 'scoped memory for tpu_custom_call.1']
    #allocation7 [shape = 's32[1]{0}', space=sflag, size = 0x4, scoped, tag = 'scoped memory for tpu_custom_call.1']
    #allocation8 [shape = 'u8[8192]{0}', space=vmem, size = 0x2000, scoped, tag = 'input window, operand 4, single buffered']
    %19 = vsyncpa [#allocation7], 0
    %20 = vsyncpa [#allocation6], 0
    // Predicated region
    $region2: #{tpu_custom_call.1} parent=1 // pred_check
      _
    $region3: #{tpu_custom_call.1} parent=1 // pred_check_branch
      %22 = sbr.rel (0) target = $region5
    $region4: #{tpu_custom_call.1} parent=1 // pred_region
      %24 = vsyncadd [#allocation7], 0
      %s26 = sshll.u32 %s0, 4
      %s27 = int_to_ptr.vmem [resolvable:$true] %s26
      %29 = dma.vmem_to_smem %s27, 16, [#allocation5], [#allocation7]
    $region5: #{tpu_custom_call.1} parent=1 // pred_fallthru
      _
    // Predicated region
    $region6: #{tpu_custom_call.1} parent=1 // pred_check
      _
    $region7: #{tpu_custom_call.1} parent=1 // pred_check_branch
      %31 = sbr.rel (0) target = $region9
    $region8: #{tpu_custom_call.1} parent=1 // pred_region
      _
    $region9: #{tpu_custom_call.1} parent=1 // pred_fallthru
      _
    // Predicated region
    $region10: #{tpu_custom_call.1} parent=1 // pred_check
      _
    $region11: #{tpu_custom_call.1} parent=1 // pred_check_branch
      %33 = sbr.rel (0) target = $region13
    $region12: #{tpu_custom_call.1} parent=1 // pred_region
      _
    $region13: #{tpu_custom_call.1} parent=1 // pred_fallthru
      _
    // Predicated region
    $region14: #{tpu_custom_call.1} parent=1 // pred_check
      _
    $region15: #{tpu_custom_call.1} parent=1 // pred_check_branch
      %35 = sbr.rel (0) target = $region17
    $region16: #{tpu_custom_call.1} parent=1 // pred_region
      %37 = vsyncadd [#allocation6], 0
      %s38 = sshll.u32 %s4, 4
      %s39 = int_to_ptr.hbm [resolvable:$true] %s38
      %s40 = sshll.u32 [#allocation8], 4
      %s41 = int_to_ptr.vmem [resolvable:$true] %s40
      %46 = dma.hbm_to_vmem [thread:$0]  %s39, 256, %s41, [#allocation6], 64, 64, 4
    $region17: #{tpu_custom_call.1} parent=1 // pred_fallthru
      _
    // Predicated region
    $region18: #{tpu_custom_call.1} parent=1 // pred_check
      _
    $region19: #{tpu_custom_call.1} parent=1 // pred_check_branch
      %48 = sbr.rel (0) target = $region21
    $region20: #{tpu_custom_call.1} parent=1 // pred_region
      _
    $region21: #{tpu_custom_call.1} parent=1 // pred_fallthru
      _
    // Predicated region
    $region22: #{tpu_custom_call.1} parent=1 // pred_check
      _
    $region23: #{tpu_custom_call.1} parent=1 // pred_check_branch
      %50 = sbr.rel (0) target = $region25
    $region24: #{tpu_custom_call.1} parent=1 // pred_region
      _
    $region25: #{tpu_custom_call.1} parent=1 // pred_fallthru
      _
    // Predicated region
    $region26: #{tpu_custom_call.1} parent=1 // pred_check
      _
    $region27: #{tpu_custom_call.1} parent=1 // pred_check_branch
      %52 = sbr.rel (0) target = $region29
    $region28: #{tpu_custom_call.1} parent=1 // pred_region
      _
    $region29: #{tpu_custom_call.1} parent=1 // pred_fallthru
      _
    // Predicated region
    $region30: #{tpu_custom_call.1} parent=1 // pred_check
      _
    $region31: #{tpu_custom_call.1} parent=1 // pred_check_branch
      %54 = sbr.rel (0) target = $region33
    $region32: #{tpu_custom_call.1} parent=1 // pred_region
      _
    $region33: #{tpu_custom_call.1} parent=1 // pred_fallthru
      _
    // Predicated region
    $region34: #{tpu_custom_call.1} parent=1 // pred_check
      _
    $region35: #{tpu_custom_call.1} parent=1 // pred_check_branch
      %56 = sbr.rel (0) target = $region37
    $region36: #{tpu_custom_call.1} parent=1 // pred_region
      _
    $region37: #{tpu_custom_call.1} parent=1 // pred_fallthru
      _
    // Predicated region
    $region38: #{tpu_custom_call.1} parent=1 // pred_check
      _
    $region39: #{tpu_custom_call.1} parent=1 // pred_check_branch
      %58 = sbr.rel (0) target = $region41
    $region40: #{tpu_custom_call.1} parent=1 // pred_region
      _
    $region41: #{tpu_custom_call.1} parent=1 // pred_fallthru
      _
    // Predicated region
    $region42: #{tpu_custom_call.1} parent=1 // pred_check
      _
    $region43: #{tpu_custom_call.1} parent=1 // pred_check_branch
      %60 = sbr.rel (0) target = $region45
    $region44: #{tpu_custom_call.1} parent=1 // pred_region
      _
    $region45: #{tpu_custom_call.1} parent=1 // pred_fallthru
      _
    // Predicated region
    $region46: #{tpu_custom_call.1} parent=1 // pred_check
      _
    $region47: #{tpu_custom_call.1} parent=1 // pred_check_branch
      %62 = sbr.rel (0) target = $region49
    $region48: #{tpu_custom_call.1} parent=1 // pred_region
      %64 = dma.done [#allocation7], 16
    $region49: #{tpu_custom_call.1} parent=1 // pred_fallthru
      _
    // Predicated region
    $region50: #{tpu_custom_call.1} parent=1 // pred_check
      _
    $region51: #{tpu_custom_call.1} parent=1 // pred_check_branch
      %66 = sbr.rel (0) target = $region53
    $region52: #{tpu_custom_call.1} parent=1 // pred_region
      %68 = dma.done [#allocation6], 256
    $region53: #{tpu_custom_call.1} parent=1 // pred_fallthru
      _
    %69 = sfence
    %s71 = sld [smem:[#allocation5]]
    %s72 = scalar_lea.hbm %s1, %s71
    // Predicated region
    $region54: #{tpu_custom_call.1} parent=1 // pred_check
      _
    $region55: #{tpu_custom_call.1} parent=1 // pred_check_branch
      %74 = sbr.rel target = $region57
    $region56: #{tpu_custom_call.1} parent=1 // pred_region
      %75 = sst [smem:[#allocation11]] [#allocation10]
      %76 = sst [smem:[#allocation12]] [#allocation9]
    $region57: #{tpu_custom_call.1} parent=1 // pred_fallthru
      _
    %78 = shalt.err (0)
    %s80 = sshll.u32 %s72, 4
    %s81 = int_to_ptr.hbm [resolvable:$true] %s80
    %s82 = sshll.u32 [#allocation2], 4
    %s83 = int_to_ptr.vmem [resolvable:$true] %s82
    %85 = dma.hbm_to_vmem [thread:$0]  %s81, 16, %s83, [#allocation3]
    %s86 = sld [smem:[#allocation5 + $0x1]]
    %s87 = scalar_lea.hbm %s1, %s86
    %s88 = scalar_lea.vmem [#allocation2], 1
    %s89 = scalar_lea.sflag [#allocation3], 1
    // Predicated region
    $region58: #{tpu_custom_call.1} parent=1 // pred_check
      _
    $region59: #{tpu_custom_call.1} parent=1 // pred_check_branch
      %91 = sbr.rel target = $region61
    $region60: #{tpu_custom_call.1} parent=1 // pred_region
      %92 = sst [smem:[#allocation11]] [#allocation14]
      %93 = sst [smem:[#allocation12]] [#allocation13]
    $region61: #{tpu_custom_call.1} parent=1 // pred_fallthru
      _
    %95 = shalt.err (0)
    %s97 = sshll.u32 %s87, 4
    %s98 = int_to_ptr.hbm [resolvable:$true] %s97
    %s99 = sshll.u32 %s88, 4
    %s100 = int_to_ptr.vmem [resolvable:$true] %s99
    %102 = dma.hbm_to_vmem [thread:$0]  %s98, 16, %s100, %s89
    %s103 = sld [smem:[#allocation5 + $0x2]]
    %s104 = scalar_lea.hbm %s1, %s103
    %s105 = scalar_lea.vmem [#allocation2], 2
    %s106 = scalar_lea.sflag [#allocation3], 2
    // Predicated region
    $region62: #{tpu_custom_call.1} parent=1 // pred_check
      _
    $region63: #{tpu_custom_call.1} parent=1 // pred_check_branch
      %108 = sbr.rel target = $region65
    $region64: #{tpu_custom_call.1} parent=1 // pred_region
      %109 = sst [smem:[#allocation11]] [#allocation16]
      %110 = sst [smem:[#allocation12]] [#allocation15]
    $region65: #{tpu_custom_call.1} parent=1 // pred_fallthru
      _
    %112 = shalt.err (0)
    %s114 = sshll.u32 %s104, 4
    %s115 = int_to_ptr.hbm [resolvable:$true] %s114
    %s116 = sshll.u32 %s105, 4
    %s117 = int_to_ptr.vmem [resolvable:$true] %s116
    %119 = dma.hbm_to_vmem [thread:$0]  %s115, 16, %s117, %s106
    %s120 = sld [smem:[#allocation5 + $0x3]]
    %s121 = scalar_lea.hbm %s1, %s120
    %s122 = scalar_lea.vmem [#allocation2], 3
    %s123 = scalar_lea.sflag [#allocation3], 3
    // Predicated region
    $region66: #{tpu_custom_call.1} parent=1 // pred_check
      _
    $region67: #{tpu_custom_call.1} parent=1 // pred_check_branch
      %125 = sbr.rel target = $region69
    $region68: #{tpu_custom_call.1} parent=1 // pred_region
      %126 = sst [smem:[#allocation11]] [#allocation18]
      %127 = sst [smem:[#allocation12]] [#allocation17]
    $region69: #{tpu_custom_call.1} parent=1 // pred_fallthru
      _
    %129 = shalt.err (0)
    %s131 = sshll.u32 %s121, 4
    %s132 = int_to_ptr.hbm [resolvable:$true] %s131
    %s133 = sshll.u32 %s122, 4
    %s134 = int_to_ptr.vmem [resolvable:$true] %s133
    %136 = dma.hbm_to_vmem [thread:$0]  %s132, 16, %s134, %s123
    %s137 = sld [smem:[#allocation5 + $0x4]]
    %s138 = scalar_lea.hbm %s1, %s137
    %s139 = scalar_lea.vmem [#allocation2], 4
    %s140 = scalar_lea.sflag [#allocation3], 4
    // Predicated region
    $region70: #{tpu_custom_call.1} parent=1 // pred_check
      _
    $region71: #{tpu_custom_call.1} parent=1 // pred_check_branch
      %142 = sbr.rel target = $region73
    $region72: #{tpu_custom_call.1} parent=1 // pred_region
      %143 = sst [smem:[#allocation11]] [#allocation20]
      %144 = sst [smem:[#allocation12]] [#allocation19]
    $region73: #{tpu_custom_call.1} parent=1 // pred_fallthru
      _
    %146 = shalt.err (0)
    %s148 = sshll.u32 %s138, 4
    %s149 = int_to_ptr.hbm [resolvable:$true] %s148
    %s150 = sshll.u32 %s139, 4
    %s151 = int_to_ptr.vmem [resolvable:$true] %s150
    %153 = dma.hbm_to_vmem [thread:$0]  %s149, 16, %s151, %s140
    %s154 = sld [smem:[#allocation5 + $0x5]]
    %s155 = scalar_lea.hbm %s1, %s154
    %s156 = scalar_lea.vmem [#allocation2], 5
    %s157 = scalar_lea.sflag [#allocation3], 5
    // Predicated region
    $region74: #{tpu_custom_call.1} parent=1 // pred_check
      _
    $region75: #{tpu_custom_call.1} parent=1 // pred_check_branch
      %159 = sbr.rel target = $region77
    $region76: #{tpu_custom_call.1} parent=1 // pred_region
      %160 = sst [smem:[#allocation11]] [#allocation22]
      %161 = sst [smem:[#allocation12]] [#allocation21]
    $region77: #{tpu_custom_call.1} parent=1 // pred_fallthru
      _
    %163 = shalt.err (0)
    %s165 = sshll.u32 %s155, 4
    %s166 = int_to_ptr.hbm [resolvable:$true] %s165
    %s167 = sshll.u32 %s156, 4
    %s168 = int_to_ptr.vmem [resolvable:$true] %s167
    %170 = dma.hbm_to_vmem [thread:$0]  %s166, 16, %s168, %s157
    %s171 = sld [smem:[#allocation5 + $0x6]]
    %s172 = scalar_lea.hbm %s1, %s171
    %s173 = scalar_lea.vmem [#allocation2], 6
    %s174 = scalar_lea.sflag [#allocation3], 6
    // Predicated region
    $region78: #{tpu_custom_call.1} parent=1 // pred_check
      _
    $region79: #{tpu_custom_call.1} parent=1 // pred_check_branch
      %176 = sbr.rel target = $region81
    $region80: #{tpu_custom_call.1} parent=1 // pred_region
      %177 = sst [smem:[#allocation11]] [#allocation24]
      %178 = sst [smem:[#allocation12]] [#allocation23]
    $region81: #{tpu_custom_call.1} parent=1 // pred_fallthru
      _
    %180 = shalt.err (0)
    %s182 = sshll.u32 %s172, 4
    %s183 = int_to_ptr.hbm [resolvable:$true] %s182
    %s184 = sshll.u32 %s173, 4
    %s185 = int_to_ptr.vmem [resolvable:$true] %s184
    %187 = dma.hbm_to_vmem [thread:$0]  %s183, 16, %s185, %s174
    %s188 = sld [smem:[#allocation5 + $0x7]]
    %s189 = scalar_lea.hbm %s1, %s188
    %s190 = scalar_lea.vmem [#allocation2], 7
    %s191 = scalar_lea.sflag [#allocation3], 7
    // Predicated region
    $region82: #{tpu_custom_call.1} parent=1 // pred_check
      _
    $region83: #{tpu_custom_call.1} parent=1 // pred_check_branch
      %193 = sbr.rel target = $region85
    $region84: #{tpu_custom_call.1} parent=1 // pred_region
      %194 = sst [smem:[#allocation11]] [#allocation26]
      %195 = sst [smem:[#allocation12]] [#allocation25]
    $region85: #{tpu_custom_call.1} parent=1 // pred_fallthru
      _
    %197 = shalt.err (0)
    %s199 = sshll.u32 %s189, 4
    %s200 = int_to_ptr.hbm [resolvable:$true] %s199
    %s201 = sshll.u32 %s190, 4
    %s202 = int_to_ptr.vmem [resolvable:$true] %s201
    %204 = dma.hbm_to_vmem [thread:$0]  %s200, 16, %s202, %s191
    %s205 = sld [smem:[#allocation5 + $0x8]]
    %s206 = scalar_lea.hbm %s1, %s205
    %s207 = scalar_lea.vmem [#allocation2], 8
    %s208 = scalar_lea.sflag [#allocation3], 8
    // Predicated region
    $region86: #{tpu_custom_call.1} parent=1 // pred_check
      _
    $region87: #{tpu_custom_call.1} parent=1 // pred_check_branch
      %210 = sbr.rel target = $region89
    $region88: #{tpu_custom_call.1} parent=1 // pred_region
      %211 = sst [smem:[#allocation11]] [#allocation28]
      %212 = sst [smem:[#allocation12]] [#allocation27]
    $region89: #{tpu_custom_call.1} parent=1 // pred_fallthru
      _
    %214 = shalt.err (0)
    %s216 = sshll.u32 %s206, 4
    %s217 = int_to_ptr.hbm [resolvable:$true] %s216
    %s218 = sshll.u32 %s207, 4
    %s219 = int_to_ptr.vmem [resolvable:$true] %s218
    %221 = dma.hbm_to_vmem [thread:$0]  %s217, 16, %s219, %s208
    %s222 = sld [smem:[#allocation5 + $0x9]]
    %s223 = scalar_lea.hbm %s1, %s222
    %s224 = scalar_lea.vmem [#allocation2], 9
    %s225 = scalar_lea.sflag [#allocation3], 9
    // Predicated region
    $region90: #{tpu_custom_call.1} parent=1 // pred_check
      _
    $region91: #{tpu_custom_call.1} parent=1 // pred_check_branch
      %227 = sbr.rel target = $region93
    $region92: #{tpu_custom_call.1} parent=1 // pred_region
      %228 = sst [smem:[#allocation11]] [#allocation30]
      %229 = sst [smem:[#allocation12]] [#allocation29]
    $region93: #{tpu_custom_call.1} parent=1 // pred_fallthru
      _
    %231 = shalt.err (0)
    %s233 = sshll.u32 %s223, 4
    %s234 = int_to_ptr.hbm [resolvable:$true] %s233
    %s235 = sshll.u32 %s224, 4
    %s236 = int_to_ptr.vmem [resolvable:$true] %s235
    %238 = dma.hbm_to_vmem [thread:$0]  %s234, 16, %s236, %s225
    %s239 = sld [smem:[#allocation5 + $0xa]]
    %s240 = scalar_lea.hbm %s1, %s239
    %s241 = scalar_lea.vmem [#allocation2], 10
    %s242 = scalar_lea.sflag [#allocation3], 10
    // Predicated region
    $region94: #{tpu_custom_call.1} parent=1 // pred_check
      _
    $region95: #{tpu_custom_call.1} parent=1 // pred_check_branch
      %244 = sbr.rel target = $region97
    $region96: #{tpu_custom_call.1} parent=1 // pred_region
      %245 = sst [smem:[#allocation11]] [#allocation32]
      %246 = sst [smem:[#allocation12]] [#allocation31]
    $region97: #{tpu_custom_call.1} parent=1 // pred_fallthru
      _
    %248 = shalt.err (0)
    %s250 = sshll.u32 %s240, 4
    %s251 = int_to_ptr.hbm [resolvable:$true] %s250
    %s252 = sshll.u32 %s241, 4
    %s253 = int_to_ptr.vmem [resolvable:$true] %s252
    %255 = dma.hbm_to_vmem [thread:$0]  %s251, 16, %s253, %s242
    %s256 = sld [smem:[#allocation5 + $0xb]]
    %s257 = scalar_lea.hbm %s1, %s256
    %s258 = scalar_lea.vmem [#allocation2], 11
    %s259 = scalar_lea.sflag [#allocation3], 11
    // Predicated region
    $region98: #{tpu_custom_call.1} parent=1 // pred_check
      _
    $region99: #{tpu_custom_call.1} parent=1 // pred_check_branch
      %261 = sbr.rel target = $region101
    $region100: #{tpu_custom_call.1} parent=1 // pred_region
      %262 = sst [smem:[#allocation11]] [#allocation34]
      %263 = sst [smem:[#allocation12]] [#allocation33]
    $region101: #{tpu_custom_call.1} parent=1 // pred_fallthru
      _
    %265 = shalt.err (0)
    %s267 = sshll.u32 %s257, 4
    %s268 = int_to_ptr.hbm [resolvable:$true] %s267
    %s269 = sshll.u32 %s258, 4
    %s270 = int_to_ptr.vmem [resolvable:$true] %s269
    %272 = dma.hbm_to_vmem [thread:$0]  %s268, 16, %s270, %s259
    %s273 = sld [smem:[#allocation5 + $0xc]]
    %s274 = scalar_lea.hbm %s1, %s273
    %s275 = scalar_lea.vmem [#allocation2], 12
    %s276 = scalar_lea.sflag [#allocation3], 12
    // Predicated region
    $region102: #{tpu_custom_call.1} parent=1 // pred_check
      _
    $region103: #{tpu_custom_call.1} parent=1 // pred_check_branch
      %278 = sbr.rel target = $region105
    $region104: #{tpu_custom_call.1} parent=1 // pred_region
      %279 = sst [smem:[#allocation11]] [#allocation36]
      %280 = sst [smem:[#allocation12]] [#allocation35]
    $region105: #{tpu_custom_call.1} parent=1 // pred_fallthru
      _
    %282 = shalt.err (0)
    %s284 = sshll.u32 %s274, 4
    %s285 = int_to_ptr.hbm [resolvable:$true] %s284
    %s286 = sshll.u32 %s275, 4
    %s287 = int_to_ptr.vmem [resolvable:$true] %s286
    %289 = dma.hbm_to_vmem [thread:$0]  %s285, 16, %s287, %s276
    %s290 = sld [smem:[#allocation5 + $0xd]]
    %s291 = scalar_lea.hbm %s1, %s290
    %s292 = scalar_lea.vmem [#allocation2], 13
    %s293 = scalar_lea.sflag [#allocation3], 13
    // Predicated region
    $region106: #{tpu_custom_call.1} parent=1 // pred_check
      _
    $region107: #{tpu_custom_call.1} parent=1 // pred_check_branch
      %295 = sbr.rel target = $region109
    $region108: #{tpu_custom_call.1} parent=1 // pred_region
      %296 = sst [smem:[#allocation11]] [#allocation38]
      %297 = sst [smem:[#allocation12]] [#allocation37]
    $region109: #{tpu_custom_call.1} parent=1 // pred_fallthru
      _
    %299 = shalt.err (0)
    %s301 = sshll.u32 %s291, 4
    %s302 = int_to_ptr.hbm [resolvable:$true] %s301
    %s303 = sshll.u32 %s292, 4
    %s304 = int_to_ptr.vmem [resolvable:$true] %s303
    %306 = dma.hbm_to_vmem [thread:$0]  %s302, 16, %s304, %s293
    %s307 = sld [smem:[#allocation5 + $0xe]]
    %s308 = scalar_lea.hbm %s1, %s307
    %s309 = scalar_lea.vmem [#allocation2], 14
    %s310 = scalar_lea.sflag [#allocation3], 14
    // Predicated region
    $region110: #{tpu_custom_call.1} parent=1 // pred_check
      _
    $region111: #{tpu_custom_call.1} parent=1 // pred_check_branch
      %312 = sbr.rel target = $region113
    $region112: #{tpu_custom_call.1} parent=1 // pred_region
      %313 = sst [smem:[#allocation11]] [#allocation40]
      %314 = sst [smem:[#allocation12]] [#allocation39]
    $region113: #{tpu_custom_call.1} parent=1 // pred_fallthru
      _
    %316 = shalt.err (0)
    %s318 = sshll.u32 %s308, 4
    %s319 = int_to_ptr.hbm [resolvable:$true] %s318
    %s320 = sshll.u32 %s309, 4
    %s321 = int_to_ptr.vmem [resolvable:$true] %s320
    %323 = dma.hbm_to_vmem [thread:$0]  %s319, 16, %s321, %s310
    %s324 = sld [smem:[#allocation5 + $0xf]]
    %s325 = scalar_lea.hbm %s1, %s324
    %s326 = scalar_lea.vmem [#allocation2], 15
    %s327 = scalar_lea.sflag [#allocation3], 15
    // Predicated region
    $region114: #{tpu_custom_call.1} parent=1 // pred_check
      _
    $region115: #{tpu_custom_call.1} parent=1 // pred_check_branch
      %329 = sbr.rel target = $region117
    $region116: #{tpu_custom_call.1} parent=1 // pred_region
      %330 = sst [smem:[#allocation11]] [#allocation42]
      %331 = sst [smem:[#allocation12]] [#allocation41]
    $region117: #{tpu_custom_call.1} parent=1 // pred_fallthru
      _
    %333 = shalt.err (0)
    %s335 = sshll.u32 %s325, 4
    %s336 = int_to_ptr.hbm [resolvable:$true] %s335
    %s337 = sshll.u32 %s326, 4
    %s338 = int_to_ptr.vmem [resolvable:$true] %s337
    %340 = dma.hbm_to_vmem [thread:$0]  %s336, 16, %s338, %s327
    %s341 = sld [smem:[#allocation5 + $0x10]]
    %s342 = scalar_lea.hbm %s1, %s341
    %s343 = scalar_lea.vmem [#allocation2], 16
    %s344 = scalar_lea.sflag [#allocation3], 16
    // Predicated region
    $region118: #{tpu_custom_call.1} parent=1 // pred_check
      _
    $region119: #{tpu_custom_call.1} parent=1 // pred_check_branch
      %346 = sbr.rel target = $region121
    $region120: #{tpu_custom_call.1} parent=1 // pred_region
      %347 = sst [smem:[#allocation11]] [#allocation44]
      %348 = sst [smem:[#allocation12]] [#allocation43]
    $region121: #{tpu_custom_call.1} parent=1 // pred_fallthru
      _
    %350 = shalt.err (0)
    %s352 = sshll.u32 %s342, 4
    %s353 = int_to_ptr.hbm [resolvable:$true] %s352
    %s354 = sshll.u32 %s343, 4
    %s355 = int_to_ptr.vmem [resolvable:$true] %s354
    %357 = dma.hbm_to_vmem [thread:$0]  %s353, 16, %s355, %s344
    %s358 = sld [smem:[#allocation5 + $0x11]]
    %s359 = scalar_lea.hbm %s1, %s358
    %s360 = scalar_lea.vmem [#allocation2], 17
    %s361 = scalar_lea.sflag [#allocation3], 17
    // Predicated region
    $region122: #{tpu_custom_call.1} parent=1 // pred_check
      _
    $region123: #{tpu_custom_call.1} parent=1 // pred_check_branch
      %363 = sbr.rel target = $region125
    $region124: #{tpu_custom_call.1} parent=1 // pred_region
      %364 = sst [smem:[#allocation11]] [#allocation46]
      %365 = sst [smem:[#allocation12]] [#allocation45]
    $region125: #{tpu_custom_call.1} parent=1 // pred_fallthru
      _
    %367 = shalt.err (0)
    %s369 = sshll.u32 %s359, 4
    %s370 = int_to_ptr.hbm [resolvable:$true] %s369
    %s371 = sshll.u32 %s360, 4
    %s372 = int_to_ptr.vmem [resolvable:$true] %s371
    %374 = dma.hbm_to_vmem [thread:$0]  %s370, 16, %s372, %s361
    %s375 = sld [smem:[#allocation5 + $0x12]]
    %s376 = scalar_lea.hbm %s1, %s375
    %s377 = scalar_lea.vmem [#allocation2], 18
    %s378 = scalar_lea.sflag [#allocation3], 18
    // Predicated region
    $region126: #{tpu_custom_call.1} parent=1 // pred_check
      _
    $region127: #{tpu_custom_call.1} parent=1 // pred_check_branch
      %380 = sbr.rel target = $region129
    $region128: #{tpu_custom_call.1} parent=1 // pred_region
      %381 = sst [smem:[#allocation11]] [#allocation48]
      %382 = sst [smem:[#allocation12]] [#allocation47]
    $region129: #{tpu_custom_call.1} parent=1 // pred_fallthru
      _
    %384 = shalt.err (0)
    %s386 = sshll.u32 %s376, 4
    %s387 = int_to_ptr.hbm [resolvable:$true] %s386
    %s388 = sshll.u32 %s377, 4
    %s389 = int_to_ptr.vmem [resolvable:$true] %s388
    %391 = dma.hbm_to_vmem [thread:$0]  %s387, 16, %s389, %s378
    %s392 = sld [smem:[#allocation5 + $0x13]]
    %s393 = scalar_lea.hbm %s1, %s392
    %s394 = scalar_lea.vmem [#allocation2], 19
    %s395 = scalar_lea.sflag [#allocation3], 19
    // Predicated region
    $region130: #{tpu_custom_call.1} parent=1 // pred_check
      _
    $region131: #{tpu_custom_call.1} parent=1 // pred_check_branch
      %397 = sbr.rel target = $region133
    $region132: #{tpu_custom_call.1} parent=1 // pred_region
      %398 = sst [smem:[#allocation11]] [#allocation50]
      %399 = sst [smem:[#allocation12]] [#allocation49]
    $region133: #{tpu_custom_call.1} parent=1 // pred_fallthru
      _
    %401 = shalt.err (0)
    %s403 = sshll.u32 %s393, 4
    %s404 = int_to_ptr.hbm [resolvable:$true] %s403
    %s405 = sshll.u32 %s394, 4
    %s406 = int_to_ptr.vmem [resolvable:$true] %s405
    %408 = dma.hbm_to_vmem [thread:$0]  %s404, 16, %s406, %s395
    %s409 = sld [smem:[#allocation5 + $0x14]]
    %s410 = scalar_lea.hbm %s1, %s409
    %s411 = scalar_lea.vmem [#allocation2], 20
    %s412 = scalar_lea.sflag [#allocation3], 20
    // Predicated region
    $region134: #{tpu_custom_call.1} parent=1 // pred_check
      _
    $region135: #{tpu_custom_call.1} parent=1 // pred_check_branch
      %414 = sbr.rel target = $region137
    $region136: #{tpu_custom_call.1} parent=1 // pred_region
      %415 = sst [smem:[#allocation11]] [#allocation52]
      %416 = sst [smem:[#allocation12]] [#allocation51]
    $region137: #{tpu_custom_call.1} parent=1 // pred_fallthru
      _
    %418 = shalt.err (0)
    %s420 = sshll.u32 %s410, 4
    %s421 = int_to_ptr.hbm [resolvable:$true] %s420
    %s422 = sshll.u32 %s411, 4
    %s423 = int_to_ptr.vmem [resolvable:$true] %s422
    %425 = dma.hbm_to_vmem [thread:$0]  %s421, 16, %s423, %s412
    %s426 = sld [smem:[#allocation5 + $0x15]]
    %s427 = scalar_lea.hbm %s1, %s426
    %s428 = scalar_lea.vmem [#allocation2], 21
    %s429 = scalar_lea.sflag [#allocation3], 21
    // Predicated region
    $region138: #{tpu_custom_call.1} parent=1 // pred_check
      _
    $region139: #{tpu_custom_call.1} parent=1 // pred_check_branch
      %431 = sbr.rel target = $region141
    $region140: #{tpu_custom_call.1} parent=1 // pred_region
      %432 = sst [smem:[#allocation11]] [#allocation54]
      %433 = sst [smem:[#allocation12]] [#allocation53]
    $region141: #{tpu_custom_call.1} parent=1 // pred_fallthru
      _
    %435 = shalt.err (0)
    %s437 = sshll.u32 %s427, 4
    %s438 = int_to_ptr.hbm [resolvable:$true] %s437
    %s439 = sshll.u32 %s428, 4
    %s440 = int_to_ptr.vmem [resolvable:$true] %s439
    %442 = dma.hbm_to_vmem [thread:$0]  %s438, 16, %s440, %s429
    %s443 = sld [smem:[#allocation5 + $0x16]]
    %s444 = scalar_lea.hbm %s1, %s443
    %s445 = scalar_lea.vmem [#allocation2], 22
    %s446 = scalar_lea.sflag [#allocation3], 22
    // Predicated region
    $region142: #{tpu_custom_call.1} parent=1 // pred_check
      _
    $region143: #{tpu_custom_call.1} parent=1 // pred_check_branch
      %448 = sbr.rel target = $region145
    $region144: #{tpu_custom_call.1} parent=1 // pred_region
      %449 = sst [smem:[#allocation11]] [#allocation56]
      %450 = sst [smem:[#allocation12]] [#allocation55]
    $region145: #{tpu_custom_call.1} parent=1 // pred_fallthru
      _
    %452 = shalt.err (0)
    %s454 = sshll.u32 %s444, 4
    %s455 = int_to_ptr.hbm [resolvable:$true] %s454
    %s456 = sshll.u32 %s445, 4
    %s457 = int_to_ptr.vmem [resolvable:$true] %s456
    %459 = dma.hbm_to_vmem [thread:$0]  %s455, 16, %s457, %s446
    %s460 = sld [smem:[#allocation5 + $0x17]]
    %s461 = scalar_lea.hbm %s1, %s460
    %s462 = scalar_lea.vmem [#allocation2], 23
    %s463 = scalar_lea.sflag [#allocation3], 23
    // Predicated region
    $region146: #{tpu_custom_call.1} parent=1 // pred_check
      _
    $region147: #{tpu_custom_call.1} parent=1 // pred_check_branch
      %465 = sbr.rel target = $region149
    $region148: #{tpu_custom_call.1} parent=1 // pred_region
      %466 = sst [smem:[#allocation11]] [#allocation58]
      %467 = sst [smem:[#allocation12]] [#allocation57]
    $region149: #{tpu_custom_call.1} parent=1 // pred_fallthru
      _
    %469 = shalt.err (0)
    %s471 = sshll.u32 %s461, 4
    %s472 = int_to_ptr.hbm [resolvable:$true] %s471
    %s473 = sshll.u32 %s462, 4
    %s474 = int_to_ptr.vmem [resolvable:$true] %s473
    %476 = dma.hbm_to_vmem [thread:$0]  %s472, 16, %s474, %s463
    %s477 = sld [smem:[#allocation5 + $0x18]]
    %s478 = scalar_lea.hbm %s1, %s477
    %s479 = scalar_lea.vmem [#allocation2], 24
    %s480 = scalar_lea.sflag [#allocation3], 24
    // Predicated region
    $region150: #{tpu_custom_call.1} parent=1 // pred_check
      _
    $region151: #{tpu_custom_call.1} parent=1 // pred_check_branch
      %482 = sbr.rel target = $region153
    $region152: #{tpu_custom_call.1} parent=1 // pred_region
      %483 = sst [smem:[#allocation11]] [#allocation60]
      %484 = sst [smem:[#allocation12]] [#allocation59]
    $region153: #{tpu_custom_call.1} parent=1 // pred_fallthru
      _
    %486 = shalt.err (0)
    %s488 = sshll.u32 %s478, 4
    %s489 = int_to_ptr.hbm [resolvable:$true] %s488
    %s490 = sshll.u32 %s479, 4
    %s491 = int_to_ptr.vmem [resolvable:$true] %s490
    %493 = dma.hbm_to_vmem [thread:$0]  %s489, 16, %s491, %s480
    %s494 = sld [smem:[#allocation5 + $0x19]]
    %s495 = scalar_lea.hbm %s1, %s494
    %s496 = scalar_lea.vmem [#allocation2], 25
    %s497 = scalar_lea.sflag [#allocation3], 25
    // Predicated region
    $region154: #{tpu_custom_call.1} parent=1 // pred_check
      _
    $region155: #{tpu_custom_call.1} parent=1 // pred_check_branch
      %499 = sbr.rel target = $region157
    $region156: #{tpu_custom_call.1} parent=1 // pred_region
      %500 = sst [smem:[#allocation11]] [#allocation62]
      %501 = sst [smem:[#allocation12]] [#allocation61]
    $region157: #{tpu_custom_call.1} parent=1 // pred_fallthru
      _
    %503 = shalt.err (0)
    %s505 = sshll.u32 %s495, 4
    %s506 = int_to_ptr.hbm [resolvable:$true] %s505
    %s507 = sshll.u32 %s496, 4
    %s508 = int_to_ptr.vmem [resolvable:$true] %s507
    %510 = dma.hbm_to_vmem [thread:$0]  %s506, 16, %s508, %s497
    %s511 = sld [smem:[#allocation5 + $0x1a]]
    %s512 = scalar_lea.hbm %s1, %s511
    %s513 = scalar_lea.vmem [#allocation2], 26
    %s514 = scalar_lea.sflag [#allocation3], 26
    // Predicated region
    $region158: #{tpu_custom_call.1} parent=1 // pred_check
      _
    $region159: #{tpu_custom_call.1} parent=1 // pred_check_branch
      %516 = sbr.rel target = $region161
    $region160: #{tpu_custom_call.1} parent=1 // pred_region
      %517 = sst [smem:[#allocation11]] [#allocation64]
      %518 = sst [smem:[#allocation12]] [#allocation63]
    $region161: #{tpu_custom_call.1} parent=1 // pred_fallthru
      _
    %520 = shalt.err (0)
    %s522 = sshll.u32 %s512, 4
    %s523 = int_to_ptr.hbm [resolvable:$true] %s522
    %s524 = sshll.u32 %s513, 4
    %s525 = int_to_ptr.vmem [resolvable:$true] %s524
    %527 = dma.hbm_to_vmem [thread:$0]  %s523, 16, %s525, %s514
    %s528 = sld [smem:[#allocation5 + $0x1b]]
    %s529 = scalar_lea.hbm %s1, %s528
    %s530 = scalar_lea.vmem [#allocation2], 27
    %s531 = scalar_lea.sflag [#allocation3], 27
    // Predicated region
    $region162: #{tpu_custom_call.1} parent=1 // pred_check
      _
    $region163: #{tpu_custom_call.1} parent=1 // pred_check_branch
      %533 = sbr.rel target = $region165
    $region164: #{tpu_custom_call.1} parent=1 // pred_region
      %534 = sst [smem:[#allocation11]] [#allocation66]
      %535 = sst [smem:[#allocation12]] [#allocation65]
    $region165: #{tpu_custom_call.1} parent=1 // pred_fallthru
      _
    %537 = shalt.err (0)
    %s539 = sshll.u32 %s529, 4
    %s540 = int_to_ptr.hbm [resolvable:$true] %s539
    %s541 = sshll.u32 %s530, 4
    %s542 = int_to_ptr.vmem [resolvable:$true] %s541
    %544 = dma.hbm_to_vmem [thread:$0]  %s540, 16, %s542, %s531
    %s545 = sld [smem:[#allocation5 + $0x1c]]
    %s546 = scalar_lea.hbm %s1, %s545
    %s547 = scalar_lea.vmem [#allocation2], 28
    %s548 = scalar_lea.sflag [#allocation3], 28
    // Predicated region
    $region166: #{tpu_custom_call.1} parent=1 // pred_check
      _
    $region167: #{tpu_custom_call.1} parent=1 // pred_check_branch
      %550 = sbr.rel target = $region169
    $region168: #{tpu_custom_call.1} parent=1 // pred_region
      %551 = sst [smem:[#allocation11]] [#allocation68]
      %552 = sst [smem:[#allocation12]] [#allocation67]
    $region169: #{tpu_custom_call.1} parent=1 // pred_fallthru
      _
    %554 = shalt.err (0)
    %s556 = sshll.u32 %s546, 4
    %s557 = int_to_ptr.hbm [resolvable:$true] %s556
    %s558 = sshll.u32 %s547, 4
    %s559 = int_to_ptr.vmem [resolvable:$true] %s558
    %561 = dma.hbm_to_vmem [thread:$0]  %s557, 16, %s559, %s548
    %s562 = sld [smem:[#allocation5 + $0x1d]]
    %s563 = scalar_lea.hbm %s1, %s562
    %s564 = scalar_lea.vmem [#allocation2], 29
    %s565 = scalar_lea.sflag [#allocation3], 29
    // Predicated region
    $region170: #{tpu_custom_call.1} parent=1 // pred_check
      _
    $region171: #{tpu_custom_call.1} parent=1 // pred_check_branch
      %567 = sbr.rel target = $region173
    $region172: #{tpu_custom_call.1} parent=1 // pred_region
      %568 = sst [smem:[#allocation11]] [#allocation70]
      %569 = sst [smem:[#allocation12]] [#allocation69]
    $region173: #{tpu_custom_call.1} parent=1 // pred_fallthru
      _
    %571 = shalt.err (0)
    %s573 = sshll.u32 %s563, 4
    %s574 = int_to_ptr.hbm [resolvable:$true] %s573
    %s575 = sshll.u32 %s564, 4
    %s576 = int_to_ptr.vmem [resolvable:$true] %s575
    %578 = dma.hbm_to_vmem [thread:$0]  %s574, 16, %s576, %s565
    %s579 = sld [smem:[#allocation5 + $0x1e]]
    %s580 = scalar_lea.hbm %s1, %s579
    %s581 = scalar_lea.vmem [#allocation2], 30
    %s582 = scalar_lea.sflag [#allocation3], 30
    // Predicated region
    $region174: #{tpu_custom_call.1} parent=1 // pred_check
      _
    $region175: #{tpu_custom_call.1} parent=1 // pred_check_branch
      %584 = sbr.rel target = $region177
    $region176: #{tpu_custom_call.1} parent=1 // pred_region
      %585 = sst [smem:[#allocation11]] [#allocation72]
      %586 = sst [smem:[#allocation12]] [#allocation71]
    $region177: #{tpu_custom_call.1} parent=1 // pred_fallthru
      _
    %588 = shalt.err (0)
    %s590 = sshll.u32 %s580, 4
    %s591 = int_to_ptr.hbm [resolvable:$true] %s590
    %s592 = sshll.u32 %s581, 4
    %s593 = int_to_ptr.vmem [resolvable:$true] %s592
    %595 = dma.hbm_to_vmem [thread:$0]  %s591, 16, %s593, %s582
    %s596 = sld [smem:[#allocation5 + $0x1f]]
    %s597 = scalar_lea.hbm %s1, %s596
    %s598 = scalar_lea.vmem [#allocation2], 31
    %s599 = scalar_lea.sflag [#allocation3], 31
    // Predicated region
    $region178: #{tpu_custom_call.1} parent=1 // pred_check
      _
    $region179: #{tpu_custom_call.1} parent=1 // pred_check_branch
      %601 = sbr.rel target = $region181
    $region180: #{tpu_custom_call.1} parent=1 // pred_region
      %602 = sst [smem:[#allocation11]] [#allocation74]
      %603 = sst [smem:[#allocation12]] [#allocation73]
    $region181: #{tpu_custom_call.1} parent=1 // pred_fallthru
      _
    %605 = shalt.err (0)
    %s607 = sshll.u32 %s597, 4
    %s608 = int_to_ptr.hbm [resolvable:$true] %s607
    %s609 = sshll.u32 %s598, 4
    %s610 = int_to_ptr.vmem [resolvable:$true] %s609
    %612 = dma.hbm_to_vmem [thread:$0]  %s608, 16, %s610, %s599
    %s613 = sld [smem:[#allocation5]]
    %615 = dma.done [#allocation3], 16
    %s616 = sld [smem:[#allocation5 + $0x1]]
    %618 = dma.done %s89, 16
    %s619 = sld [smem:[#allocation5 + $0x2]]
    %621 = dma.done %s106, 16
    %s622 = sld [smem:[#allocation5 + $0x3]]
    %624 = dma.done %s123, 16
    %s625 = sld [smem:[#allocation5 + $0x4]]
    %627 = dma.done %s140, 16
    %s628 = sld [smem:[#allocation5 + $0x5]]
    %630 = dma.done %s157, 16
    %s631 = sld [smem:[#allocation5 + $0x6]]
    %633 = dma.done %s174, 16
    %s634 = sld [smem:[#allocation5 + $0x7]]
    %636 = dma.done %s191, 16
    %s637 = sld [smem:[#allocation5 + $0x8]]
    %639 = dma.done %s208, 16
    %s640 = sld [smem:[#allocation5 + $0x9]]
    %642 = dma.done %s225, 16
    %s643 = sld [smem:[#allocation5 + $0xa]]
    %645 = dma.done %s242, 16
    %s646 = sld [smem:[#allocation5 + $0xb]]
    %648 = dma.done %s259, 16
    %s649 = sld [smem:[#allocation5 + $0xc]]
    %651 = dma.done %s276, 16
    %s652 = sld [smem:[#allocation5 + $0xd]]
    %654 = dma.done %s293, 16
    %s655 = sld [smem:[#allocation5 + $0xe]]
    %657 = dma.done %s310, 16
    %s658 = sld [smem:[#allocation5 + $0xf]]
    %660 = dma.done %s327, 16
    %s661 = sld [smem:[#allocation5 + $0x10]]
    %663 = dma.done %s344, 16
    %s664 = sld [smem:[#allocation5 + $0x11]]
    %666 = dma.done %s361, 16
    %s667 = sld [smem:[#allocation5 + $0x12]]
    %669 = dma.done %s378, 16
    %s670 = sld [smem:[#allocation5 + $0x13]]
    %672 = dma.done %s395, 16
    %s673 = sld [smem:[#allocation5 + $0x14]]
    %675 = dma.done %s412, 16
    %s676 = sld [smem:[#allocation5 + $0x15]]
    %678 = dma.done %s429, 16
    %s679 = sld [smem:[#allocation5 + $0x16]]
    %681 = dma.done %s446, 16
    %s682 = sld [smem:[#allocation5 + $0x17]]
    %684 = dma.done %s463, 16
    %s685 = sld [smem:[#allocation5 + $0x18]]
    %687 = dma.done %s480, 16
    %s688 = sld [smem:[#allocation5 + $0x19]]
    %690 = dma.done %s497, 16
    %s691 = sld [smem:[#allocation5 + $0x1a]]
    %693 = dma.done %s514, 16
    %s694 = sld [smem:[#allocation5 + $0x1b]]
    %696 = dma.done %s531, 16
    %s697 = sld [smem:[#allocation5 + $0x1c]]
    %699 = dma.done %s548, 16
    %s700 = sld [smem:[#allocation5 + $0x1d]]
    %702 = dma.done %s565, 16
    %s703 = sld [smem:[#allocation5 + $0x1e]]
    %705 = dma.done %s582, 16
    %s706 = sld [smem:[#allocation5 + $0x1f]]
    %708 = dma.done %s599, 16
    %v709 = vld [vmem:[#allocation2] sm:$0xff]
    %v710 = vld [vmem:[#allocation2 + $0x8] sm:$0xff]
    %v711 = vld [vmem:[#allocation2 + $0x10] sm:$0xff]
    %v712 = vld [vmem:[#allocation2 + $0x18] sm:$0xff]
    %v713 = vpack.c.bf16 %v710, %v709
    %v714 = vpack.c.bf16 %v712, %v711
    %v715 = vld [vmem:[%s3] sm:$0xf]
    %v716 = vld [vmem:[%s3 + $0x4] sm:$0xf]
    %v717 = vld [vmem:[%s3 + $0x8] sm:$0xf]
    %v718 = vld [vmem:[%s3 + $0xc] sm:$0xf]
    %v723 = vunpack.c.l.b16 %v715
    %v724 = vunpack.c.l.b16 %v716
    %v725 = vunpack.c.l.b16 %v717
    %v726 = vunpack.c.l.b16 %v718
    %v727 = vpack.c.b16 %v724, %v723
    %v728 = vpack.c.b16 %v726, %v725
    %vm731 = vcmask 261120
    %v733 = vsel %vm731, %v713, 0
    %v736 = vsel %vm731, %v714, 0
    %738 = vmatpush.bf16.msra.mxu0 0
    %739 = vmatpush.bf16.msra.mxu0 0
    %740 = vmatpush.bf16.msra.mxu0 0
    %741 = vmatpush.bf16.msra.mxu0 0
    %742 = vmatpush.bf16.msra.mxu0 0
    %743 = vmatpush.bf16.msra.mxu0 0
    %744 = vmatpush.bf16.msra.mxu0 %v728
    %745 = vmatpush.bf16.msra.mxu0 %v727
    %746 = vmatmul.bf16.gmra.mxu0 %v733
    %v747 = vpop.f32.mrf.mxu0
    %v748 = vadd.f32 0.0, %v747
    %v749 = vpop.f32.mrf.mxu0
    %v750 = vadd.f32 0.0, %v749
    %751 = vmatmul.bf16.gmra.mxu0 %v736
    %v752 = vpop.f32.mrf.mxu0
    %v753 = vadd.f32 0.0, %v752
    %v754 = vpop.f32.mrf.mxu0
    %v755 = vadd.f32 0.0, %v754
    %756 = vdwg.mxu0
    %v757 = vmax.f32 %v748, 0.0
    %v758 = vmax.f32 %v750, 0.0
    %v759 = vmax.f32 %v753, 0.0
    %v760 = vmax.f32 %v755, 0.0
    %v761 = vpack.c.bf16 %v758, %v757
    %v762 = vpack.c.bf16 %v760, %v759
    %v763 = vld [vmem:[#allocation8] sm:$0xf]
    %v764 = vld [vmem:[#allocation8 + $0x4] sm:$0xf]
    %v765 = vld [vmem:[#allocation8 + $0x8] sm:$0xf]
    %v766 = vld [vmem:[#allocation8 + $0xc] sm:$0xf]
    %v767 = vld [vmem:[%s5] sm:$0x1]
    %v769 = vperm.slane %v767, 0
    %v775 = vunpack.c.l.b16 %v763
    %v776 = vunpack.c.l.b16 %v764
    %v777 = vunpack.c.l.b16 %v765
    %v778 = vunpack.c.l.b16 %v766
    %v779 = vpack.c.b16 %v776, %v775
    %v780 = vpack.c.b16 %v778, %v777
    %v784 = vsel %vm731, %v761, 0
    %v787 = vsel %vm731, %v762, 0
    %789 = vmatpush.bf16.msra.mxu0 0
    %790 = vmatpush.bf16.msra.mxu0 0
    %791 = vmatpush.bf16.msra.mxu0 0
    %792 = vmatpush.bf16.msra.mxu0 0
    %793 = vmatpush.bf16.msra.mxu0 0
    %794 = vmatpush.bf16.msra.mxu0 0
    %795 = vmatpush.bf16.msra.mxu0 %v780
    %796 = vmatpush.bf16.msra.mxu0 %v779
    %797 = vmatmul.bf16.gmra.mxu0 %v784
    %v798 = vpop.f32.mrf.mxu0
    %v799 = vadd.f32 %v769, %v798
    %v800 = vpop.f32.mrf.mxu0
    %v801 = vadd.f32 %v769, %v800
    %802 = vmatmul.bf16.gmra.mxu0 %v787
    %v803 = vpop.f32.mrf.mxu0
    %v804 = vadd.f32 %v769, %v803
    %v805 = vpop.f32.mrf.mxu0
    %v806 = vadd.f32 %v769, %v805
    %807 = vdwg.mxu0
    %v808 = vmax.f32 %v799, 0.0
    %v809 = vmax.f32 %v801, 0.0
    %v810 = vmax.f32 %v804, 0.0
    %v811 = vmax.f32 %v806, 0.0
    %v812 = vld [vmem:[%s2] sm:$0x3]
    %v813 = vpack.c.bf16 %v809, %v808
    %v814 = vpack.c.bf16 %v811, %v810
    %v816 = vsel %vm731, %v812, 0
    %818 = vmatpush.bf16.msra.mxu0 0
    %819 = vmatpush.bf16.msra.mxu0 0
    %820 = vmatpush.bf16.msra.mxu0 0
    %821 = vmatpush.bf16.msra.mxu0 0
    %822 = vmatpush.bf16.msra.mxu0 0
    %823 = vmatpush.bf16.msra.mxu0 0
    %824 = vmatpush.bf16.msra.mxu0 %v814
    %825 = vmatpush.bf16.msra.mxu0 %v813
    %826 = vmatmul.bf16.gmra.mxu0 %v816
    %v827 = vpop.f32.mrf.mxu0
    %v828 = vadd.f32 0.0, %v827
    %v829 = vpop.f32.mrf.mxu0
    %830 = vdwg.mxu0
    %v831 = vpack.c.bf16 %v828, %v828
    %v832 = vld [vmem:[%s6] sm:$0xf]
    %v833 = vld [vmem:[%s6 + $0x4] sm:$0xf]
    %v834 = vld [vmem:[%s6 + $0x8] sm:$0xf]
    %v835 = vld [vmem:[%s6 + $0xc] sm:$0xf]
    %v836 = vld [vmem:[%s7] sm:$0x1]
    %v838 = vperm.slane %v836, 0
    %v844 = vunpack.c.l.b16 %v832
    %v845 = vunpack.c.l.b16 %v833
    %v846 = vunpack.c.l.b16 %v834
    %v847 = vunpack.c.l.b16 %v835
    %v848 = vpack.c.b16 %v845, %v844
    %v849 = vpack.c.b16 %v847, %v846
    %v853 = vsel %vm731, %v831, 0
    %855 = vmatpush.bf16.msra.mxu0 0
    %856 = vmatpush.bf16.msra.mxu0 0
    %857 = vmatpush.bf16.msra.mxu0 0
    %858 = vmatpush.bf16.msra.mxu0 0
    %859 = vmatpush.bf16.msra.mxu0 0
    %860 = vmatpush.bf16.msra.mxu0 0
    %861 = vmatpush.bf16.msra.mxu0 %v849
    %862 = vmatpush.bf16.msra.mxu0 %v848
    %863 = vmatmul.bf16.gmra.mxu0 %v853
    %v864 = vpop.f32.mrf.mxu0
    %v865 = vadd.f32 %v838, %v864
    %v866 = vpop.f32.mrf.mxu0
    %867 = vdwg.mxu0
    %v868 = vmax.f32 %v865, 0.0
    %v869 = vpack.c.bf16 %v868, %v868
    %v870 = vld [vmem:[%s8] sm:$0xf]
    %v871 = vld [vmem:[%s8 + $0x4] sm:$0xf]
    %v872 = vld [vmem:[%s9] sm:$0x1]
    %v874 = vperm.slane %v872, 0
    %v878 = vunpack.c.l.b16 %v870
    %v879 = vunpack.c.l.b16 %v871
    %v880 = vpack.c.b16 %v879, %v878
    %vm882 = vcmask 130048
    %v884 = vsel %vm882, %v869, 0
    %886 = vmatpush.bf16.msra.mxu0 0
    %887 = vmatpush.bf16.msra.mxu0 0
    %888 = vmatpush.bf16.msra.mxu0 0
    %889 = vmatpush.bf16.msra.mxu0 0
    %890 = vmatpush.bf16.msra.mxu0 0
    %891 = vmatpush.bf16.msra.mxu0 0
    %892 = vmatpush.bf16.msra.mxu0 0
    %893 = vmatpush.bf16.msra.mxu0 %v880
    %894 = vmatmul.bf16.gmra.mxu0 %v884
    %v895 = vpop.f32.mrf.mxu0
    %v896 = vadd.f32 %v874, %v895
    %v897 = vpop.f32.mrf.mxu0
    %898 = vdwg.mxu0
    %v899 = vmax.f32 %v896, 0.0
    %v900 = vld [vmem:[%s10] sm:$0x1]
    %v902 = vperm.slane %v900, 0
    %v904 = vmul.f32 %v899, %v902
    %vm905 = vcmask 60416
    %v906 = vsel %vm905, %v904, 0.0
    %907 = vadd.xlane.f32.xlu0 %v906
    %v908 = vpop.xlane.xlu0 %907
    %v909 = vld [vmem:[#allocation4] sm:$0x1]
    %v911 = vperm.slane %v909, 0
    %v913 = vadd.f32 %v908, %v911
    %v915 = vrot.slane %v913, 6
    %v917 = vsub.f32 %v913, %v915
    %v918 = vxor.u32 %v917, 2147483648
    %v919 = vmul.f32 %v918, 1.442695
    %v920 = vpow.pop %v919
    %v921 = vadd.f32 %v920, 1.0
    %v922 = vrcp.pop %v921
    %v923 = vmul.f32 %v921, %v922
    %v924 = vsub.f32 1.0, %v923
    %v925 = vmul.f32 %v922, %v924
    %v926 = vadd.f32 %v922, %v925
    %vm927 = vweird.f32 %v921
    %vm928 = vweird.f32 %v922
    %vm929 = vmor %vm927, %vm928
    %v930 = vsel %vm929, %v922, %v926
    %v931 = vand.u32 2147483647, %v921
    %vm932 = vcmp.eq.f32.partialorder %v931, 8.507059e+37
    %v933 = vand.u32 %v921, 2147483648
    %v934 = vor.u32 1.1754944e-38, %v933
    %v935 = vsel %vm932, %v934, %v930
    %v936 = vmul.f32 1.0, %v935
    %vm937 = vcmask 3074
    %938 = vst.msk [vmem:[%s12 - $0x2] sm:$0xc] %vm937, %v936
    // Predicated region
    $region182: #{tpu_custom_call.1} parent=1 // pred_check
      _
    $region183: #{tpu_custom_call.1} parent=1 // pred_check_branch
      %940 = sbr.rel (0) target = $region185
    $region184: #{tpu_custom_call.1} parent=1 // pred_region
      _
    $region185: #{tpu_custom_call.1} parent=1 // pred_fallthru
      _
    // Predicated region
    $region186: #{tpu_custom_call.1} parent=1 // pred_check
      _
    $region187: #{tpu_custom_call.1} parent=1 // pred_check_branch
      %942 = sbr.rel (0) target = $region189
    $region188: #{tpu_custom_call.1} parent=1 // pred_region
      _
    $region189: #{tpu_custom_call.1} parent=1 // pred_fallthru
      _
    %943 = vsyncpa [#allocation6], 1
    %944 = vsyncpa [#allocation7], 1
  %945 = vsyncmov [#allocation3]
  %s946 = vpop.sfrf %945
  %p947 = scmp.eq.s32.totalorder %s946, 0
  %p948 = pneg %p947
  %950 = shalt.err (%p948)
  %s951 = scalar_lea.sflag [#allocation3], 1
  %952 = vsyncmov %s951
  %s953 = vpop.sfrf %952
  %p954 = scmp.eq.s32.totalorder %s953, 0
  %p955 = pneg %p954
  %957 = shalt.err (%p955)
  %s958 = scalar_lea.sflag [#allocation3], 2
  %959 = vsyncmov %s958
  %s960 = vpop.sfrf %959
  %p961 = scmp.eq.s32.totalorder %s960, 0
  %p962 = pneg %p961
  %964 = shalt.err (%p962)
  %s965 = scalar_lea.sflag [#allocation3], 3
  %966 = vsyncmov %s965
  %s967 = vpop.sfrf %966
  %p968 = scmp.eq.s32.totalorder %s967, 0
  %p969 = pneg %p968
  %971 = shalt.err (%p969)
  %s972 = scalar_lea.sflag [#allocation3], 4
  %973 = vsyncmov %s972
  %s974 = vpop.sfrf %973
  %p975 = scmp.eq.s32.totalorder %s974, 0
  %p976 = pneg %p975
  %978 = shalt.err (%p976)
  %s979 = scalar_lea.sflag [#allocation3], 5
  %980 = vsyncmov %s979
  %s981 = vpop.sfrf %980
  %p982 = scmp.eq.s32.totalorder %s981, 0
  %p983 = pneg %p982
  %985 = shalt.err (%p983)
  %s986 = scalar_lea.sflag [#allocation3], 6
  %987 = vsyncmov %s986
  %s988 = vpop.sfrf %987
  %p989 = scmp.eq.s32.totalorder %s988, 0
  %p990 = pneg %p989
  %992 = shalt.err (%p990)
  %s993 = scalar_lea.sflag [#allocation3], 7
  %994 = vsyncmov %s993
  %s995 = vpop.sfrf %994
  %p996 = scmp.eq.s32.totalorder %s995, 0
  %p997 = pneg %p996
  %999 = shalt.err (%p997)
  %s1000 = scalar_lea.sflag [#allocation3], 8
  %1001 = vsyncmov %s1000
  %s1002 = vpop.sfrf %1001
  %p1003 = scmp.eq.s32.totalorder %s1002, 0
  %p1004 = pneg %p1003
  %1006 = shalt.err (%p1004)
  %s1007 = scalar_lea.sflag [#allocation3], 9
  %1008 = vsyncmov %s1007
  %s1009 = vpop.sfrf %1008
  %p1010 = scmp.eq.s32.totalorder %s1009, 0
  %p1011 = pneg %p1010
  %1013 = shalt.err (%p1011)
  %s1014 = scalar_lea.sflag [#allocation3], 10
  %1015 = vsyncmov %s1014
  %s1016 = vpop.sfrf %1015
  %p1017 = scmp.eq.s32.totalorder %s1016, 0
  %p1018 = pneg %p1017
  %1020 = shalt.err (%p1018)
  %s1021 = scalar_lea.sflag [#allocation3], 11
  %1022 = vsyncmov %s1021
  %s1023 = vpop.sfrf %1022
  %p1024 = scmp.eq.s32.totalorder %s1023, 0
  %p1025 = pneg %p1024
  %1027 = shalt.err (%p1025)
  %s1028 = scalar_lea.sflag [#allocation3], 12
  %1029 = vsyncmov %s1028
  %s1030 = vpop.sfrf %1029
  %p1031 = scmp.eq.s32.totalorder %s1030, 0
  %p1032 = pneg %p1031
  %1034 = shalt.err (%p1032)
  %s1035 = scalar_lea.sflag [#allocation3], 13
  %1036 = vsyncmov %s1035
  %s1037 = vpop.sfrf %1036
  %p1038 = scmp.eq.s32.totalorder %s1037, 0
  %p1039 = pneg %p1038
  %1041 = shalt.err (%p1039)
  %s1042 = scalar_lea.sflag [#allocation3], 14
  %1043 = vsyncmov %s1042
  %s1044 = vpop.sfrf %1043
  %p1045 = scmp.eq.s32.totalorder %s1044, 0
  %p1046 = pneg %p1045
  %1048 = shalt.err (%p1046)
  %s1049 = scalar_lea.sflag [#allocation3], 15
  %1050 = vsyncmov %s1049
  %s1051 = vpop.sfrf %1050
  %p1052 = scmp.eq.s32.totalorder %s1051, 0
  %p1053 = pneg %p1052
  %1055 = shalt.err (%p1053)
  %s1056 = scalar_lea.sflag [#allocation3], 16
  %1057 = vsyncmov %s1056
  %s1058 = vpop.sfrf %1057
  %p1059 = scmp.eq.s32.totalorder %s1058, 0
  %p1060 = pneg %p1059
  %1062 = shalt.err (%p1060)
  %s1063 = scalar_lea.sflag [#allocation3], 17
  %1064 = vsyncmov %s1063
  %s1065 = vpop.sfrf %1064
  %p1066 = scmp.eq.s32.totalorder %s1065, 0
  %p1067 = pneg %p1066
  %1069 = shalt.err (%p1067)
  %s1070 = scalar_lea.sflag [#allocation3], 18
  %1071 = vsyncmov %s1070
  %s1072 = vpop.sfrf %1071
  %p1073 = scmp.eq.s32.totalorder %s1072, 0
  %p1074 = pneg %p1073
  %1076 = shalt.err (%p1074)
  %s1077 = scalar_lea.sflag [#allocation3], 19
  %1078 = vsyncmov %s1077
  %s1079 = vpop.sfrf %1078
  %p1080 = scmp.eq.s32.totalorder %s1079, 0
  %p1081 = pneg %p1080
  %1083 = shalt.err (%p1081)
  %s1084 = scalar_lea.sflag [#allocation3], 20
  %1085 = vsyncmov %s1084
  %s1086 = vpop.sfrf %1085
  %p1087 = scmp.eq.s32.totalorder %s1086, 0
  %p1088 = pneg %p1087
  %1090 = shalt.err (%p1088)
  %s1091 = scalar_lea.sflag [#allocation3], 21
  %1092 = vsyncmov %s1091
  %s1093 = vpop.sfrf %1092
  %p1094 = scmp.eq.s32.totalorder %s1093, 0
  %p1095 = pneg %p1094
  %1097 = shalt.err (%p1095)
  %s1098 = scalar_lea.sflag [#allocation3], 22
  %1099 = vsyncmov %s1098
  %s1100 = vpop.sfrf %1099
  %p1101 = scmp.eq.s32.totalorder %s1100, 0
  %p1102 = pneg %p1101
  %1104 = shalt.err (%p1102)
  %s1105 = scalar_lea.sflag [#allocation3], 23
  %1106 = vsyncmov %s1105
  %s1107 = vpop.sfrf %1106
  %p1108 = scmp.eq.s32.totalorder %s1107, 0
  %p1109 = pneg %p1108
  %1111 = shalt.err (%p1109)
  %s1112 = scalar_lea.sflag [#allocation3], 24
  %1113 = vsyncmov %s1112
  %s1114 = vpop.sfrf %1113
  %p1115 = scmp.eq.s32.totalorder %s1114, 0
  %p1116 = pneg %p1115
  %1118 = shalt.err (%p1116)
  %s1119 = scalar_lea.sflag [#allocation3], 25
  %1120 = vsyncmov %s1119
  %s1121 = vpop.sfrf %1120
  %p1122 = scmp.eq.s32.totalorder %s1121, 0
  %p1123 = pneg %p1122
  %1125 = shalt.err (%p1123)
  %s1126 = scalar_lea.sflag [#allocation3], 26
  %1127 = vsyncmov %s1126
  %s1128 = vpop.sfrf %1127
  %p1129 = scmp.eq.s32.totalorder %s1128, 0
  %p1130 = pneg %p1129
  %1132 = shalt.err (%p1130)
  %s1133 = scalar_lea.sflag [#allocation3], 27
  %1134 = vsyncmov %s1133
  %s1135 = vpop.sfrf %1134
  %p1136 = scmp.eq.s32.totalorder %s1135, 0
  %p1137 = pneg %p1136
  %1139 = shalt.err (%p1137)
  %s1140 = scalar_lea.sflag [#allocation3], 28
  %1141 = vsyncmov %s1140
  %s1142 = vpop.sfrf %1141
  %p1143 = scmp.eq.s32.totalorder %s1142, 0
  %p1144 = pneg %p1143
  %1146 = shalt.err (%p1144)
  %s1147 = scalar_lea.sflag [#allocation3], 29
  %1148 = vsyncmov %s1147
  %s1149 = vpop.sfrf %1148
  %p1150 = scmp.eq.s32.totalorder %s1149, 0
  %p1151 = pneg %p1150
  %1153 = shalt.err (%p1151)
  %s1154 = scalar_lea.sflag [#allocation3], 30
  %1155 = vsyncmov %s1154
  %s1156 = vpop.sfrf %1155
  %p1157 = scmp.eq.s32.totalorder %s1156, 0
  %p1158 = pneg %p1157
  %1160 = shalt.err (%p1158)
  %s1161 = scalar_lea.sflag [#allocation3], 31
  %1162 = vsyncmov %s1161
  %s1163 = vpop.sfrf %1162
  %p1164 = scmp.eq.s32.totalorder %s1163, 0
  %p1165 = pneg %p1164
  %1167 = shalt.err (%p1165)

</llo_original>
